<compile_context>
chip_gen: v7x
topology: tpu7x:2x2x1
jax: 0.10.0
libtpu: 0.0.40
codegen_flags: <defaults>
</compile_context>

<pallas_src>
import jax
import jax.numpy as jnp
from jax import lax
from jax.experimental import pallas as pl
from jax.experimental.pallas import tpu as pltpu

BN_EPS = 1e-5


# ------------------------------ Pallas kernels ------------------------------

def _convt_bn_relu_kernel(wt_ref, pt_ref, g_ref, b_ref, o_ref):
    """ConvTranspose (as matmul) + BatchNorm2d(training) + ReLU.

    Grid: (K // tile_k,), reduction axis.  o_ref (Cout, M) f32 is the resident
    accumulator (same output block for every grid step).
    """
    @pl.when(pl.program_id(0) == 0)
    def _():
        o_ref[...] = jnp.zeros_like(o_ref)

    # bf16 x bf16 -> f32 accumulate on the MXU.
    o_ref[...] += jnp.dot(wt_ref[...], pt_ref[...],
                          preferred_element_type=jnp.float32)

    @pl.when(pl.program_id(0) == pl.num_programs(0) - 1)
    def _():
        y = o_ref[...]                                    # (Cout, M) f32
        # Per-channel batch stats over the full M = B*OH*OW axis (lanes),
        # single-pass biased variance (PyTorch training-mode normalization).
        mean = jnp.mean(y, axis=1, keepdims=True)         # (Cout, 1)
        var = jnp.mean(y * y, axis=1, keepdims=True) - mean * mean
        scale = lax.rsqrt(var + BN_EPS) * g_ref[...]
        o_ref[...] = jnp.maximum((y - mean) * scale + b_ref[...], 0.0)


def _convt_tanh_kernel(wt_ref, pt_ref, o_ref):
    """Final ConvTranspose (as matmul) + Tanh.  Grid: (M_pad//tile_m,), parallel."""
    y = jnp.dot(wt_ref[...], pt_ref[...], preferred_element_type=jnp.float32)
    o_ref[...] = jnp.tanh(y)


# -------------------------------- JAX glue ----------------------------------

def _round_up(x, m):
    return (x + m - 1) // m * m


def _pick_tile_k(K, cap=512):
    """Largest multiple of 128 that divides K (<= cap); full K otherwise."""
    for t in range(min(K, cap), 0, -128):
        if t % 128 == 0 and K % t == 0:
            return t
    return K


def _build_patches(a, k, s, p):
    """a: (Cin, B, H, W) channel-major activation -> Pt (k*k*Cin, B*OH*OW).

    ConvTranspose2d(k, stride=s, padding=p) == stride-1 conv of the zero-
    dilated input padded by (k-1-p) with the spatially flipped kernel.
    Pt rows are ordered (kh, kw, ci); columns are ordered (b, oh, ow).
    The slab is built in bf16 and streamed into the kernel over the K grid
    axis (never fully VMEM-resident).
    # TODO(synk): at production scale, replace this HBM tap slab with in-kernel
    # tap accumulation over a VMEM-resident padded input block.
    """
    C, B, H, W = a.shape
    uh, uw = (H - 1) * s + 1, (W - 1) * s + 1
    xu = jnp.zeros((C, B, uh, uw), a.dtype).at[:, :, ::s, ::s].set(a)
    pad = k - 1 - p
    xp = jnp.pad(xu, ((0, 0), (0, 0), (pad, pad), (pad, pad)))
    OH = uh + 2 * pad - k + 1
    OW = uw + 2 * pad - k + 1
    taps = [xp[:, :, kh:kh + OH, kw:kw + OW].reshape(C, B * OH * OW)
            for kh in range(k) for kw in range(k)]
    return jnp.concatenate(taps, axis=0), OH, OW


def _flatten_weight_t(w_t):
    """PyTorch ConvTranspose2d weight (Cin, Cout, k, k) -> Wt (Cout, k*k*Cin),
    spatially flipped, contraction order (kh, kw, ci) matching _build_patches."""
    Cin, Cout, k, _ = w_t.shape
    w_flip = w_t[:, :, ::-1, ::-1]                        # (Cin, Cout, k, k)
    return w_flip.transpose(1, 2, 3, 0).reshape(Cout, k * k * Cin)


def _convt_layer(a, w_t, k, s, p, gamma=None, beta=None, final=False):
    """One ConvTranspose2d (+BN+ReLU, or +Tanh).  Activations are (C, B, H, W)."""
    Cout = w_t.shape[1]
    B = a.shape[1]
    pt, OH, OW = _build_patches(a.astype(jnp.bfloat16), k, s, p)
    wt = _flatten_weight_t(w_t.astype(jnp.bfloat16))
    K, M = pt.shape

    if final:
        tile_m = 512                                       # lane-dense M tiles
        M_pad = _round_up(M, tile_m)
        pt = jnp.pad(pt, ((0, 0), (0, M_pad - M)))          # zero cols -> tanh(0)=0
        y = pl.pallas_call(
            _convt_tanh_kernel,
            out_shape=jax.ShapeDtypeStruct((Cout, M_pad), jnp.float32),
            grid_spec=pltpu.PrefetchScalarGridSpec(
                num_scalar_prefetch=0,
                grid=(M_pad // tile_m,),
                in_specs=[pl.BlockSpec((Cout, K), lambda j: (0, 0)),
                          pl.BlockSpec((K, tile_m), lambda j: (0, j))],
                out_specs=pl.BlockSpec((Cout, tile_m), lambda j: (0, j))),
            compiler_params=pltpu.CompilerParams(
                dimension_semantics=("parallel",)),
            cost_estimate=pl.CostEstimate(
                flops=2 * Cout * K * M_pad,
                transcendentals=Cout * M_pad,
                bytes_accessed=2 * (K * M_pad + Cout * K) + 4 * Cout * M_pad),
        )(wt, pt)
        y = y[:, :M]
    else:
        # BN batch statistics need the FULL M axis, so M stays un-tiled here
        # (it is tiny: B*OH*OW <= 1352 at these shapes); the reduction axis K
        # is streamed through the grid with the output block as accumulator.
        tile_k = _pick_tile_k(K)
        g2 = gamma.reshape(Cout, 1).astype(jnp.float32)
        b2 = beta.reshape(Cout, 1).astype(jnp.float32)
        y = pl.pallas_call(
            _convt_bn_relu_kernel,
            out_shape=jax.ShapeDtypeStruct((Cout, M), jnp.float32),
            grid_spec=pltpu.PrefetchScalarGridSpec(
                num_scalar_prefetch=0,
                grid=(K // tile_k,),
                in_specs=[pl.BlockSpec((Cout, tile_k), lambda kk: (0, kk)),
                          pl.BlockSpec((tile_k, M), lambda kk: (kk, 0)),
                          pl.BlockSpec((Cout, 1), lambda kk: (0, 0)),
                          pl.BlockSpec((Cout, 1), lambda kk: (0, 0))],
                out_specs=pl.BlockSpec((Cout, M), lambda kk: (0, 0))),
            compiler_params=pltpu.CompilerParams(
                dimension_semantics=("arbitrary",)),
            cost_estimate=pl.CostEstimate(
                flops=2 * Cout * K * M + 8 * Cout * M,
                transcendentals=Cout,
                bytes_accessed=2 * (K * M + Cout * K) + 4 * Cout * M),
        )(wt, pt, g2, b2)
    return y.reshape(Cout, B, OH, OW)                      # stay channel-major


# ----------------------------- Generator model ------------------------------

def init_generator_params(key, nz, fmd, nc):
    """Deterministic synthetic init.  ConvTranspose2d weight: (Cin, Cout, k, k);
    BatchNorm gamma=1, beta=0 (PyTorch defaults)."""
    keys = jax.random.split(key, 4)

    def w(k_, cin, cout, ksz):
        scale = 1.0 / jnp.sqrt(jnp.float32(cout * ksz * ksz))
        return jax.random.normal(k_, (cin, cout, ksz, ksz), jnp.float32) * scale

    return {
        "w1": w(keys[0], nz, fmd * 8, 8),
        "g1": jnp.ones((fmd * 8,), jnp.float32),
        "b1": jnp.zeros((fmd * 8,), jnp.float32),
        "w2": w(keys[1], fmd * 8, fmd * 4, 6),
        "g2": jnp.ones((fmd * 4,), jnp.float32),
        "b2": jnp.zeros((fmd * 4,), jnp.float32),
        "w3": w(keys[2], fmd * 4, fmd * 2, 4),
        "g3": jnp.ones((fmd * 2,), jnp.float32),
        "b3": jnp.zeros((fmd * 2,), jnp.float32),
        "w4": w(keys[3], fmd * 2, nc, 2),
    }


def generator_forward(params, x):
    # x: NCHW (B, nz, 1, 1).  Carry activations channel-major (C, B, H, W) so
    # every kernel output (Cout, M) is already in the inter-layer layout.
    a = jnp.transpose(x, (1, 0, 2, 3))
    a = _convt_layer(a, params["w1"], 8, 4, 2, params["g1"], params["b1"])
    a = _convt_layer(a, params["w2"], 6, 2, 0, params["g2"], params["b2"])
    a = _convt_layer(a, params["w3"], 4, 2, 0, params["g3"], params["b3"])
    a = _convt_layer(a, params["w4"], 2, 2, 0, final=True)
    return jnp.transpose(a, (1, 0, 2, 3))                  # NCHW at the boundary


# ------------------------- pure-JAX reference (check) ------------------------

def _ref_convt(x, w_t, s, p):
    Cin, Cout, k, _ = w_t.shape
    w_conv = jnp.transpose(w_t[:, :, ::-1, ::-1], (1, 0, 2, 3))  # (Cout, Cin, k, k)
    pad = k - 1 - p
    return lax.conv_general_dilated(
        x, w_conv, window_strides=(1, 1), padding=[(pad, pad), (pad, pad)],
        lhs_dilation=(s, s), dimension_numbers=("NCHW", "OIHW", "NCHW"),
        precision=lax.Precision.HIGHEST)


def _ref_bn_relu(x, g, b):
    mean = jnp.mean(x, axis=(0, 2, 3), keepdims=True)
    var = jnp.mean((x - mean) ** 2, axis=(0, 2, 3), keepdims=True)
    y = (x - mean) * lax.rsqrt(var + BN_EPS)
    y = y * g.reshape(1, -1, 1, 1) + b.reshape(1, -1, 1, 1)
    return jnp.maximum(y, 0.0)


def generator_reference(params, x):
    x = _ref_bn_relu(_ref_convt(x, params["w1"], 4, 2), params["g1"], params["b1"])
    x = _ref_bn_relu(_ref_convt(x, params["w2"], 2, 0), params["g2"], params["b2"])
    x = _ref_bn_relu(_ref_convt(x, params["w3"], 2, 0), params["g3"], params["b3"])
    return jnp.tanh(_ref_convt(x, params["w4"], 2, 0))


# ----------------------------------- main ------------------------------------

if __name__ == "__main__":
    key = jax.random.PRNGKey(0)
    nz, fmd, nc, B = 16, 4, 3, 2            # noise size, feature-map depth, channels
    kp, kx = jax.random.split(key)
    params = init_generator_params(kp, nz, fmd, nc)
    x = jax.random.normal(kx, (B, nz, 1, 1), jnp.float32)  # DCGAN noise: (B, nz, 1, 1)

    out = jax.block_until_ready(jax.jit(generator_forward)(params, x))

    # Spatial progression: 1 -> 4 -> 12 -> 26 -> 52
    assert out.shape == (B, nc, 52, 52), out.shape

    ref = generator_reference(params, x)
    err_max = float(jnp.max(jnp.abs(out - ref)))
    err_rms = float(jnp.sqrt(jnp.mean((out - ref) ** 2)))
    # Tolerances sized for bf16 MXU operands (reference runs f32 HIGHEST).
    assert err_max < 1e-1 and err_rms < 2e-2, (err_max, err_rms)

    print("KERNEL_OK")
</pallas_src>

<mosaic_0001>
module attributes {stable_mosaic.version = 11 : i64} {
  func.func @_convt_bn_relu_kernel(%arg0: i32, %arg1: memref<32x512xbf16, #tpu.memory_space<vmem>>, %arg2: memref<512x32xbf16, #tpu.memory_space<vmem>>, %arg3: memref<32x1xf32, #tpu.memory_space<vmem>>, %arg4: memref<32x1xf32, #tpu.memory_space<vmem>>, %arg5: memref<32x32xf32, #tpu.memory_space<vmem>>) attributes {dimension_semantics = [#tpu.dimension_semantics<arbitrary>], iteration_bounds = array<i64: 2>, scalar_prefetch = 0 : i64, scratch_operands = 0 : i64, tpu.core_type = #tpu.core_type<tc>, window_params = [{transform_indices = @transform_0, window_bounds = array<i64: 32, 512>}, {transform_indices = @transform_1, window_bounds = array<i64: 512, 32>}, {pipeline_mode = #tpu.pipeline_mode<synchronous>, transform_indices = @transform_2, window_bounds = array<i64: 32, 1>}, {pipeline_mode = #tpu.pipeline_mode<synchronous>, transform_indices = @transform_3, window_bounds = array<i64: 32, 1>}, {pipeline_mode = #tpu.pipeline_mode<synchronous>, transform_indices = @transform_4, window_bounds = array<i64: 32, 32>}]} {
    %c0_i32 = arith.constant 0 : i32
    %0 = arith.cmpi eq, %arg0, %c0_i32 : i32
    %1 = arith.extui %0 : i1 to i32
    %c0_i32_0 = arith.constant 0 : i32
    %2 = arith.cmpi ne, %1, %c0_i32_0 : i32
    scf.if %2 {
      %cst_9 = arith.constant 0.000000e+00 : f32
      %12 = vector.broadcast %cst_9 : f32 to vector<32x32xf32>
      %c0_10 = arith.constant 0 : index
      %c0_11 = arith.constant 0 : index
      %13 = vector.load %arg5[%c0_10, %c0_11] : memref<32x32xf32, #tpu.memory_space<vmem>>, vector<32x32xf32>
      tpu.vector_store %arg5[%c0_10, %c0_11], %12 {strides = array<i32>} : memref<32x32xf32, #tpu.memory_space<vmem>>, vector<32x32xf32>,
    } else {
    }
    %c0 = arith.constant 0 : index
    %c0_1 = arith.constant 0 : index
    %3 = vector.load %arg5[%c0, %c0_1] : memref<32x32xf32, #tpu.memory_space<vmem>>, vector<32x32xf32>
    %c0_2 = arith.constant 0 : index
    %c0_3 = arith.constant 0 : index
    %4 = vector.load %arg1[%c0_2, %c0_3] : memref<32x512xbf16, #tpu.memory_space<vmem>>, vector<32x512xbf16>
    %c0_4 = arith.constant 0 : index
    %c0_5 = arith.constant 0 : index
    %5 = vector.load %arg2[%c0_4, %c0_5] : memref<512x32xbf16, #tpu.memory_space<vmem>>, vector<512x32xbf16>
    %cst = arith.constant dense<0.000000e+00> : vector<32x32xf32>
    %6 = tpu.matmul %4, %5, %cst {dimension_numbers = #tpu.dot_dimension_numbers<[1], [0], [0], [1], [0, 0, 1, 1], [], []>} : vector<32x512xbf16>, vector<512x32xbf16>, vector<32x32xf32> -> vector<32x32xf32>
    %7 = arith.addf %3, %6 : vector<32x32xf32>
    %c0_6 = arith.constant 0 : index
    %c0_7 = arith.constant 0 : index
    %8 = vector.load %arg5[%c0_6, %c0_7] : memref<32x32xf32, #tpu.memory_space<vmem>>, vector<32x32xf32>
    tpu.vector_store %arg5[%c0_6, %c0_7], %7 {strides = array<i32>} : memref<32x32xf32, #tpu.memory_space<vmem>>, vector<32x32xf32>,
    %c1_i32 = arith.constant 1 : i32
    %9 = arith.cmpi eq, %arg0, %c1_i32 : i32
    %10 = arith.extui %9 : i1 to i32
    %c0_i32_8 = arith.constant 0 : i32
    %11 = arith.cmpi ne, %10, %c0_i32_8 : i32
    scf.if %11 {
      %c0_9 = arith.constant 0 : index
      %c0_10 = arith.constant 0 : index
      %12 = vector.load %arg5[%c0_9, %c0_10] : memref<32x32xf32, #tpu.memory_space<vmem>>, vector<32x32xf32>
      %cst_11 = arith.constant dense<0.000000e+00> : vector<32xf32>
      %13 = vector.multi_reduction <add>, %12, %cst_11 [1] : vector<32x32xf32> to vector<32xf32>
      %14 = vector.shape_cast %13 : vector<32xf32> to vector<32x1xf32>
      %cst_12 = arith.constant 3.200000e+01 : f32
      %15 = vector.broadcast %cst_12 : f32 to vector<32x1xf32>
      %16 = arith.divf %14, %15 : vector<32x1xf32>
      %17 = arith.mulf %12, %12 : vector<32x32xf32>
      %cst_13 = arith.constant dense<0.000000e+00> : vector<32xf32>
      %18 = vector.multi_reduction <add>, %17, %cst_13 [1] : vector<32x32xf32> to vector<32xf32>
      %19 = vector.shape_cast %18 : vector<32xf32> to vector<32x1xf32>
      %cst_14 = arith.constant 3.200000e+01 : f32
      %20 = vector.broadcast %cst_14 : f32 to vector<32x1xf32>
      %21 = arith.divf %19, %20 : vector<32x1xf32>
      %22 = arith.mulf %16, %16 : vector<32x1xf32>
      %23 = arith.subf %21, %22 : vector<32x1xf32>
      %cst_15 = arith.constant 9.99999974E-6 : f32
      %24 = vector.broadcast %cst_15 : f32 to vector<32x1xf32>
      %25 = arith.addf %23, %24 : vector<32x1xf32>
      %26 = math.rsqrt %25 : vector<32x1xf32>
      %c0_16 = arith.constant 0 : index
      %c0_17 = arith.constant 0 : index
      %27 = vector.load %arg3[%c0_16, %c0_17] : memref<32x1xf32, #tpu.memory_space<vmem>>, vector<32x1xf32>
      %28 = arith.mulf %26, %27 : vector<32x1xf32>
      %29 = vector.broadcast %16 : vector<32x1xf32> to vector<32x32xf32>
      %30 = arith.subf %12, %29 : vector<32x32xf32>
      %31 = vector.broadcast %28 : vector<32x1xf32> to vector<32x32xf32>
      %32 = arith.mulf %30, %31 : vector<32x32xf32>
      %c0_18 = arith.constant 0 : index
      %c0_19 = arith.constant 0 : index
      %33 = vector.load %arg4[%c0_18, %c0_19] : memref<32x1xf32, #tpu.memory_space<vmem>>, vector<32x1xf32>
      %34 = vector.broadcast %33 : vector<32x1xf32> to vector<32x32xf32>
      %35 = arith.addf %32, %34 : vector<32x32xf32>
      %cst_20 = arith.constant 0.000000e+00 : f32
      %36 = vector.broadcast %cst_20 : f32 to vector<32x32xf32>
      %37 = arith.maximumf %35, %36 : vector<32x32xf32>
      %c0_21 = arith.constant 0 : index
      %c0_22 = arith.constant 0 : index
      %38 = vector.load %arg5[%c0_21, %c0_22] : memref<32x32xf32, #tpu.memory_space<vmem>>, vector<32x32xf32>
      tpu.vector_store %arg5[%c0_21, %c0_22], %37 {strides = array<i32>} : memref<32x32xf32, #tpu.memory_space<vmem>>, vector<32x32xf32>,
    } else {
    }
    return
  }
  func.func @transform_0(%arg0: i32) -> (i32, i32) {
    %c0_i32 = arith.constant 0 : i32
    %c0_i32_0 = arith.constant 0 : i32
    return %c0_i32, %arg0 : i32, i32
  }
  func.func @transform_1(%arg0: i32) -> (i32, i32) {
    %c0_i32 = arith.constant 0 : i32
    %c0_i32_0 = arith.constant 0 : i32
    return %arg0, %c0_i32 : i32, i32
  }
  func.func @transform_2(%arg0: i32) -> (i32, i32) {
    %c0_i32 = arith.constant 0 : i32
    %c0_i32_0 = arith.constant 0 : i32
    %c0_i32_1 = arith.constant 0 : i32
    return %c0_i32, %c0_i32_0 : i32, i32
  }
  func.func @transform_3(%arg0: i32) -> (i32, i32) {
    %c0_i32 = arith.constant 0 : i32
    %c0_i32_0 = arith.constant 0 : i32
    %c0_i32_1 = arith.constant 0 : i32
    return %c0_i32, %c0_i32_0 : i32, i32
  }
  func.func @transform_4(%arg0: i32) -> (i32, i32) {
    %c0_i32 = arith.constant 0 : i32
    %c0_i32_0 = arith.constant 0 : i32
    %c0_i32_1 = arith.constant 0 : i32
    return %c0_i32, %c0_i32_0 : i32, i32
  }
}

module attributes {stable_mosaic.version = 11 : i64} {
  func.func @_convt_bn_relu_kernel(%arg0: i32, %arg1: memref<16x384xbf16, #tpu.memory_space<vmem>>, %arg2: memref<384x288xbf16, #tpu.memory_space<vmem>>, %arg3: memref<16x1xf32, #tpu.memory_space<vmem>>, %arg4: memref<16x1xf32, #tpu.memory_space<vmem>>, %arg5: memref<16x288xf32, #tpu.memory_space<vmem>>) attributes {dimension_semantics = [#tpu.dimension_semantics<arbitrary>], iteration_bounds = array<i64: 3>, scalar_prefetch = 0 : i64, scratch_operands = 0 : i64, tpu.core_type = #tpu.core_type<tc>, window_params = [{transform_indices = @transform_0, window_bounds = array<i64: 16, 384>}, {transform_indices = @transform_1, window_bounds = array<i64: 384, 288>}, {pipeline_mode = #tpu.pipeline_mode<synchronous>, transform_indices = @transform_2, window_bounds = array<i64: 16, 1>}, {pipeline_mode = #tpu.pipeline_mode<synchronous>, transform_indices = @transform_3, window_bounds = array<i64: 16, 1>}, {pipeline_mode = #tpu.pipeline_mode<synchronous>, transform_indices = @transform_4, window_bounds = array<i64: 16, 288>}]} {
    %c0_i32 = arith.constant 0 : i32
    %0 = arith.cmpi eq, %arg0, %c0_i32 : i32
    %1 = arith.extui %0 : i1 to i32
    %c0_i32_0 = arith.constant 0 : i32
    %2 = arith.cmpi ne, %1, %c0_i32_0 : i32
    scf.if %2 {
      %cst_9 = arith.constant 0.000000e+00 : f32
      %12 = vector.broadcast %cst_9 : f32 to vector<16x288xf32>
      %c0_10 = arith.constant 0 : index
      %c0_11 = arith.constant 0 : index
      %13 = vector.load %arg5[%c0_10, %c0_11] : memref<16x288xf32, #tpu.memory_space<vmem>>, vector<16x288xf32>
      tpu.vector_store %arg5[%c0_10, %c0_11], %12 {strides = array<i32>} : memref<16x288xf32, #tpu.memory_space<vmem>>, vector<16x288xf32>,
    } else {
    }
    %c0 = arith.constant 0 : index
    %c0_1 = arith.constant 0 : index
    %3 = vector.load %arg5[%c0, %c0_1] : memref<16x288xf32, #tpu.memory_space<vmem>>, vector<16x288xf32>
    %c0_2 = arith.constant 0 : index
    %c0_3 = arith.constant 0 : index
    %4 = vector.load %arg1[%c0_2, %c0_3] : memref<16x384xbf16, #tpu.memory_space<vmem>>, vector<16x384xbf16>
    %c0_4 = arith.constant 0 : index
    %c0_5 = arith.constant 0 : index
    %5 = vector.load %arg2[%c0_4, %c0_5] : memref<384x288xbf16, #tpu.memory_space<vmem>>, vector<384x288xbf16>
    %cst = arith.constant dense<0.000000e+00> : vector<16x288xf32>
    %6 = tpu.matmul %4, %5, %cst {dimension_numbers = #tpu.dot_dimension_numbers<[1], [0], [0], [1], [0, 0, 1, 1], [], []>} : vector<16x384xbf16>, vector<384x288xbf16>, vector<16x288xf32> -> vector<16x288xf32>
    %7 = arith.addf %3, %6 : vector<16x288xf32>
    %c0_6 = arith.constant 0 : index
    %c0_7 = arith.constant 0 : index
    %8 = vector.load %arg5[%c0_6, %c0_7] : memref<16x288xf32, #tpu.memory_space<vmem>>, vector<16x288xf32>
    tpu.vector_store %arg5[%c0_6, %c0_7], %7 {strides = array<i32>} : memref<16x288xf32, #tpu.memory_space<vmem>>, vector<16x288xf32>,
    %c2_i32 = arith.constant 2 : i32
    %9 = arith.cmpi eq, %arg0, %c2_i32 : i32
    %10 = arith.extui %9 : i1 to i32
    %c0_i32_8 = arith.constant 0 : i32
    %11 = arith.cmpi ne, %10, %c0_i32_8 : i32
    scf.if %11 {
      %c0_9 = arith.constant 0 : index
      %c0_10 = arith.constant 0 : index
      %12 = vector.load %arg5[%c0_9, %c0_10] : memref<16x288xf32, #tpu.memory_space<vmem>>, vector<16x288xf32>
      %cst_11 = arith.constant dense<0.000000e+00> : vector<16xf32>
      %13 = vector.multi_reduction <add>, %12, %cst_11 [1] : vector<16x288xf32> to vector<16xf32>
      %14 = vector.shape_cast %13 : vector<16xf32> to vector<16x1xf32>
      %cst_12 = arith.constant 2.880000e+02 : f32
      %15 = vector.broadcast %cst_12 : f32 to vector<16x1xf32>
      %16 = arith.divf %14, %15 : vector<16x1xf32>
      %17 = arith.mulf %12, %12 : vector<16x288xf32>
      %cst_13 = arith.constant dense<0.000000e+00> : vector<16xf32>
      %18 = vector.multi_reduction <add>, %17, %cst_13 [1] : vector<16x288xf32> to vector<16xf32>
      %19 = vector.shape_cast %18 : vector<16xf32> to vector<16x1xf32>
      %cst_14 = arith.constant 2.880000e+02 : f32
      %20 = vector.broadcast %cst_14 : f32 to vector<16x1xf32>
      %21 = arith.divf %19, %20 : vector<16x1xf32>
      %22 = arith.mulf %16, %16 : vector<16x1xf32>
      %23 = arith.subf %21, %22 : vector<16x1xf32>
      %cst_15 = arith.constant 9.99999974E-6 : f32
      %24 = vector.broadcast %cst_15 : f32 to vector<16x1xf32>
      %25 = arith.addf %23, %24 : vector<16x1xf32>
      %26 = math.rsqrt %25 : vector<16x1xf32>
      %c0_16 = arith.constant 0 : index
      %c0_17 = arith.constant 0 : index
      %27 = vector.load %arg3[%c0_16, %c0_17] : memref<16x1xf32, #tpu.memory_space<vmem>>, vector<16x1xf32>
      %28 = arith.mulf %26, %27 : vector<16x1xf32>
      %29 = vector.broadcast %16 : vector<16x1xf32> to vector<16x288xf32>
      %30 = arith.subf %12, %29 : vector<16x288xf32>
      %31 = vector.broadcast %28 : vector<16x1xf32> to vector<16x288xf32>
      %32 = arith.mulf %30, %31 : vector<16x288xf32>
      %c0_18 = arith.constant 0 : index
      %c0_19 = arith.constant 0 : index
      %33 = vector.load %arg4[%c0_18, %c0_19] : memref<16x1xf32, #tpu.memory_space<vmem>>, vector<16x1xf32>
      %34 = vector.broadcast %33 : vector<16x1xf32> to vector<16x288xf32>
      %35 = arith.addf %32, %34 : vector<16x288xf32>
      %cst_20 = arith.constant 0.000000e+00 : f32
      %36 = vector.broadcast %cst_20 : f32 to vector<16x288xf32>
      %37 = arith.maximumf %35, %36 : vector<16x288xf32>
      %c0_21 = arith.constant 0 : index
      %c0_22 = arith.constant 0 : index
      %38 = vector.load %arg5[%c0_21, %c0_22] : memref<16x288xf32, #tpu.memory_space<vmem>>, vector<16x288xf32>
      tpu.vector_store %arg5[%c0_21, %c0_22], %37 {strides = array<i32>} : memref<16x288xf32, #tpu.memory_space<vmem>>, vector<16x288xf32>,
    } else {
    }
    return
  }
  func.func @transform_0(%arg0: i32) -> (i32, i32) {
    %c0_i32 = arith.constant 0 : i32
    %c0_i32_0 = arith.constant 0 : i32
    return %c0_i32, %arg0 : i32, i32
  }
  func.func @transform_1(%arg0: i32) -> (i32, i32) {
    %c0_i32 = arith.constant 0 : i32
    %c0_i32_0 = arith.constant 0 : i32
    return %arg0, %c0_i32 : i32, i32
  }
  func.func @transform_2(%arg0: i32) -> (i32, i32) {
    %c0_i32 = arith.constant 0 : i32
    %c0_i32_0 = arith.constant 0 : i32
    %c0_i32_1 = arith.constant 0 : i32
    return %c0_i32, %c0_i32_0 : i32, i32
  }
  func.func @transform_3(%arg0: i32) -> (i32, i32) {
    %c0_i32 = arith.constant 0 : i32
    %c0_i32_0 = arith.constant 0 : i32
    %c0_i32_1 = arith.constant 0 : i32
    return %c0_i32, %c0_i32_0 : i32, i32
  }
  func.func @transform_4(%arg0: i32) -> (i32, i32) {
    %c0_i32 = arith.constant 0 : i32
    %c0_i32_0 = arith.constant 0 : i32
    %c0_i32_1 = arith.constant 0 : i32
    return %c0_i32, %c0_i32_0 : i32, i32
  }
}

module attributes {stable_mosaic.version = 11 : i64} {
  func.func @_convt_bn_relu_kernel(%arg0: i32, %arg1: memref<8x256xbf16, #tpu.memory_space<vmem>>, %arg2: memref<256x1352xbf16, #tpu.memory_space<vmem>>, %arg3: memref<8x1xf32, #tpu.memory_space<vmem>>, %arg4: memref<8x1xf32, #tpu.memory_space<vmem>>, %arg5: memref<8x1352xf32, #tpu.memory_space<vmem>>) attributes {dimension_semantics = [#tpu.dimension_semantics<arbitrary>], iteration_bounds = array<i64: 1>, scalar_prefetch = 0 : i64, scratch_operands = 0 : i64, tpu.core_type = #tpu.core_type<tc>, window_params = [{transform_indices = @transform_0, window_bounds = array<i64: 8, 256>}, {transform_indices = @transform_1, window_bounds = array<i64: 256, 1352>}, {pipeline_mode = #tpu.pipeline_mode<synchronous>, transform_indices = @transform_2, window_bounds = array<i64: 8, 1>}, {pipeline_mode = #tpu.pipeline_mode<synchronous>, transform_indices = @transform_3, window_bounds = array<i64: 8, 1>}, {pipeline_mode = #tpu.pipeline_mode<synchronous>, transform_indices = @transform_4, window_bounds = array<i64: 8, 1352>}]} {
    %c0_i32 = arith.constant 0 : i32
    %0 = arith.cmpi eq, %arg0, %c0_i32 : i32
    %1 = arith.extui %0 : i1 to i32
    %c0_i32_0 = arith.constant 0 : i32
    %2 = arith.cmpi ne, %1, %c0_i32_0 : i32
    scf.if %2 {
      %cst_10 = arith.constant 0.000000e+00 : f32
      %12 = vector.broadcast %cst_10 : f32 to vector<8x1352xf32>
      %c0_11 = arith.constant 0 : index
      %c0_12 = arith.constant 0 : index
      %13 = vector.load %arg5[%c0_11, %c0_12] : memref<8x1352xf32, #tpu.memory_space<vmem>>, vector<8x1352xf32>
      tpu.vector_store %arg5[%c0_11, %c0_12], %12 {strides = array<i32>} : memref<8x1352xf32, #tpu.memory_space<vmem>>, vector<8x1352xf32>,
    } else {
    }
    %c0 = arith.constant 0 : index
    %c0_1 = arith.constant 0 : index
    %3 = vector.load %arg5[%c0, %c0_1] : memref<8x1352xf32, #tpu.memory_space<vmem>>, vector<8x1352xf32>
    %c0_2 = arith.constant 0 : index
    %c0_3 = arith.constant 0 : index
    %4 = vector.load %arg1[%c0_2, %c0_3] : memref<8x256xbf16, #tpu.memory_space<vmem>>, vector<8x256xbf16>
    %c0_4 = arith.constant 0 : index
    %c0_5 = arith.constant 0 : index
    %5 = vector.load %arg2[%c0_4, %c0_5] : memref<256x1352xbf16, #tpu.memory_space<vmem>>, vector<256x1352xbf16>
    %cst = arith.constant dense<0.000000e+00> : vector<8x1352xf32>
    %6 = tpu.matmul %4, %5, %cst {dimension_numbers = #tpu.dot_dimension_numbers<[1], [0], [0], [1], [0, 0, 1, 1], [], []>} : vector<8x256xbf16>, vector<256x1352xbf16>, vector<8x1352xf32> -> vector<8x1352xf32>
    %7 = arith.addf %3, %6 : vector<8x1352xf32>
    %c0_6 = arith.constant 0 : index
    %c0_7 = arith.constant 0 : index
    %8 = vector.load %arg5[%c0_6, %c0_7] : memref<8x1352xf32, #tpu.memory_space<vmem>>, vector<8x1352xf32>
    tpu.vector_store %arg5[%c0_6, %c0_7], %7 {strides = array<i32>} : memref<8x1352xf32, #tpu.memory_space<vmem>>, vector<8x1352xf32>,
    %c0_i32_8 = arith.constant 0 : i32
    %9 = arith.cmpi eq, %arg0, %c0_i32_8 : i32
    %10 = arith.extui %9 : i1 to i32
    %c0_i32_9 = arith.constant 0 : i32
    %11 = arith.cmpi ne, %10, %c0_i32_9 : i32
    scf.if %11 {
      %c0_10 = arith.constant 0 : index
      %c0_11 = arith.constant 0 : index
      %12 = vector.load %arg5[%c0_10, %c0_11] : memref<8x1352xf32, #tpu.memory_space<vmem>>, vector<8x1352xf32>
      %cst_12 = arith.constant dense<0.000000e+00> : vector<8xf32>
      %13 = vector.multi_reduction <add>, %12, %cst_12 [1] : vector<8x1352xf32> to vector<8xf32>
      %14 = vector.shape_cast %13 : vector<8xf32> to vector<8x1xf32>
      %cst_13 = arith.constant 1.352000e+03 : f32
      %15 = vector.broadcast %cst_13 : f32 to vector<8x1xf32>
      %16 = arith.divf %14, %15 : vector<8x1xf32>
      %17 = arith.mulf %12, %12 : vector<8x1352xf32>
      %cst_14 = arith.constant dense<0.000000e+00> : vector<8xf32>
      %18 = vector.multi_reduction <add>, %17, %cst_14 [1] : vector<8x1352xf32> to vector<8xf32>
      %19 = vector.shape_cast %18 : vector<8xf32> to vector<8x1xf32>
      %cst_15 = arith.constant 1.352000e+03 : f32
      %20 = vector.broadcast %cst_15 : f32 to vector<8x1xf32>
      %21 = arith.divf %19, %20 : vector<8x1xf32>
      %22 = arith.mulf %16, %16 : vector<8x1xf32>
      %23 = arith.subf %21, %22 : vector<8x1xf32>
      %cst_16 = arith.constant 9.99999974E-6 : f32
      %24 = vector.broadcast %cst_16 : f32 to vector<8x1xf32>
      %25 = arith.addf %23, %24 : vector<8x1xf32>
      %26 = math.rsqrt %25 : vector<8x1xf32>
      %c0_17 = arith.constant 0 : index
      %c0_18 = arith.constant 0 : index
      %27 = vector.load %arg3[%c0_17, %c0_18] : memref<8x1xf32, #tpu.memory_space<vmem>>, vector<8x1xf32>
      %28 = arith.mulf %26, %27 : vector<8x1xf32>
      %29 = vector.broadcast %16 : vector<8x1xf32> to vector<8x1352xf32>
      %30 = arith.subf %12, %29 : vector<8x1352xf32>
      %31 = vector.broadcast %28 : vector<8x1xf32> to vector<8x1352xf32>
      %32 = arith.mulf %30, %31 : vector<8x1352xf32>
      %c0_19 = arith.constant 0 : index
      %c0_20 = arith.constant 0 : index
      %33 = vector.load %arg4[%c0_19, %c0_20] : memref<8x1xf32, #tpu.memory_space<vmem>>, vector<8x1xf32>
      %34 = vector.broadcast %33 : vector<8x1xf32> to vector<8x1352xf32>
      %35 = arith.addf %32, %34 : vector<8x1352xf32>
      %cst_21 = arith.constant 0.000000e+00 : f32
      %36 = vector.broadcast %cst_21 : f32 to vector<8x1352xf32>
      %37 = arith.maximumf %35, %36 : vector<8x1352xf32>
      %c0_22 = arith.constant 0 : index
      %c0_23 = arith.constant 0 : index
      %38 = vector.load %arg5[%c0_22, %c0_23] : memref<8x1352xf32, #tpu.memory_space<vmem>>, vector<8x1352xf32>
      tpu.vector_store %arg5[%c0_22, %c0_23], %37 {strides = array<i32>} : memref<8x1352xf32, #tpu.memory_space<vmem>>, vector<8x1352xf32>,
    } else {
    }
    return
  }
  func.func @transform_0(%arg0: i32) -> (i32, i32) {
    %c0_i32 = arith.constant 0 : i32
    %c0_i32_0 = arith.constant 0 : i32
    return %c0_i32, %arg0 : i32, i32
  }
  func.func @transform_1(%arg0: i32) -> (i32, i32) {
    %c0_i32 = arith.constant 0 : i32
    %c0_i32_0 = arith.constant 0 : i32
    return %arg0, %c0_i32 : i32, i32
  }
  func.func @transform_2(%arg0: i32) -> (i32, i32) {
    %c0_i32 = arith.constant 0 : i32
    %c0_i32_0 = arith.constant 0 : i32
    %c0_i32_1 = arith.constant 0 : i32
    return %c0_i32, %c0_i32_0 : i32, i32
  }
  func.func @transform_3(%arg0: i32) -> (i32, i32) {
    %c0_i32 = arith.constant 0 : i32
    %c0_i32_0 = arith.constant 0 : i32
    %c0_i32_1 = arith.constant 0 : i32
    return %c0_i32, %c0_i32_0 : i32, i32
  }
  func.func @transform_4(%arg0: i32) -> (i32, i32) {
    %c0_i32 = arith.constant 0 : i32
    %c0_i32_0 = arith.constant 0 : i32
    %c0_i32_1 = arith.constant 0 : i32
    return %c0_i32, %c0_i32_0 : i32, i32
  }
}

module attributes {stable_mosaic.version = 11 : i64} {
  func.func @_convt_tanh_kernel(%arg0: i32, %arg1: memref<3x32xbf16, #tpu.memory_space<vmem>>, %arg2: memref<32x512xbf16, #tpu.memory_space<vmem>>, %arg3: memref<3x512xf32, #tpu.memory_space<vmem>>) attributes {dimension_semantics = [#tpu.dimension_semantics<parallel>], iteration_bounds = array<i64: 11>, scalar_prefetch = 0 : i64, scratch_operands = 0 : i64, tpu.core_type = #tpu.core_type<tc>, window_params = [{pipeline_mode = #tpu.pipeline_mode<synchronous>, transform_indices = @transform_0, window_bounds = array<i64: 3, 32>}, {transform_indices = @transform_1, window_bounds = array<i64: 32, 512>}, {transform_indices = @transform_2, window_bounds = array<i64: 3, 512>}]} {
    %c0 = arith.constant 0 : index
    %c0_0 = arith.constant 0 : index
    %0 = vector.load %arg1[%c0, %c0_0] : memref<3x32xbf16, #tpu.memory_space<vmem>>, vector<3x32xbf16>
    %c0_1 = arith.constant 0 : index
    %c0_2 = arith.constant 0 : index
    %1 = vector.load %arg2[%c0_1, %c0_2] : memref<32x512xbf16, #tpu.memory_space<vmem>>, vector<32x512xbf16>
    %cst = arith.constant dense<0.000000e+00> : vector<3x512xf32>
    %2 = tpu.matmul %0, %1, %cst {dimension_numbers = #tpu.dot_dimension_numbers<[1], [0], [0], [1], [0, 0, 1, 1], [], []>} : vector<3x32xbf16>, vector<32x512xbf16>, vector<3x512xf32> -> vector<3x512xf32>
    %3 = math.tanh %2 : vector<3x512xf32>
    %c0_3 = arith.constant 0 : index
    %c0_4 = arith.constant 0 : index
    %4 = vector.load %arg3[%c0_3, %c0_4] : memref<3x512xf32, #tpu.memory_space<vmem>>, vector<3x512xf32>
    tpu.vector_store %arg3[%c0_3, %c0_4], %3 {strides = array<i32>} : memref<3x512xf32, #tpu.memory_space<vmem>>, vector<3x512xf32>,
    return
  }
  func.func @transform_0(%arg0: i32) -> (i32, i32) {
    %c0_i32 = arith.constant 0 : i32
    %c0_i32_0 = arith.constant 0 : i32
    %c0_i32_1 = arith.constant 0 : i32
    return %c0_i32, %c0_i32_0 : i32, i32
  }
  func.func @transform_1(%arg0: i32) -> (i32, i32) {
    %c0_i32 = arith.constant 0 : i32
    %c0_i32_0 = arith.constant 0 : i32
    return %c0_i32, %arg0 : i32, i32
  }
  func.func @transform_2(%arg0: i32) -> (i32, i32) {
    %c0_i32 = arith.constant 0 : i32
    %c0_i32_0 = arith.constant 0 : i32
    return %c0_i32, %arg0 : i32, i32
  }
}

</mosaic_0001>

<llo_original>
// kernel: generator_forward.4
$region0: #{generator_forward.4}
  #allocation0 [shape = 'u32[]', space=smem, size = 0x4, offset = 0x4, fixed_abs, tag = 'smem constant byte address 0x4 - core index']
  #allocation1 [shape = 'u32[144,128]{1,0:T(1,128)}', space=vmem, size = 0x12000, scoped, tag = 'internal scratch']
  %s0 = inlined_call_operand.vmem [shape: bf16[32,1024], index: 0, kind: input, shape index: {}]
  %s1 = inlined_call_operand.vmem [shape: bf16[1024,32], index: 1, kind: input, shape index: {}]
  %s2 = inlined_call_operand.vmem [shape: f32[32,1], index: 2, kind: input, shape index: {}]
  %s3 = inlined_call_operand.vmem [shape: f32[32,1], index: 3, kind: input, shape index: {}]
  %s4 = inlined_call_operand.vmem [shape: f32[32,32], index: 4, kind: output, shape index: {}]
  %s5 = sld [smem:[#allocation0]]
  $region80: #{generator_forward.4} parent=0
    _
  %s7 = ssub.s32 1, %s5
  %s8 = scalar_select 0, %s7, %s5
  $region1: #{generator_forward.4} parent=0
    #allocation2 [shape = 'u8[65536]{0}', space=vmem, size = 0x10000, scoped, tag = 'input window, operand 0']
    loop: start=0, step=1, limit=4
    $region2: #{generator_forward.4} parent=1 // loop_pre_header
      _
    $region3: #{generator_forward.4} parent=1 // loop_header
      %s10 = sphi 0, %s14
      %p11 = scmp.ge.s32.totalorder %s10, 4
      %s20 = sphi 0, %s22
      %s23 = sphi 0, %s20
      %s24 = sphi 0, %s23
      %s40 = sphi 0, %s24
      %s46 = sphi 0, %s48
      %s49 = sphi 0, %s46
      %s50 = sphi 0, %s49
      %s66 = sphi 0, %s50
      %s70 = sphi 0, %s70
      %s72 = sphi 0, %s70
      %s73 = sphi 0, %s72
      %s87 = sphi 0, %s73
      %s91 = sphi 0, %s91
      %s93 = sphi 0, %s91
      %s94 = sphi 0, %s93
      %s108 = sphi 0, %s94
      %s112 = sphi 0, %s112
      %s114 = sphi 0, %s112
      %s115 = sphi 0, %s114
      %s129 = sphi 0, %s115
    $region4: #{generator_forward.4} parent=1 // loop_header_branch
      %13 = sbr.rel (%p11) target = $region8
    $region5: #{generator_forward.4} parent=1 // loop_body
      %s15 = ssub.s32 %s10, 1
      %s16 = ssub.s32 %s10, 2
      %s17 = sadd.s32 %s10, 1
      %s18 = ssub.s32 %s10, %s17
      %p19 = scmp.eq.s32.totalorder %s18, 0
      %s21 = sadd.s32 %s20, 1
      %s22 = scalar_select %p19, %s20, %s21
      %p25 = pneg %p19
      %p26 = scmp.eq.s32.totalorder %s10, 1
      %p27 = por %p25, %p26
      %p28 = scmp.ne.s32.totalorder %s20, %s23
      %p29 = scmp.eq.s32.totalorder %s10, 0
      %p30 = por %p28, %p29
      %p31 = scmp.ne.s32.totalorder %s20, %s23
      %p32 = scmp.eq.s32.totalorder %s15, 1
      %p33 = por %p31, %p32
      %p34 = scmp.ne.s32.totalorder %s23, %s24
      %p35 = scmp.eq.s32.totalorder %s15, 0
      %p36 = por %p34, %p35
      %p37 = scmp.ne.s32.totalorder %s23, %s24
      %p38 = scmp.eq.s32.totalorder %s16, 1
      %p39 = por %p37, %p38
      %p41 = scmp.ne.s32.totalorder %s24, %s40
      %p42 = scmp.eq.s32.totalorder %s16, 0
      %p43 = por %p41, %p42
      %s44 = ssub.s32 %s10, %s17
      %p45 = scmp.eq.s32.totalorder %s44, 0
      %s47 = sadd.s32 %s46, 1
      %s48 = scalar_select %p45, %s46, %s47
      %p51 = pneg %p45
      %p52 = scmp.eq.s32.totalorder %s10, 1
      %p53 = por %p51, %p52
      %p54 = scmp.ne.s32.totalorder %s46, %s49
      %p55 = scmp.eq.s32.totalorder %s10, 0
      %p56 = por %p54, %p55
      %p57 = scmp.ne.s32.totalorder %s46, %s49
      %p58 = scmp.eq.s32.totalorder %s15, 1
      %p59 = por %p57, %p58
      %p60 = scmp.ne.s32.totalorder %s49, %s50
      %p61 = scmp.eq.s32.totalorder %s15, 0
      %p62 = por %p60, %p61
      %p63 = scmp.ne.s32.totalorder %s49, %s50
      %p64 = scmp.eq.s32.totalorder %s16, 1
      %p65 = por %p63, %p64
      %p67 = scmp.ne.s32.totalorder %s50, %s66
      %p68 = scmp.eq.s32.totalorder %s16, 0
      %p69 = por %p67, %p68
      %s71 = sadd.s32 %s70, 1
      %p74 = scmp.eq.s32.totalorder %s10, 1
      %p75 = scmp.ne.s32.totalorder %s70, %s72
      %p76 = scmp.eq.s32.totalorder %s10, 0
      %p77 = por %p75, %p76
      %p78 = scmp.ne.s32.totalorder %s70, %s72
      %p79 = scmp.eq.s32.totalorder %s15, 1
      %p80 = por %p78, %p79
      %p81 = scmp.ne.s32.totalorder %s72, %s73
      %p82 = scmp.eq.s32.totalorder %s15, 0
      %p83 = por %p81, %p82
      %p84 = scmp.ne.s32.totalorder %s72, %s73
      %p85 = scmp.eq.s32.totalorder %s16, 1
      %p86 = por %p84, %p85
      %p88 = scmp.ne.s32.totalorder %s73, %s87
      %p89 = scmp.eq.s32.totalorder %s16, 0
      %p90 = por %p88, %p89
      %s92 = sadd.s32 %s91, 1
      %p95 = scmp.eq.s32.totalorder %s10, 1
      %p96 = scmp.ne.s32.totalorder %s91, %s93
      %p97 = scmp.eq.s32.totalorder %s10, 0
      %p98 = por %p96, %p97
      %p99 = scmp.ne.s32.totalorder %s91, %s93
      %p100 = scmp.eq.s32.totalorder %s15, 1
      %p101 = por %p99, %p100
      %p102 = scmp.ne.s32.totalorder %s93, %s94
      %p103 = scmp.eq.s32.totalorder %s15, 0
      %p104 = por %p102, %p103
      %p105 = scmp.ne.s32.totalorder %s93, %s94
      %p106 = scmp.eq.s32.totalorder %s16, 1
      %p107 = por %p105, %p106
      %p109 = scmp.ne.s32.totalorder %s94, %s108
      %p110 = scmp.eq.s32.totalorder %s16, 0
      %p111 = por %p109, %p110
      %s113 = sadd.s32 %s112, 1
      %p116 = scmp.eq.s32.totalorder %s10, 1
      %p117 = scmp.ne.s32.totalorder %s112, %s114
      %p118 = scmp.eq.s32.totalorder %s10, 0
      %p119 = por %p117, %p118
      %p120 = scmp.ne.s32.totalorder %s112, %s114
      %p121 = scmp.eq.s32.totalorder %s15, 1
      %p122 = por %p120, %p121
      %p123 = scmp.ne.s32.totalorder %s114, %s115
      %p124 = scmp.eq.s32.totalorder %s15, 0
      %p125 = por %p123, %p124
      %p126 = scmp.ne.s32.totalorder %s114, %s115
      %p127 = scmp.eq.s32.totalorder %s16, 1
      %p128 = por %p126, %p127
      %p130 = scmp.ne.s32.totalorder %s115, %s129
      %p131 = scmp.eq.s32.totalorder %s16, 0
      %p132 = por %p130, %p131
      %p133 = scmp.le.s32.totalorder 1, %s10
      %p134 = scmp.lt.s32.totalorder %s10, 3
      %p135 = pnand %p133, %p134
      %p136 = pneg %p135
      // Predicated region
      $region9: #{generator_forward.4} parent=5 // pred_check
        _
      $region10: #{generator_forward.4} parent=5 // pred_check_branch
        %138 = sbr.rel (%p135) target = $region12
      $region11: #{generator_forward.4} parent=5 // pred_region
        %s139 = ssub.s32 %s10, 1
        // Predicated region
        $region13: #{generator_forward.4} parent=11 // pred_check
          %p140 = pneg %p83
        $region14: #{generator_forward.4} parent=11 // pred_check_branch
          %142 = sbr.rel (%p140) target = $region16
        $region15: #{generator_forward.4} parent=11 // pred_region
          _
        $region16: #{generator_forward.4} parent=11 // pred_fallthru
          _
        // Predicated region
        $region17: #{generator_forward.4} parent=11 // pred_check
          %p143 = pneg %p104
        $region18: #{generator_forward.4} parent=11 // pred_check_branch
          %145 = sbr.rel (%p143) target = $region20
        $region19: #{generator_forward.4} parent=11 // pred_region
          _
        $region20: #{generator_forward.4} parent=11 // pred_fallthru
          _
      $region12: #{generator_forward.4} parent=5 // pred_fallthru
        _
      %p146 = scmp.lt.s32.totalorder %s10, 2
      // Predicated region
      $region21: #{generator_forward.4} parent=5 // pred_check
        %p147 = pneg %p146
      $region22: #{generator_forward.4} parent=5 // pred_check_branch
        %149 = sbr.rel (%p147) target = $region24
      $region23: #{generator_forward.4} parent=5 // pred_region
        // Predicated region
        $region25: #{generator_forward.4} parent=23 // pred_check
          %p150 = pneg %p30
        $region26: #{generator_forward.4} parent=23 // pred_check_branch
          %152 = sbr.rel (%p150) target = $region28
        $region27: #{generator_forward.4} parent=23 // pred_region
          %s153 = sand.u32 %s20, 1
          %s154 = sand.u32 %s20, 1
          %s155 = smul.addr %s154, 64
          %s156 = scalar_lea.vmem [#allocation2], %s155
          %s157 = smul.u32 4, %s10
          %s158 = smul.addr %s157, 4
          %s159 = scalar_lea.vmem %s0, %s158
          // Predicated region
          $region29: #{generator_forward.4} parent=27 // pred_check
            _
          $region30: #{generator_forward.4} parent=27 // pred_check_branch
            %161 = sbr.rel (0) target = $region32
          $region31: #{generator_forward.4} parent=27 // pred_region
            // Predicated region
            $region33: #{generator_forward.4} parent=31 // pred_check
              _
            $region34: #{generator_forward.4} parent=31 // pred_check_branch
              %163 = sbr.rel (0) target = $region36
            $region35: #{generator_forward.4} parent=31 // pred_region
              loop: start=0, step=1, limit=1
              $region37: #{generator_forward.4} parent=35 // loop_pre_header
                _
              $region38: #{generator_forward.4} parent=35 // loop_header
                %s165 = sphi 0, %s169
                %p166 = scmp.ge.s32.totalorder %s165, 1
                %s170 = sphi %s159, %s159
                %s171 = sphi %s156, %s156
              $region39: #{generator_forward.4} parent=35 // loop_header_branch
                %168 = sbr.rel (%p166) target = $region43
              $region40: #{generator_forward.4} parent=35 // loop_body
                %v172 = vld [vmem:[%s170] sm:$0xff]
                %173 = vst [vmem:[%s171] sm:$0xff] %v172
                %v174 = vld [vmem:[%s170 + $0x8] sm:$0xff]
                %175 = vst [vmem:[%s171 + $0x8] sm:$0xff] %v174
                %v176 = vld [vmem:[%s170 + $0x20] sm:$0xff]
                %177 = vst [vmem:[%s171 + $0x10] sm:$0xff] %v176
                %v178 = vld [vmem:[%s170 + $0x28] sm:$0xff]
                %179 = vst [vmem:[%s171 + $0x18] sm:$0xff] %v178
                %v180 = vld [vmem:[%s170 + $0x40] sm:$0xff]
                %181 = vst [vmem:[%s171 + $0x20] sm:$0xff] %v180
                %v182 = vld [vmem:[%s170 + $0x48] sm:$0xff]
                %183 = vst [vmem:[%s171 + $0x28] sm:$0xff] %v182
                %v184 = vld [vmem:[%s170 + $0x60] sm:$0xff]
                %185 = vst [vmem:[%s171 + $0x30] sm:$0xff] %v184
                %v186 = vld [vmem:[%s170 + $0x68] sm:$0xff]
                %187 = vst [vmem:[%s171 + $0x38] sm:$0xff] %v186
              $region41: #{generator_forward.4} parent=35 // loop_footer
                %s169 = sadd.s32 1, %s165
              $region42: #{generator_forward.4} parent=35 // loop_footer_branch
                %164 = sbr.rel target = $region38
              $region43: #{generator_forward.4} parent=35 // loop_exit
                _
            $region36: #{generator_forward.4} parent=31 // pred_fallthru
              _
            // Predicated region
            $region44: #{generator_forward.4} parent=31 // pred_check
              _
            $region45: #{generator_forward.4} parent=31 // pred_check_branch
              %189 = sbr.rel target = $region47
            $region46: #{generator_forward.4} parent=31 // pred_region
              _
            $region47: #{generator_forward.4} parent=31 // pred_fallthru
              _
          $region32: #{generator_forward.4} parent=27 // pred_fallthru
            _
          %190 = vnop
        $region28: #{generator_forward.4} parent=23 // pred_fallthru
          _
        // Predicated region
        $region48: #{generator_forward.4} parent=23 // pred_check
          %p191 = pneg %p56
        $region49: #{generator_forward.4} parent=23 // pred_check_branch
          %193 = sbr.rel (%p191) target = $region51
        $region50: #{generator_forward.4} parent=23 // pred_region
          %s194 = smul.u32 64, %s10
          %p195 = scmp.lt.s32.totalorder %s194, 127
          %s196 = scalar_select %p195, %s194, 127
          %s197 = smul.addr %s196, 4
          %s198 = scalar_lea.vmem %s1, %s197
          %s199 = smul.u32 64, %s10
        $region51: #{generator_forward.4} parent=23 // pred_fallthru
          _
      $region24: #{generator_forward.4} parent=5 // pred_fallthru
        _
      %p200 = scmp.le.s32.totalorder 1, %s10
      %p201 = scmp.lt.s32.totalorder %s10, 3
      %p202 = pnand %p200, %p201
      %p203 = pneg %p202
      // Predicated region
      $region52: #{generator_forward.4} parent=5 // pred_check
        _
      $region53: #{generator_forward.4} parent=5 // pred_check_branch
        %205 = sbr.rel (%p202) target = $region55
      $region54: #{generator_forward.4} parent=5 // pred_region
        %s206 = ssub.s32 %s10, 1
        %s207 = sand.u32 %s23, 1
        %s208 = sand.u32 %s23, 1
        %s209 = smul.addr %s208, 64
        %s210 = scalar_lea.vmem [#allocation2], %s209
        // Predicated region
        $region56: #{generator_forward.4} parent=54 // pred_check
          %p211 = pneg %p36
        $region57: #{generator_forward.4} parent=54 // pred_check_branch
          %213 = sbr.rel (%p211) target = $region59
        $region58: #{generator_forward.4} parent=54 // pred_region
          _
        $region59: #{generator_forward.4} parent=54 // pred_fallthru
          _
        %s214 = sand.u32 %s23, 1
        %s215 = sand.u32 %s23, 1
        %s216 = smul.addr %s215, 64
        %s217 = scalar_lea.vmem [#allocation2], %s216
        %p218 = pneg %p36
        %p219 = pneg %p33
        %s220 = smul.u32 64, %s15
        %p221 = scmp.lt.s32.totalorder %s220, 127
        %s222 = scalar_select %p221, %s220, 127
        %s223 = smul.addr %s222, 4
        %s224 = scalar_lea.vmem %s1, %s223
        %p225 = pneg %p62
        %p226 = pneg %p59
        %p227 = pneg %p83
        %p228 = pneg %p80
        %p229 = pneg %p104
        %p230 = pneg %p101
        %p231 = pneg %p125
        %p232 = pneg %p122
        %s233 = smul.u32 4, %s15
        %s234 = smul.u32 64, %s15
        %p235 = scmp.lt.s32.totalorder %s234, 127
        %s236 = scalar_select %p235, %s234, 127
        %s237 = smul.addr %s236, 4
        %s238 = scalar_lea.vmem %s1, %s237
        %s239 = smul.u32 64, %s15
        %p241 = scmp.eq.s32.totalorder %s15, 0
        // Predicated region
        $region60: #{generator_forward.4} parent=54 // pred_check
          %p242 = pneg %p241
        $region61: #{generator_forward.4} parent=54 // pred_check_branch
          %244 = sbr.rel (%p242) target = $region63
        $region62: #{generator_forward.4} parent=54 // pred_region
          %vm245 = vcmask 261120
          %246 = vst.msk [vmem:[%s4] sm:$0xff] %vm245, 0.0
          %247 = vst.msk [vmem:[%s4 + $0x8] sm:$0xff] %vm245, 0.0
          %248 = vst.msk [vmem:[%s4 + $0x10] sm:$0xff] %vm245, 0.0
          %249 = vst.msk [vmem:[%s4 + $0x18] sm:$0xff] %vm245, 0.0
        $region63: #{generator_forward.4} parent=54 // pred_fallthru
          _
        %v250 = vld [vmem:[%s4] sm:$0xff]
        %v251 = vld [vmem:[%s4 + $0x8] sm:$0xff]
        %v252 = vld [vmem:[%s4 + $0x10] sm:$0xff]
        %v253 = vld [vmem:[%s4 + $0x18] sm:$0xff]
        %v254 = vld [vmem:[%s210] sm:$0xff]
        %v255 = vld [vmem:[%s210 + $0x8] sm:$0xff]
        %v256 = vld [vmem:[%s210 + $0x10] sm:$0xff]
        %v257 = vld [vmem:[%s210 + $0x18] sm:$0xff]
        %v258 = vld [vmem:[%s210 + $0x20] sm:$0xff]
        %v259 = vld [vmem:[%s210 + $0x28] sm:$0xff]
        %v260 = vld [vmem:[%s210 + $0x30] sm:$0xff]
        %v261 = vld [vmem:[%s210 + $0x38] sm:$0xff]
        %v262 = vld [vmem:[%s238] sm:$0xf]
        %v263 = vld [vmem:[%s238 + $0x4] sm:$0xf]
        %v264 = vld [vmem:[%s238 + $0x8] sm:$0xf]
        %v265 = vld [vmem:[%s238 + $0xc] sm:$0xf]
        %v266 = vld [vmem:[%s238 + $0x10] sm:$0xf]
        %v267 = vld [vmem:[%s238 + $0x14] sm:$0xf]
        %v268 = vld [vmem:[%s238 + $0x18] sm:$0xf]
        %v269 = vld [vmem:[%s238 + $0x1c] sm:$0xf]
        %v270 = vld [vmem:[%s238 + $0x20] sm:$0xf]
        %v271 = vld [vmem:[%s238 + $0x24] sm:$0xf]
        %v272 = vld [vmem:[%s238 + $0x28] sm:$0xf]
        %v273 = vld [vmem:[%s238 + $0x2c] sm:$0xf]
        %v274 = vld [vmem:[%s238 + $0x30] sm:$0xf]
        %v275 = vld [vmem:[%s238 + $0x34] sm:$0xf]
        %v276 = vld [vmem:[%s238 + $0x38] sm:$0xf]
        %v277 = vld [vmem:[%s238 + $0x3c] sm:$0xf]
        %v278 = vld [vmem:[%s238 + $0x40] sm:$0xf]
        %v279 = vld [vmem:[%s238 + $0x44] sm:$0xf]
        %v280 = vld [vmem:[%s238 + $0x48] sm:$0xf]
        %v281 = vld [vmem:[%s238 + $0x4c] sm:$0xf]
        %v282 = vld [vmem:[%s238 + $0x50] sm:$0xf]
        %v283 = vld [vmem:[%s238 + $0x54] sm:$0xf]
        %v284 = vld [vmem:[%s238 + $0x58] sm:$0xf]
        %v285 = vld [vmem:[%s238 + $0x5c] sm:$0xf]
        %v286 = vld [vmem:[%s238 + $0x60] sm:$0xf]
        %v287 = vld [vmem:[%s238 + $0x64] sm:$0xf]
        %v288 = vld [vmem:[%s238 + $0x68] sm:$0xf]
        %v289 = vld [vmem:[%s238 + $0x6c] sm:$0xf]
        %v290 = vld [vmem:[%s238 + $0x70] sm:$0xf]
        %v291 = vld [vmem:[%s238 + $0x74] sm:$0xf]
        %v292 = vld [vmem:[%s238 + $0x78] sm:$0xf]
        %v293 = vld [vmem:[%s238 + $0x7c] sm:$0xf]
        %v294 = vld [vmem:[%s238 + $0x80] sm:$0xf]
        %v295 = vld [vmem:[%s238 + $0x84] sm:$0xf]
        %v296 = vld [vmem:[%s238 + $0x88] sm:$0xf]
        %v297 = vld [vmem:[%s238 + $0x8c] sm:$0xf]
        %v298 = vld [vmem:[%s238 + $0x90] sm:$0xf]
        %v299 = vld [vmem:[%s238 + $0x94] sm:$0xf]
        %v300 = vld [vmem:[%s238 + $0x98] sm:$0xf]
        %v301 = vld [vmem:[%s238 + $0x9c] sm:$0xf]
        %v302 = vld [vmem:[%s238 + $0xa0] sm:$0xf]
        %v303 = vld [vmem:[%s238 + $0xa4] sm:$0xf]
        %v304 = vld [vmem:[%s238 + $0xa8] sm:$0xf]
        %v305 = vld [vmem:[%s238 + $0xac] sm:$0xf]
        %v306 = vld [vmem:[%s238 + $0xb0] sm:$0xf]
        %v307 = vld [vmem:[%s238 + $0xb4] sm:$0xf]
        %v308 = vld [vmem:[%s238 + $0xb8] sm:$0xf]
        %v309 = vld [vmem:[%s238 + $0xbc] sm:$0xf]
        %v310 = vld [vmem:[%s238 + $0xc0] sm:$0xf]
        %v311 = vld [vmem:[%s238 + $0xc4] sm:$0xf]
        %v312 = vld [vmem:[%s238 + $0xc8] sm:$0xf]
        %v313 = vld [vmem:[%s238 + $0xcc] sm:$0xf]
        %v314 = vld [vmem:[%s238 + $0xd0] sm:$0xf]
        %v315 = vld [vmem:[%s238 + $0xd4] sm:$0xf]
        %v316 = vld [vmem:[%s238 + $0xd8] sm:$0xf]
        %v317 = vld [vmem:[%s238 + $0xdc] sm:$0xf]
        %v318 = vld [vmem:[%s238 + $0xe0] sm:$0xf]
        %v319 = vld [vmem:[%s238 + $0xe4] sm:$0xf]
        %v320 = vld [vmem:[%s238 + $0xe8] sm:$0xf]
        %v321 = vld [vmem:[%s238 + $0xec] sm:$0xf]
        %v322 = vld [vmem:[%s238 + $0xf0] sm:$0xf]
        %v323 = vld [vmem:[%s238 + $0xf4] sm:$0xf]
        %v324 = vld [vmem:[%s238 + $0xf8] sm:$0xf]
        %v325 = vld [vmem:[%s238 + $0xfc] sm:$0xf]
        %v334 = vunpack.c.l.b16 %v254
        %v335 = vunpack.c.h.b16 %v254
        %v336 = vunpack.c.l.b16 %v255
        %v337 = vunpack.c.h.b16 %v255
        %v338 = vunpack.c.l.b16 %v256
        %v339 = vunpack.c.h.b16 %v256
        %v340 = vunpack.c.l.b16 %v257
        %v341 = vunpack.c.h.b16 %v257
        %v342 = vunpack.c.l.b16 %v258
        %v343 = vunpack.c.h.b16 %v258
        %v344 = vunpack.c.l.b16 %v259
        %v345 = vunpack.c.h.b16 %v259
        %v346 = vunpack.c.l.b16 %v260
        %v347 = vunpack.c.h.b16 %v260
        %v348 = vunpack.c.l.b16 %v261
        %v349 = vunpack.c.h.b16 %v261
        %v350 = vpack.c.b16 %v338, %v334
        %v351 = vpack.c.b16 %v339, %v335
        %v352 = vpack.c.b16 %v340, %v336
        %v353 = vpack.c.b16 %v341, %v337
        %v354 = vpack.c.b16 %v346, %v342
        %v355 = vpack.c.b16 %v347, %v343
        %v356 = vpack.c.b16 %v348, %v344
        %v357 = vpack.c.b16 %v349, %v345
        %v430 = vunpack.c.l.b16 %v262
        %v431 = vunpack.c.l.b16 %v263
        %v432 = vunpack.c.l.b16 %v264
        %v433 = vunpack.c.l.b16 %v265
        %v434 = vunpack.c.l.b16 %v266
        %v435 = vunpack.c.l.b16 %v267
        %v436 = vunpack.c.l.b16 %v268
        %v437 = vunpack.c.l.b16 %v269
        %v438 = vunpack.c.l.b16 %v270
        %v439 = vunpack.c.l.b16 %v271
        %v440 = vunpack.c.l.b16 %v272
        %v441 = vunpack.c.l.b16 %v273
        %v442 = vunpack.c.l.b16 %v274
        %v443 = vunpack.c.l.b16 %v275
        %v444 = vunpack.c.l.b16 %v276
        %v445 = vunpack.c.l.b16 %v277
        %v446 = vunpack.c.l.b16 %v278
        %v447 = vunpack.c.l.b16 %v279
        %v448 = vunpack.c.l.b16 %v280
        %v449 = vunpack.c.l.b16 %v281
        %v450 = vunpack.c.l.b16 %v282
        %v451 = vunpack.c.l.b16 %v283
        %v452 = vunpack.c.l.b16 %v284
        %v453 = vunpack.c.l.b16 %v285
        %v454 = vunpack.c.l.b16 %v286
        %v455 = vunpack.c.l.b16 %v287
        %v456 = vunpack.c.l.b16 %v288
        %v457 = vunpack.c.l.b16 %v289
        %v458 = vunpack.c.l.b16 %v290
        %v459 = vunpack.c.l.b16 %v291
        %v460 = vunpack.c.l.b16 %v292
        %v461 = vunpack.c.l.b16 %v293
        %v462 = vunpack.c.l.b16 %v294
        %v463 = vunpack.c.l.b16 %v295
        %v464 = vunpack.c.l.b16 %v296
        %v465 = vunpack.c.l.b16 %v297
        %v466 = vunpack.c.l.b16 %v298
        %v467 = vunpack.c.l.b16 %v299
        %v468 = vunpack.c.l.b16 %v300
        %v469 = vunpack.c.l.b16 %v301
        %v470 = vunpack.c.l.b16 %v302
        %v471 = vunpack.c.l.b16 %v303
        %v472 = vunpack.c.l.b16 %v304
        %v473 = vunpack.c.l.b16 %v305
        %v474 = vunpack.c.l.b16 %v306
        %v475 = vunpack.c.l.b16 %v307
        %v476 = vunpack.c.l.b16 %v308
        %v477 = vunpack.c.l.b16 %v309
        %v478 = vunpack.c.l.b16 %v310
        %v479 = vunpack.c.l.b16 %v311
        %v480 = vunpack.c.l.b16 %v312
        %v481 = vunpack.c.l.b16 %v313
        %v482 = vunpack.c.l.b16 %v314
        %v483 = vunpack.c.l.b16 %v315
        %v484 = vunpack.c.l.b16 %v316
        %v485 = vunpack.c.l.b16 %v317
        %v486 = vunpack.c.l.b16 %v318
        %v487 = vunpack.c.l.b16 %v319
        %v488 = vunpack.c.l.b16 %v320
        %v489 = vunpack.c.l.b16 %v321
        %v490 = vunpack.c.l.b16 %v322
        %v491 = vunpack.c.l.b16 %v323
        %v492 = vunpack.c.l.b16 %v324
        %v493 = vunpack.c.l.b16 %v325
        %v494 = vpack.c.b16 %v431, %v430
        %v495 = vpack.c.b16 %v433, %v432
        %v496 = vpack.c.b16 %v435, %v434
        %v497 = vpack.c.b16 %v437, %v436
        %v498 = vpack.c.b16 %v439, %v438
        %v499 = vpack.c.b16 %v441, %v440
        %v500 = vpack.c.b16 %v443, %v442
        %v501 = vpack.c.b16 %v445, %v444
        %v502 = vpack.c.b16 %v447, %v446
        %v503 = vpack.c.b16 %v449, %v448
        %v504 = vpack.c.b16 %v451, %v450
        %v505 = vpack.c.b16 %v453, %v452
        %v506 = vpack.c.b16 %v455, %v454
        %v507 = vpack.c.b16 %v457, %v456
        %v508 = vpack.c.b16 %v459, %v458
        %v509 = vpack.c.b16 %v461, %v460
        %v510 = vpack.c.b16 %v463, %v462
        %v511 = vpack.c.b16 %v465, %v464
        %v512 = vpack.c.b16 %v467, %v466
        %v513 = vpack.c.b16 %v469, %v468
        %v514 = vpack.c.b16 %v471, %v470
        %v515 = vpack.c.b16 %v473, %v472
        %v516 = vpack.c.b16 %v475, %v474
        %v517 = vpack.c.b16 %v477, %v476
        %v518 = vpack.c.b16 %v479, %v478
        %v519 = vpack.c.b16 %v481, %v480
        %v520 = vpack.c.b16 %v483, %v482
        %v521 = vpack.c.b16 %v485, %v484
        %v522 = vpack.c.b16 %v487, %v486
        %v523 = vpack.c.b16 %v489, %v488
        %v524 = vpack.c.b16 %v491, %v490
        %v525 = vpack.c.b16 %v493, %v492
        %558 = vmatprep.subr.bf16.mxu0 0
        %559 = vmatpush1.bf16.msra.mxu0 %v494
        %560 = vmatprep.subr.bf16.mxu0 0
        %561 = vmatpush1.bf16.msra.mxu0 %v495
        %562 = vmatprep.subr.bf16.mxu0 0
        %563 = vmatpush1.bf16.msra.mxu0 %v496
        %564 = vmatprep.subr.bf16.mxu0 0
        %565 = vmatpush1.bf16.msra.mxu0 %v497
        %566 = vmatprep.subr.bf16.mxu0 0
        %567 = vmatpush1.bf16.msra.mxu0 %v498
        %568 = vmatprep.subr.bf16.mxu0 0
        %569 = vmatpush1.bf16.msra.mxu0 %v499
        %570 = vmatprep.subr.bf16.mxu0 0
        %571 = vmatpush1.bf16.msra.mxu0 %v500
        %572 = vmatprep.subr.bf16.mxu0 0
        %573 = vmatpush1.bf16.msra.mxu0 %v501
        %574 = vmatprep.subr.bf16.mxu0 0
        %575 = vmatpush1.bf16.msra.mxu0 %v502
        %576 = vmatprep.subr.bf16.mxu0 0
        %577 = vmatpush1.bf16.msra.mxu0 %v503
        %578 = vmatprep.subr.bf16.mxu0 0
        %579 = vmatpush1.bf16.msra.mxu0 %v504
        %580 = vmatprep.subr.bf16.mxu0 0
        %581 = vmatpush1.bf16.msra.mxu0 %v505
        %582 = vmatprep.subr.bf16.mxu0 0
        %583 = vmatpush1.bf16.msra.mxu0 %v506
        %584 = vmatprep.subr.bf16.mxu0 0
        %585 = vmatpush1.bf16.msra.mxu0 %v507
        %586 = vmatprep.subr.bf16.mxu0 0
        %587 = vmatpush1.bf16.msra.mxu0 %v508
        %588 = vmatprep.subr.bf16.mxu0 0
        %589 = vmatpush1.bf16.msra.mxu0 %v509
        %590 = vmatprep.mubr.bf16.mxu0 %v351
        %591 = vmatmul.mubr.bf16.gmra.mrb[0].mxu0 %v350
        %v592 = vpop.f32.mrb[0].mxu0
        %v593 = vadd.f32 0.0, %v592
        %v594 = vpop.f32.mrb[0].mxu0
        %v595 = vpop.f32.mrb[0].mxu0
        %v596 = vadd.f32 0.0, %v595
        %v597 = vpop.f32.mrb[0].mxu0
        %598 = vmatprep.mubr.bf16.mxu0 %v355
        %599 = vmatmul.mubr.bf16.gmra.mrb[0].mxu0 %v354
        %v600 = vpop.f32.mrb[0].mxu0
        %v601 = vadd.f32 0.0, %v600
        %v602 = vpop.f32.mrb[0].mxu0
        %v603 = vpop.f32.mrb[0].mxu0
        %v604 = vadd.f32 0.0, %v603
        %v605 = vpop.f32.mrb[0].mxu0
        %606 = vdwg.mxu0
        %607 = vmatprep.subr.bf16.mxu0 0
        %608 = vmatpush1.bf16.msra.mxu0 %v510
        %609 = vmatprep.subr.bf16.mxu0 0
        %610 = vmatpush1.bf16.msra.mxu0 %v511
        %611 = vmatprep.subr.bf16.mxu0 0
        %612 = vmatpush1.bf16.msra.mxu0 %v512
        %613 = vmatprep.subr.bf16.mxu0 0
        %614 = vmatpush1.bf16.msra.mxu0 %v513
        %615 = vmatprep.subr.bf16.mxu0 0
        %616 = vmatpush1.bf16.msra.mxu0 %v514
        %617 = vmatprep.subr.bf16.mxu0 0
        %618 = vmatpush1.bf16.msra.mxu0 %v515
        %619 = vmatprep.subr.bf16.mxu0 0
        %620 = vmatpush1.bf16.msra.mxu0 %v516
        %621 = vmatprep.subr.bf16.mxu0 0
        %622 = vmatpush1.bf16.msra.mxu0 %v517
        %623 = vmatprep.subr.bf16.mxu0 0
        %624 = vmatpush1.bf16.msra.mxu0 %v518
        %625 = vmatprep.subr.bf16.mxu0 0
        %626 = vmatpush1.bf16.msra.mxu0 %v519
        %627 = vmatprep.subr.bf16.mxu0 0
        %628 = vmatpush1.bf16.msra.mxu0 %v520
        %629 = vmatprep.subr.bf16.mxu0 0
        %630 = vmatpush1.bf16.msra.mxu0 %v521
        %631 = vmatprep.subr.bf16.mxu0 0
        %632 = vmatpush1.bf16.msra.mxu0 %v522
        %633 = vmatprep.subr.bf16.mxu0 0
        %634 = vmatpush1.bf16.msra.mxu0 %v523
        %635 = vmatprep.subr.bf16.mxu0 0
        %636 = vmatpush1.bf16.msra.mxu0 %v524
        %637 = vmatprep.subr.bf16.mxu0 0
        %638 = vmatpush1.bf16.msra.mxu0 %v525
        %639 = vmatprep.mubr.bf16.mxu0 %v353
        %640 = vmatmul.mubr.bf16.gmra.mrb[0].mxu0 %v352
        %v641 = vpop.f32.mrb[0].mxu0
        %v642 = vadd.f32 %v593, %v641
        %v643 = vpop.f32.mrb[0].mxu0
        %v644 = vpop.f32.mrb[0].mxu0
        %v645 = vadd.f32 %v596, %v644
        %v646 = vpop.f32.mrb[0].mxu0
        %647 = vmatprep.mubr.bf16.mxu0 %v357
        %648 = vmatmul.mubr.bf16.gmra.mrb[0].mxu0 %v356
        %v649 = vpop.f32.mrb[0].mxu0
        %v650 = vadd.f32 %v601, %v649
        %v651 = vpop.f32.mrb[0].mxu0
        %v652 = vpop.f32.mrb[0].mxu0
        %v653 = vadd.f32 %v604, %v652
        %v654 = vpop.f32.mrb[0].mxu0
        %655 = vdwg.mxu0
        %v656 = vadd.f32 %v250, %v642
        %v657 = vadd.f32 %v251, %v645
        %v658 = vadd.f32 %v252, %v650
        %v659 = vadd.f32 %v253, %v653
        %vm660 = vcmask 261120
        %661 = vst.msk [vmem:[%s4] sm:$0xff] %vm660, %v656
        %662 = vst.msk [vmem:[%s4 + $0x8] sm:$0xff] %vm660, %v657
        %663 = vst.msk [vmem:[%s4 + $0x10] sm:$0xff] %vm660, %v658
        %664 = vst.msk [vmem:[%s4 + $0x18] sm:$0xff] %vm660, %v659
        %p665 = scmp.eq.s32.totalorder %s15, 1
        // Predicated region
        $region64: #{generator_forward.4} parent=54 // pred_check
          %p666 = pneg %p665
        $region65: #{generator_forward.4} parent=54 // pred_check_branch
          %668 = sbr.rel (%p666) target = $region67
        $region66: #{generator_forward.4} parent=54 // pred_region
          %v669 = vld [vmem:[%s4] sm:$0xff]
          %v670 = vld [vmem:[%s4 + $0x8] sm:$0xff]
          %v671 = vld [vmem:[%s4 + $0x10] sm:$0xff]
          %v672 = vld [vmem:[%s4 + $0x18] sm:$0xff]
          %v673 = vsel %vm660, %v669, 0.0
          %674 = vadd.xlane.f32.xlu0 %v673
          %v675 = vpop.xlane.xlu0 %674
          %v676 = vsel %vm660, %v670, 0.0
          %677 = vadd.xlane.f32.xlu0 %v676
          %v678 = vpop.xlane.xlu0 %677
          %v679 = vsel %vm660, %v671, 0.0
          %680 = vadd.xlane.f32.xlu0 %v679
          %v681 = vpop.xlane.xlu0 %680
          %v682 = vsel %vm660, %v672, 0.0
          %683 = vadd.xlane.f32.xlu0 %v682
          %v684 = vpop.xlane.xlu0 %683
          %v685 = vrcp.pop 32.0
          %v686 = vmul.f32 %v675, %v685
          %v687 = vmul.f32 %v678, %v685
          %v688 = vmul.f32 %v681, %v685
          %v689 = vmul.f32 %v684, %v685
          %v690 = vmul.f32 %v669, %v669
          %v691 = vmul.f32 %v670, %v670
          %v692 = vmul.f32 %v671, %v671
          %v693 = vmul.f32 %v672, %v672
          %v694 = vsel %vm660, %v690, 0.0
          %695 = vadd.xlane.f32.xlu0 %v694
          %v696 = vpop.xlane.xlu0 %695
          %v697 = vsel %vm660, %v691, 0.0
          %698 = vadd.xlane.f32.xlu0 %v697
          %v699 = vpop.xlane.xlu0 %698
          %v700 = vsel %vm660, %v692, 0.0
          %701 = vadd.xlane.f32.xlu0 %v700
          %v702 = vpop.xlane.xlu0 %701
          %v703 = vsel %vm660, %v693, 0.0
          %704 = vadd.xlane.f32.xlu0 %v703
          %v705 = vpop.xlane.xlu0 %704
          %v706 = vmul.f32 %v696, %v685
          %v707 = vmul.f32 %v699, %v685
          %v708 = vmul.f32 %v702, %v685
          %v709 = vmul.f32 %v705, %v685
          %v710 = vmul.f32 %v686, %v686
          %v711 = vmul.f32 %v687, %v687
          %v712 = vmul.f32 %v688, %v688
          %v713 = vmul.f32 %v689, %v689
          %v714 = vsub.f32 %v706, %v710
          %v715 = vsub.f32 %v707, %v711
          %v716 = vsub.f32 %v708, %v712
          %v717 = vsub.f32 %v709, %v713
          %v718 = vadd.f32 %v714, 1e-05
          %v719 = vadd.f32 %v715, 1e-05
          %v720 = vadd.f32 %v716, 1e-05
          %v721 = vadd.f32 %v717, 1e-05
          %v722 = vrsqrt.pop %v718
          %v723 = vrsqrt.pop %v719
          %v724 = vrsqrt.pop %v720
          %v725 = vrsqrt.pop %v721
          %v726 = vld [vmem:[%s2] sm:$0xff]
          %v727 = vld [vmem:[%s2 + $0x8] sm:$0xff]
          %v728 = vld [vmem:[%s2 + $0x10] sm:$0xff]
          %v729 = vld [vmem:[%s2 + $0x18] sm:$0xff]
          %v730 = vmul.f32 %v722, %v726
          %v731 = vmul.f32 %v723, %v727
          %v732 = vmul.f32 %v724, %v728
          %v733 = vmul.f32 %v725, %v729
          %v734 = vsub.f32 %v669, %v686
          %v735 = vsub.f32 %v670, %v687
          %v736 = vsub.f32 %v671, %v688
          %v737 = vsub.f32 %v672, %v689
          %739 = vset.pattern.permute.xlu0 0
          %740 = vperm.xlu0 %739, %v730
          %v741 = vpop.permute.xlu0 %740
          %744 = vset.pattern.permute.xlu0 0
          %745 = vperm.xlu0 %744, %v731
          %v746 = vpop.permute.xlu0 %745
          %749 = vset.pattern.permute.xlu0 0
          %750 = vperm.xlu0 %749, %v732
          %v751 = vpop.permute.xlu0 %750
          %754 = vset.pattern.permute.xlu0 0
          %755 = vperm.xlu0 %754, %v733
          %v756 = vpop.permute.xlu0 %755
          %v758 = vmul.f32 %v734, %v741
          %v759 = vmul.f32 %v735, %v746
          %v760 = vmul.f32 %v736, %v751
          %v761 = vmul.f32 %v737, %v756
          %v762 = vld [vmem:[%s3] sm:$0xff]
          %v763 = vld [vmem:[%s3 + $0x8] sm:$0xff]
          %v764 = vld [vmem:[%s3 + $0x10] sm:$0xff]
          %v765 = vld [vmem:[%s3 + $0x18] sm:$0xff]
          %767 = vset.pattern.permute.xlu0 0
          %768 = vperm.xlu0 %767, %v762
          %v769 = vpop.permute.xlu0 %768
          %772 = vset.pattern.permute.xlu0 0
          %773 = vperm.xlu0 %772, %v763
          %v774 = vpop.permute.xlu0 %773
          %777 = vset.pattern.permute.xlu0 0
          %778 = vperm.xlu0 %777, %v764
          %v779 = vpop.permute.xlu0 %778
          %782 = vset.pattern.permute.xlu0 0
          %783 = vperm.xlu0 %782, %v765
          %v784 = vpop.permute.xlu0 %783
          %v786 = vadd.f32 %v758, %v769
          %v787 = vadd.f32 %v759, %v774
          %v788 = vadd.f32 %v760, %v779
          %v789 = vadd.f32 %v761, %v784
          %v790 = vmax.f32 %v786, 0.0
          %v791 = vmax.f32 %v787, 0.0
          %v792 = vmax.f32 %v788, 0.0
          %v793 = vmax.f32 %v789, 0.0
          %794 = vst.msk [vmem:[%s4] sm:$0xff] %vm660, %v790
          %795 = vst.msk [vmem:[%s4 + $0x8] sm:$0xff] %vm660, %v791
          %796 = vst.msk [vmem:[%s4 + $0x10] sm:$0xff] %vm660, %v792
          %797 = vst.msk [vmem:[%s4 + $0x18] sm:$0xff] %vm660, %v793
        $region67: #{generator_forward.4} parent=54 // pred_fallthru
          _
        // Predicated region
        $region68: #{generator_forward.4} parent=54 // pred_check
          %p798 = pneg %p122
        $region69: #{generator_forward.4} parent=54 // pred_check_branch
          %800 = sbr.rel (%p798) target = $region71
        $region70: #{generator_forward.4} parent=54 // pred_region
          _
        $region71: #{generator_forward.4} parent=54 // pred_fallthru
          _
        // Predicated region
        $region72: #{generator_forward.4} parent=54 // pred_check
          %p801 = pneg %p122
        $region73: #{generator_forward.4} parent=54 // pred_check_branch
          %803 = sbr.rel (%p801) target = $region75
        $region74: #{generator_forward.4} parent=54 // pred_region
          _
        $region75: #{generator_forward.4} parent=54 // pred_fallthru
          _
      $region55: #{generator_forward.4} parent=5 // pred_fallthru
        _
      %p804 = scmp.le.s32.totalorder 2, %s10
      // Predicated region
      $region76: #{generator_forward.4} parent=5 // pred_check
        %p805 = pneg %p804
      $region77: #{generator_forward.4} parent=5 // pred_check_branch
        %807 = sbr.rel (%p805) target = $region79
      $region78: #{generator_forward.4} parent=5 // pred_region
        %s808 = ssub.s32 %s10, 2
      $region79: #{generator_forward.4} parent=5 // pred_fallthru
        _
    $region6: #{generator_forward.4} parent=1 // loop_footer
      %s14 = sadd.s32 1, %s10
    $region7: #{generator_forward.4} parent=1 // loop_footer_branch
      %9 = sbr.rel target = $region3
    $region8: #{generator_forward.4} parent=1 // loop_exit
      _

// kernel: generator_forward.5
$region0: #{generator_forward.5}
  #allocation0 [shape = 'u32[]', space=smem, size = 0x4, offset = 0x4, fixed_abs, tag = 'smem constant byte address 0x4 - core index']
  #allocation1 [shape = 'u32[144,128]{1,0:T(1,128)}', space=vmem, size = 0x12000, scoped, tag = 'internal scratch']
  %s0 = inlined_call_operand.vmem [shape: bf16[16,1152], index: 0, kind: input, shape index: {}]
  %s1 = inlined_call_operand.vmem [shape: bf16[1152,288], index: 1, kind: input, shape index: {}]
  %s2 = inlined_call_operand.vmem [shape: f32[16,1], index: 2, kind: input, shape index: {}]
  %s3 = inlined_call_operand.vmem [shape: f32[16,1], index: 3, kind: input, shape index: {}]
  %s4 = inlined_call_operand.vmem [shape: f32[16,288], index: 4, kind: output, shape index: {}]
  %s5 = sld [smem:[#allocation0]]
  $region83: #{generator_forward.5} parent=0
    _
  %s7 = ssub.s32 1, %s5
  %s8 = scalar_select 0, %s7, %s5
  $region1: #{generator_forward.5} parent=0
    #allocation2 [shape = 'u8[24576]{0}', space=vmem, size = 0x6000, scoped, tag = 'input window, operand 0']
    loop: start=0, step=1, limit=5
    $region2: #{generator_forward.5} parent=1 // loop_pre_header
      _
    $region3: #{generator_forward.5} parent=1 // loop_header
      %s10 = sphi 0, %s14
      %p11 = scmp.ge.s32.totalorder %s10, 5
      %s20 = sphi 0, %s22
      %s23 = sphi 0, %s20
      %s24 = sphi 0, %s23
      %s40 = sphi 0, %s24
      %s46 = sphi 0, %s48
      %s49 = sphi 0, %s46
      %s50 = sphi 0, %s49
      %s66 = sphi 0, %s50
      %s70 = sphi 0, %s70
      %s72 = sphi 0, %s70
      %s73 = sphi 0, %s72
      %s87 = sphi 0, %s73
      %s91 = sphi 0, %s91
      %s93 = sphi 0, %s91
      %s94 = sphi 0, %s93
      %s108 = sphi 0, %s94
      %s112 = sphi 0, %s112
      %s114 = sphi 0, %s112
      %s115 = sphi 0, %s114
      %s129 = sphi 0, %s115
    $region4: #{generator_forward.5} parent=1 // loop_header_branch
      %13 = sbr.rel (%p11) target = $region8
    $region5: #{generator_forward.5} parent=1 // loop_body
      %s15 = ssub.s32 %s10, 1
      %s16 = ssub.s32 %s10, 2
      %s17 = sadd.s32 %s10, 1
      %s18 = ssub.s32 %s10, %s17
      %p19 = scmp.eq.s32.totalorder %s18, 0
      %s21 = sadd.s32 %s20, 1
      %s22 = scalar_select %p19, %s20, %s21
      %p25 = pneg %p19
      %p26 = scmp.eq.s32.totalorder %s10, 2
      %p27 = por %p25, %p26
      %p28 = scmp.ne.s32.totalorder %s20, %s23
      %p29 = scmp.eq.s32.totalorder %s10, 0
      %p30 = por %p28, %p29
      %p31 = scmp.ne.s32.totalorder %s20, %s23
      %p32 = scmp.eq.s32.totalorder %s15, 2
      %p33 = por %p31, %p32
      %p34 = scmp.ne.s32.totalorder %s23, %s24
      %p35 = scmp.eq.s32.totalorder %s15, 0
      %p36 = por %p34, %p35
      %p37 = scmp.ne.s32.totalorder %s23, %s24
      %p38 = scmp.eq.s32.totalorder %s16, 2
      %p39 = por %p37, %p38
      %p41 = scmp.ne.s32.totalorder %s24, %s40
      %p42 = scmp.eq.s32.totalorder %s16, 0
      %p43 = por %p41, %p42
      %s44 = ssub.s32 %s10, %s17
      %p45 = scmp.eq.s32.totalorder %s44, 0
      %s47 = sadd.s32 %s46, 1
      %s48 = scalar_select %p45, %s46, %s47
      %p51 = pneg %p45
      %p52 = scmp.eq.s32.totalorder %s10, 2
      %p53 = por %p51, %p52
      %p54 = scmp.ne.s32.totalorder %s46, %s49
      %p55 = scmp.eq.s32.totalorder %s10, 0
      %p56 = por %p54, %p55
      %p57 = scmp.ne.s32.totalorder %s46, %s49
      %p58 = scmp.eq.s32.totalorder %s15, 2
      %p59 = por %p57, %p58
      %p60 = scmp.ne.s32.totalorder %s49, %s50
      %p61 = scmp.eq.s32.totalorder %s15, 0
      %p62 = por %p60, %p61
      %p63 = scmp.ne.s32.totalorder %s49, %s50
      %p64 = scmp.eq.s32.totalorder %s16, 2
      %p65 = por %p63, %p64
      %p67 = scmp.ne.s32.totalorder %s50, %s66
      %p68 = scmp.eq.s32.totalorder %s16, 0
      %p69 = por %p67, %p68
      %s71 = sadd.s32 %s70, 1
      %p74 = scmp.eq.s32.totalorder %s10, 2
      %p75 = scmp.ne.s32.totalorder %s70, %s72
      %p76 = scmp.eq.s32.totalorder %s10, 0
      %p77 = por %p75, %p76
      %p78 = scmp.ne.s32.totalorder %s70, %s72
      %p79 = scmp.eq.s32.totalorder %s15, 2
      %p80 = por %p78, %p79
      %p81 = scmp.ne.s32.totalorder %s72, %s73
      %p82 = scmp.eq.s32.totalorder %s15, 0
      %p83 = por %p81, %p82
      %p84 = scmp.ne.s32.totalorder %s72, %s73
      %p85 = scmp.eq.s32.totalorder %s16, 2
      %p86 = por %p84, %p85
      %p88 = scmp.ne.s32.totalorder %s73, %s87
      %p89 = scmp.eq.s32.totalorder %s16, 0
      %p90 = por %p88, %p89
      %s92 = sadd.s32 %s91, 1
      %p95 = scmp.eq.s32.totalorder %s10, 2
      %p96 = scmp.ne.s32.totalorder %s91, %s93
      %p97 = scmp.eq.s32.totalorder %s10, 0
      %p98 = por %p96, %p97
      %p99 = scmp.ne.s32.totalorder %s91, %s93
      %p100 = scmp.eq.s32.totalorder %s15, 2
      %p101 = por %p99, %p100
      %p102 = scmp.ne.s32.totalorder %s93, %s94
      %p103 = scmp.eq.s32.totalorder %s15, 0
      %p104 = por %p102, %p103
      %p105 = scmp.ne.s32.totalorder %s93, %s94
      %p106 = scmp.eq.s32.totalorder %s16, 2
      %p107 = por %p105, %p106
      %p109 = scmp.ne.s32.totalorder %s94, %s108
      %p110 = scmp.eq.s32.totalorder %s16, 0
      %p111 = por %p109, %p110
      %s113 = sadd.s32 %s112, 1
      %p116 = scmp.eq.s32.totalorder %s10, 2
      %p117 = scmp.ne.s32.totalorder %s112, %s114
      %p118 = scmp.eq.s32.totalorder %s10, 0
      %p119 = por %p117, %p118
      %p120 = scmp.ne.s32.totalorder %s112, %s114
      %p121 = scmp.eq.s32.totalorder %s15, 2
      %p122 = por %p120, %p121
      %p123 = scmp.ne.s32.totalorder %s114, %s115
      %p124 = scmp.eq.s32.totalorder %s15, 0
      %p125 = por %p123, %p124
      %p126 = scmp.ne.s32.totalorder %s114, %s115
      %p127 = scmp.eq.s32.totalorder %s16, 2
      %p128 = por %p126, %p127
      %p130 = scmp.ne.s32.totalorder %s115, %s129
      %p131 = scmp.eq.s32.totalorder %s16, 0
      %p132 = por %p130, %p131
      %p133 = scmp.le.s32.totalorder 1, %s10
      %p134 = scmp.lt.s32.totalorder %s10, 4
      %p135 = pnand %p133, %p134
      %p136 = pneg %p135
      // Predicated region
      $region9: #{generator_forward.5} parent=5 // pred_check
        _
      $region10: #{generator_forward.5} parent=5 // pred_check_branch
        %138 = sbr.rel (%p135) target = $region12
      $region11: #{generator_forward.5} parent=5 // pred_region
        %s139 = ssub.s32 %s10, 1
        // Predicated region
        $region13: #{generator_forward.5} parent=11 // pred_check
          %p140 = pneg %p83
        $region14: #{generator_forward.5} parent=11 // pred_check_branch
          %142 = sbr.rel (%p140) target = $region16
        $region15: #{generator_forward.5} parent=11 // pred_region
          _
        $region16: #{generator_forward.5} parent=11 // pred_fallthru
          _
        // Predicated region
        $region17: #{generator_forward.5} parent=11 // pred_check
          %p143 = pneg %p104
        $region18: #{generator_forward.5} parent=11 // pred_check_branch
          %145 = sbr.rel (%p143) target = $region20
        $region19: #{generator_forward.5} parent=11 // pred_region
          _
        $region20: #{generator_forward.5} parent=11 // pred_fallthru
          _
      $region12: #{generator_forward.5} parent=5 // pred_fallthru
        _
      %p146 = scmp.lt.s32.totalorder %s10, 3
      // Predicated region
      $region21: #{generator_forward.5} parent=5 // pred_check
        %p147 = pneg %p146
      $region22: #{generator_forward.5} parent=5 // pred_check_branch
        %149 = sbr.rel (%p147) target = $region24
      $region23: #{generator_forward.5} parent=5 // pred_region
        // Predicated region
        $region25: #{generator_forward.5} parent=23 // pred_check
          %p150 = pneg %p30
        $region26: #{generator_forward.5} parent=23 // pred_check_branch
          %152 = sbr.rel (%p150) target = $region28
        $region27: #{generator_forward.5} parent=23 // pred_region
          %s153 = sand.u32 %s20, 1
          %s154 = sand.u32 %s20, 1
          %s155 = smul.addr %s154, 24
          %s156 = scalar_lea.vmem [#allocation2], %s155
          %s157 = smul.u32 3, %s10
          %s158 = smul.addr %s157, 4
          %s159 = scalar_lea.vmem %s0, %s158
          // Predicated region
          $region29: #{generator_forward.5} parent=27 // pred_check
            _
          $region30: #{generator_forward.5} parent=27 // pred_check_branch
            %161 = sbr.rel (0) target = $region32
          $region31: #{generator_forward.5} parent=27 // pred_region
            // Predicated region
            $region33: #{generator_forward.5} parent=31 // pred_check
              _
            $region34: #{generator_forward.5} parent=31 // pred_check_branch
              %163 = sbr.rel (0) target = $region36
            $region35: #{generator_forward.5} parent=31 // pred_region
              %s164 = scalar_lea.vmem %s159, 8
              %s165 = scalar_lea.vmem %s156, 8 [#allocation2]
              loop: start=0, step=1, limit=1
              $region37: #{generator_forward.5} parent=35 // loop_pre_header
                _
              $region38: #{generator_forward.5} parent=35 // loop_header
                %s167 = sphi 0, %s171
                %p168 = scmp.ge.s32.totalorder %s167, 1
                %s172 = sphi %s159, %s159
                %s173 = sphi %s156, %s156
              $region39: #{generator_forward.5} parent=35 // loop_header_branch
                %170 = sbr.rel (%p168) target = $region43
              $region40: #{generator_forward.5} parent=35 // loop_body
                %v174 = vld [vmem:[%s172] sm:$0xff]
                %175 = vst [vmem:[%s173] sm:$0xff] %v174
                %v176 = vld [vmem:[%s172 + $0x24] sm:$0xff]
                %177 = vst [vmem:[%s173 + $0xc] sm:$0xff] %v176
              $region41: #{generator_forward.5} parent=35 // loop_footer
                %s171 = sadd.s32 1, %s167
              $region42: #{generator_forward.5} parent=35 // loop_footer_branch
                %166 = sbr.rel target = $region38
              $region43: #{generator_forward.5} parent=35 // loop_exit
                _
              loop: start=0, step=1, limit=1
              $region44: #{generator_forward.5} parent=35 // loop_pre_header
                _
              $region45: #{generator_forward.5} parent=35 // loop_header
                %s180 = sphi 0, %s184
                %p181 = scmp.ge.s32.totalorder %s180, 1
                %s185 = sphi %s164, %s164
                %s186 = sphi %s165, %s165
              $region46: #{generator_forward.5} parent=35 // loop_header_branch
                %183 = sbr.rel (%p181) target = $region50
              $region47: #{generator_forward.5} parent=35 // loop_body
                %v187 = vld [vmem:[%s185] sm:$0xf]
                %188 = vst [vmem:[%s186] sm:$0xf] %v187
                %v189 = vld [vmem:[%s185 + $0x24] sm:$0xf]
                %190 = vst [vmem:[%s186 + $0xc] sm:$0xf] %v189
              $region48: #{generator_forward.5} parent=35 // loop_footer
                %s184 = sadd.s32 1, %s180
              $region49: #{generator_forward.5} parent=35 // loop_footer_branch
                %179 = sbr.rel target = $region45
              $region50: #{generator_forward.5} parent=35 // loop_exit
                _
            $region36: #{generator_forward.5} parent=31 // pred_fallthru
              _
          $region32: #{generator_forward.5} parent=27 // pred_fallthru
            _
          %191 = vnop
        $region28: #{generator_forward.5} parent=23 // pred_fallthru
          _
        // Predicated region
        $region51: #{generator_forward.5} parent=23 // pred_check
          %p192 = pneg %p56
        $region52: #{generator_forward.5} parent=23 // pred_check_branch
          %194 = sbr.rel (%p192) target = $region54
        $region53: #{generator_forward.5} parent=23 // pred_region
          %s195 = smul.u32 48, %s10
          %p196 = scmp.lt.s32.totalorder %s195, 143
          %s197 = scalar_select %p196, %s195, 143
          %s198 = smul.addr %s197, 3
          %s199 = smul.addr %s198, 4
          %s200 = scalar_lea.vmem %s1, %s199
          %s201 = smul.u32 48, %s10
        $region54: #{generator_forward.5} parent=23 // pred_fallthru
          _
      $region24: #{generator_forward.5} parent=5 // pred_fallthru
        _
      %p202 = scmp.le.s32.totalorder 1, %s10
      %p203 = scmp.lt.s32.totalorder %s10, 4
      %p204 = pnand %p202, %p203
      %p205 = pneg %p204
      // Predicated region
      $region55: #{generator_forward.5} parent=5 // pred_check
        _
      $region56: #{generator_forward.5} parent=5 // pred_check_branch
        %207 = sbr.rel (%p204) target = $region58
      $region57: #{generator_forward.5} parent=5 // pred_region
        %s208 = ssub.s32 %s10, 1
        %s209 = sand.u32 %s23, 1
        %s210 = sand.u32 %s23, 1
        %s211 = smul.addr %s210, 24
        %s212 = scalar_lea.vmem [#allocation2], %s211
        // Predicated region
        $region59: #{generator_forward.5} parent=57 // pred_check
          %p213 = pneg %p36
        $region60: #{generator_forward.5} parent=57 // pred_check_branch
          %215 = sbr.rel (%p213) target = $region62
        $region61: #{generator_forward.5} parent=57 // pred_region
          _
        $region62: #{generator_forward.5} parent=57 // pred_fallthru
          _
        %s216 = sand.u32 %s23, 1
        %s217 = sand.u32 %s23, 1
        %s218 = smul.addr %s217, 24
        %s219 = scalar_lea.vmem [#allocation2], %s218
        %p220 = pneg %p36
        %p221 = pneg %p33
        %s222 = smul.u32 48, %s15
        %p223 = scmp.lt.s32.totalorder %s222, 143
        %s224 = scalar_select %p223, %s222, 143
        %s225 = smul.addr %s224, 3
        %s226 = smul.addr %s225, 4
        %s227 = scalar_lea.vmem %s1, %s226
        %p228 = pneg %p62
        %p229 = pneg %p59
        %p230 = pneg %p83
        %p231 = pneg %p80
        %p232 = pneg %p104
        %p233 = pneg %p101
        %p234 = pneg %p125
        %p235 = pneg %p122
        %s236 = smul.u32 3, %s15
        %s237 = smul.u32 48, %s15
        %p238 = scmp.lt.s32.totalorder %s237, 143
        %s239 = scalar_select %p238, %s237, 143
        %s240 = smul.addr %s239, 3
        %s241 = smul.addr %s240, 4
        %s242 = scalar_lea.vmem %s1, %s241
        %s243 = smul.u32 48, %s15
        %p245 = scmp.eq.s32.totalorder %s15, 0
        // Predicated region
        $region63: #{generator_forward.5} parent=57 // pred_check
          %p246 = pneg %p245
        $region64: #{generator_forward.5} parent=57 // pred_check_branch
          %248 = sbr.rel (%p246) target = $region66
        $region65: #{generator_forward.5} parent=57 // pred_region
          %249 = vst [vmem:[%s4] sm:$0xff] 0.0
          %250 = vst [vmem:[%s4 + $0x8] sm:$0xff] 0.0
          %vm251 = vcmask 261120
          %252 = vst.msk [vmem:[%s4 + $0x10] sm:$0xff] %vm251, 0.0
          %253 = vst [vmem:[%s4 + $0x18] sm:$0xff] 0.0
          %254 = vst [vmem:[%s4 + $0x20] sm:$0xff] 0.0
          %255 = vst.msk [vmem:[%s4 + $0x28] sm:$0xff] %vm251, 0.0
        $region66: #{generator_forward.5} parent=57 // pred_fallthru
          _
        %v256 = vld [vmem:[%s4] sm:$0xff]
        %v257 = vld [vmem:[%s4 + $0x8] sm:$0xff]
        %v258 = vld [vmem:[%s4 + $0x10] sm:$0xff]
        %v259 = vld [vmem:[%s4 + $0x18] sm:$0xff]
        %v260 = vld [vmem:[%s4 + $0x20] sm:$0xff]
        %v261 = vld [vmem:[%s4 + $0x28] sm:$0xff]
        %v262 = vld [vmem:[%s212] sm:$0xff]
        %v263 = vld [vmem:[%s212 + $0x8] sm:$0xf]
        %v264 = vld [vmem:[%s212 + $0xc] sm:$0xff]
        %v265 = vld [vmem:[%s212 + $0x14] sm:$0xf]
        %v266 = vld [vmem:[%s242] sm:$0xff]
        %v267 = vld [vmem:[%s242 + $0x8] sm:$0xf]
        %v268 = vld [vmem:[%s242 + $0xc] sm:$0xff]
        %v269 = vld [vmem:[%s242 + $0x14] sm:$0xf]
        %v270 = vld [vmem:[%s242 + $0x18] sm:$0xff]
        %v271 = vld [vmem:[%s242 + $0x20] sm:$0xf]
        %v272 = vld [vmem:[%s242 + $0x24] sm:$0xff]
        %v273 = vld [vmem:[%s242 + $0x2c] sm:$0xf]
        %v274 = vld [vmem:[%s242 + $0x30] sm:$0xff]
        %v275 = vld [vmem:[%s242 + $0x38] sm:$0xf]
        %v276 = vld [vmem:[%s242 + $0x3c] sm:$0xff]
        %v277 = vld [vmem:[%s242 + $0x44] sm:$0xf]
        %v278 = vld [vmem:[%s242 + $0x48] sm:$0xff]
        %v279 = vld [vmem:[%s242 + $0x50] sm:$0xf]
        %v280 = vld [vmem:[%s242 + $0x54] sm:$0xff]
        %v281 = vld [vmem:[%s242 + $0x5c] sm:$0xf]
        %v282 = vld [vmem:[%s242 + $0x60] sm:$0xff]
        %v283 = vld [vmem:[%s242 + $0x68] sm:$0xf]
        %v284 = vld [vmem:[%s242 + $0x6c] sm:$0xff]
        %v285 = vld [vmem:[%s242 + $0x74] sm:$0xf]
        %v286 = vld [vmem:[%s242 + $0x78] sm:$0xff]
        %v287 = vld [vmem:[%s242 + $0x80] sm:$0xf]
        %v288 = vld [vmem:[%s242 + $0x84] sm:$0xff]
        %v289 = vld [vmem:[%s242 + $0x8c] sm:$0xf]
        %v290 = vld [vmem:[%s242 + $0x90] sm:$0xff]
        %v291 = vld [vmem:[%s242 + $0x98] sm:$0xf]
        %v292 = vld [vmem:[%s242 + $0x9c] sm:$0xff]
        %v293 = vld [vmem:[%s242 + $0xa4] sm:$0xf]
        %v294 = vld [vmem:[%s242 + $0xa8] sm:$0xff]
        %v295 = vld [vmem:[%s242 + $0xb0] sm:$0xf]
        %v296 = vld [vmem:[%s242 + $0xb4] sm:$0xff]
        %v297 = vld [vmem:[%s242 + $0xbc] sm:$0xf]
        %v298 = vld [vmem:[%s242 + $0xc0] sm:$0xff]
        %v299 = vld [vmem:[%s242 + $0xc8] sm:$0xf]
        %v300 = vld [vmem:[%s242 + $0xcc] sm:$0xff]
        %v301 = vld [vmem:[%s242 + $0xd4] sm:$0xf]
        %v302 = vld [vmem:[%s242 + $0xd8] sm:$0xff]
        %v303 = vld [vmem:[%s242 + $0xe0] sm:$0xf]
        %v304 = vld [vmem:[%s242 + $0xe4] sm:$0xff]
        %v305 = vld [vmem:[%s242 + $0xec] sm:$0xf]
        %v306 = vld [vmem:[%s242 + $0xf0] sm:$0xff]
        %v307 = vld [vmem:[%s242 + $0xf8] sm:$0xf]
        %v308 = vld [vmem:[%s242 + $0xfc] sm:$0xff]
        %v309 = vld [vmem:[%s242 + $0x104] sm:$0xf]
        %v310 = vld [vmem:[%s242 + $0x108] sm:$0xff]
        %v311 = vld [vmem:[%s242 + $0x110] sm:$0xf]
        %v312 = vld [vmem:[%s242 + $0x114] sm:$0xff]
        %v313 = vld [vmem:[%s242 + $0x11c] sm:$0xf]
        %v314 = vld [vmem:[%s242 + $0x120] sm:$0xff]
        %v315 = vld [vmem:[%s242 + $0x128] sm:$0xf]
        %v316 = vld [vmem:[%s242 + $0x12c] sm:$0xff]
        %v317 = vld [vmem:[%s242 + $0x134] sm:$0xf]
        %v318 = vld [vmem:[%s242 + $0x138] sm:$0xff]
        %v319 = vld [vmem:[%s242 + $0x140] sm:$0xf]
        %v320 = vld [vmem:[%s242 + $0x144] sm:$0xff]
        %v321 = vld [vmem:[%s242 + $0x14c] sm:$0xf]
        %v322 = vld [vmem:[%s242 + $0x150] sm:$0xff]
        %v323 = vld [vmem:[%s242 + $0x158] sm:$0xf]
        %v324 = vld [vmem:[%s242 + $0x15c] sm:$0xff]
        %v325 = vld [vmem:[%s242 + $0x164] sm:$0xf]
        %v326 = vld [vmem:[%s242 + $0x168] sm:$0xff]
        %v327 = vld [vmem:[%s242 + $0x170] sm:$0xf]
        %v328 = vld [vmem:[%s242 + $0x174] sm:$0xff]
        %v329 = vld [vmem:[%s242 + $0x17c] sm:$0xf]
        %v330 = vld [vmem:[%s242 + $0x180] sm:$0xff]
        %v331 = vld [vmem:[%s242 + $0x188] sm:$0xf]
        %v332 = vld [vmem:[%s242 + $0x18c] sm:$0xff]
        %v333 = vld [vmem:[%s242 + $0x194] sm:$0xf]
        %v334 = vld [vmem:[%s242 + $0x198] sm:$0xff]
        %v335 = vld [vmem:[%s242 + $0x1a0] sm:$0xf]
        %v336 = vld [vmem:[%s242 + $0x1a4] sm:$0xff]
        %v337 = vld [vmem:[%s242 + $0x1ac] sm:$0xf]
        %v338 = vld [vmem:[%s242 + $0x1b0] sm:$0xff]
        %v339 = vld [vmem:[%s242 + $0x1b8] sm:$0xf]
        %v340 = vld [vmem:[%s242 + $0x1bc] sm:$0xff]
        %v341 = vld [vmem:[%s242 + $0x1c4] sm:$0xf]
        %v342 = vld [vmem:[%s242 + $0x1c8] sm:$0xff]
        %v343 = vld [vmem:[%s242 + $0x1d0] sm:$0xf]
        %v344 = vld [vmem:[%s242 + $0x1d4] sm:$0xff]
        %v345 = vld [vmem:[%s242 + $0x1dc] sm:$0xf]
        %v346 = vld [vmem:[%s242 + $0x1e0] sm:$0xff]
        %v347 = vld [vmem:[%s242 + $0x1e8] sm:$0xf]
        %v348 = vld [vmem:[%s242 + $0x1ec] sm:$0xff]
        %v349 = vld [vmem:[%s242 + $0x1f4] sm:$0xf]
        %v350 = vld [vmem:[%s242 + $0x1f8] sm:$0xff]
        %v351 = vld [vmem:[%s242 + $0x200] sm:$0xf]
        %v352 = vld [vmem:[%s242 + $0x204] sm:$0xff]
        %v353 = vld [vmem:[%s242 + $0x20c] sm:$0xf]
        %v354 = vld [vmem:[%s242 + $0x210] sm:$0xff]
        %v355 = vld [vmem:[%s242 + $0x218] sm:$0xf]
        %v356 = vld [vmem:[%s242 + $0x21c] sm:$0xff]
        %v357 = vld [vmem:[%s242 + $0x224] sm:$0xf]
        %v358 = vld [vmem:[%s242 + $0x228] sm:$0xff]
        %v359 = vld [vmem:[%s242 + $0x230] sm:$0xf]
        %v360 = vld [vmem:[%s242 + $0x234] sm:$0xff]
        %v361 = vld [vmem:[%s242 + $0x23c] sm:$0xf]
        %v366 = vunpack.c.l.b16 %v262
        %v367 = vunpack.c.h.b16 %v262
        %v368 = vunpack.c.l.b16 %v263
        %v369 = vunpack.c.l.b16 %v264
        %v370 = vunpack.c.h.b16 %v264
        %v371 = vunpack.c.l.b16 %v265
        %v372 = vpack.c.b16 %v369, %v366
        %v373 = vpack.c.b16 %v370, %v367
        %v374 = vpack.c.b16 %v371, %v368
        %v474 = vunpack.c.l.b16 %v266
        %v475 = vunpack.c.h.b16 %v266
        %v476 = vunpack.c.l.b16 %v267
        %v477 = vunpack.c.l.b16 %v268
        %v478 = vunpack.c.h.b16 %v268
        %v479 = vunpack.c.l.b16 %v269
        %v480 = vunpack.c.l.b16 %v270
        %v481 = vunpack.c.h.b16 %v270
        %v482 = vunpack.c.l.b16 %v271
        %v483 = vunpack.c.l.b16 %v272
        %v484 = vunpack.c.h.b16 %v272
        %v485 = vunpack.c.l.b16 %v273
        %v486 = vunpack.c.l.b16 %v274
        %v487 = vunpack.c.h.b16 %v274
        %v488 = vunpack.c.l.b16 %v275
        %v489 = vunpack.c.l.b16 %v276
        %v490 = vunpack.c.h.b16 %v276
        %v491 = vunpack.c.l.b16 %v277
        %v492 = vunpack.c.l.b16 %v278
        %v493 = vunpack.c.h.b16 %v278
        %v494 = vunpack.c.l.b16 %v279
        %v495 = vunpack.c.l.b16 %v280
        %v496 = vunpack.c.h.b16 %v280
        %v497 = vunpack.c.l.b16 %v281
        %v498 = vunpack.c.l.b16 %v282
        %v499 = vunpack.c.h.b16 %v282
        %v500 = vunpack.c.l.b16 %v283
        %v501 = vunpack.c.l.b16 %v284
        %v502 = vunpack.c.h.b16 %v284
        %v503 = vunpack.c.l.b16 %v285
        %v504 = vunpack.c.l.b16 %v286
        %v505 = vunpack.c.h.b16 %v286
        %v506 = vunpack.c.l.b16 %v287
        %v507 = vunpack.c.l.b16 %v288
        %v508 = vunpack.c.h.b16 %v288
        %v509 = vunpack.c.l.b16 %v289
        %v510 = vunpack.c.l.b16 %v290
        %v511 = vunpack.c.h.b16 %v290
        %v512 = vunpack.c.l.b16 %v291
        %v513 = vunpack.c.l.b16 %v292
        %v514 = vunpack.c.h.b16 %v292
        %v515 = vunpack.c.l.b16 %v293
        %v516 = vunpack.c.l.b16 %v294
        %v517 = vunpack.c.h.b16 %v294
        %v518 = vunpack.c.l.b16 %v295
        %v519 = vunpack.c.l.b16 %v296
        %v520 = vunpack.c.h.b16 %v296
        %v521 = vunpack.c.l.b16 %v297
        %v522 = vunpack.c.l.b16 %v298
        %v523 = vunpack.c.h.b16 %v298
        %v524 = vunpack.c.l.b16 %v299
        %v525 = vunpack.c.l.b16 %v300
        %v526 = vunpack.c.h.b16 %v300
        %v527 = vunpack.c.l.b16 %v301
        %v528 = vunpack.c.l.b16 %v302
        %v529 = vunpack.c.h.b16 %v302
        %v530 = vunpack.c.l.b16 %v303
        %v531 = vunpack.c.l.b16 %v304
        %v532 = vunpack.c.h.b16 %v304
        %v533 = vunpack.c.l.b16 %v305
        %v534 = vunpack.c.l.b16 %v306
        %v535 = vunpack.c.h.b16 %v306
        %v536 = vunpack.c.l.b16 %v307
        %v537 = vunpack.c.l.b16 %v308
        %v538 = vunpack.c.h.b16 %v308
        %v539 = vunpack.c.l.b16 %v309
        %v540 = vunpack.c.l.b16 %v310
        %v541 = vunpack.c.h.b16 %v310
        %v542 = vunpack.c.l.b16 %v311
        %v543 = vunpack.c.l.b16 %v312
        %v544 = vunpack.c.h.b16 %v312
        %v545 = vunpack.c.l.b16 %v313
        %v546 = vunpack.c.l.b16 %v314
        %v547 = vunpack.c.h.b16 %v314
        %v548 = vunpack.c.l.b16 %v315
        %v549 = vunpack.c.l.b16 %v316
        %v550 = vunpack.c.h.b16 %v316
        %v551 = vunpack.c.l.b16 %v317
        %v552 = vunpack.c.l.b16 %v318
        %v553 = vunpack.c.h.b16 %v318
        %v554 = vunpack.c.l.b16 %v319
        %v555 = vunpack.c.l.b16 %v320
        %v556 = vunpack.c.h.b16 %v320
        %v557 = vunpack.c.l.b16 %v321
        %v558 = vunpack.c.l.b16 %v322
        %v559 = vunpack.c.h.b16 %v322
        %v560 = vunpack.c.l.b16 %v323
        %v561 = vunpack.c.l.b16 %v324
        %v562 = vunpack.c.h.b16 %v324
        %v563 = vunpack.c.l.b16 %v325
        %v564 = vunpack.c.l.b16 %v326
        %v565 = vunpack.c.h.b16 %v326
        %v566 = vunpack.c.l.b16 %v327
        %v567 = vunpack.c.l.b16 %v328
        %v568 = vunpack.c.h.b16 %v328
        %v569 = vunpack.c.l.b16 %v329
        %v570 = vunpack.c.l.b16 %v330
        %v571 = vunpack.c.h.b16 %v330
        %v572 = vunpack.c.l.b16 %v331
        %v573 = vunpack.c.l.b16 %v332
        %v574 = vunpack.c.h.b16 %v332
        %v575 = vunpack.c.l.b16 %v333
        %v576 = vunpack.c.l.b16 %v334
        %v577 = vunpack.c.h.b16 %v334
        %v578 = vunpack.c.l.b16 %v335
        %v579 = vunpack.c.l.b16 %v336
        %v580 = vunpack.c.h.b16 %v336
        %v581 = vunpack.c.l.b16 %v337
        %v582 = vunpack.c.l.b16 %v338
        %v583 = vunpack.c.h.b16 %v338
        %v584 = vunpack.c.l.b16 %v339
        %v585 = vunpack.c.l.b16 %v340
        %v586 = vunpack.c.h.b16 %v340
        %v587 = vunpack.c.l.b16 %v341
        %v588 = vunpack.c.l.b16 %v342
        %v589 = vunpack.c.h.b16 %v342
        %v590 = vunpack.c.l.b16 %v343
        %v591 = vunpack.c.l.b16 %v344
        %v592 = vunpack.c.h.b16 %v344
        %v593 = vunpack.c.l.b16 %v345
        %v594 = vunpack.c.l.b16 %v346
        %v595 = vunpack.c.h.b16 %v346
        %v596 = vunpack.c.l.b16 %v347
        %v597 = vunpack.c.l.b16 %v348
        %v598 = vunpack.c.h.b16 %v348
        %v599 = vunpack.c.l.b16 %v349
        %v600 = vunpack.c.l.b16 %v350
        %v601 = vunpack.c.h.b16 %v350
        %v602 = vunpack.c.l.b16 %v351
        %v603 = vunpack.c.l.b16 %v352
        %v604 = vunpack.c.h.b16 %v352
        %v605 = vunpack.c.l.b16 %v353
        %v606 = vunpack.c.l.b16 %v354
        %v607 = vunpack.c.h.b16 %v354
        %v608 = vunpack.c.l.b16 %v355
        %v609 = vunpack.c.l.b16 %v356
        %v610 = vunpack.c.h.b16 %v356
        %v611 = vunpack.c.l.b16 %v357
        %v612 = vunpack.c.l.b16 %v358
        %v613 = vunpack.c.h.b16 %v358
        %v614 = vunpack.c.l.b16 %v359
        %v615 = vunpack.c.l.b16 %v360
        %v616 = vunpack.c.h.b16 %v360
        %v617 = vunpack.c.l.b16 %v361
        %v618 = vpack.c.b16 %v477, %v474
        %v619 = vpack.c.b16 %v478, %v475
        %v620 = vpack.c.b16 %v479, %v476
        %v621 = vpack.c.b16 %v483, %v480
        %v622 = vpack.c.b16 %v484, %v481
        %v623 = vpack.c.b16 %v485, %v482
        %v624 = vpack.c.b16 %v489, %v486
        %v625 = vpack.c.b16 %v490, %v487
        %v626 = vpack.c.b16 %v491, %v488
        %v627 = vpack.c.b16 %v495, %v492
        %v628 = vpack.c.b16 %v496, %v493
        %v629 = vpack.c.b16 %v497, %v494
        %v630 = vpack.c.b16 %v501, %v498
        %v631 = vpack.c.b16 %v502, %v499
        %v632 = vpack.c.b16 %v503, %v500
        %v633 = vpack.c.b16 %v507, %v504
        %v634 = vpack.c.b16 %v508, %v505
        %v635 = vpack.c.b16 %v509, %v506
        %v636 = vpack.c.b16 %v513, %v510
        %v637 = vpack.c.b16 %v514, %v511
        %v638 = vpack.c.b16 %v515, %v512
        %v639 = vpack.c.b16 %v519, %v516
        %v640 = vpack.c.b16 %v520, %v517
        %v641 = vpack.c.b16 %v521, %v518
        %v642 = vpack.c.b16 %v525, %v522
        %v643 = vpack.c.b16 %v526, %v523
        %v644 = vpack.c.b16 %v527, %v524
        %v645 = vpack.c.b16 %v531, %v528
        %v646 = vpack.c.b16 %v532, %v529
        %v647 = vpack.c.b16 %v533, %v530
        %v648 = vpack.c.b16 %v537, %v534
        %v649 = vpack.c.b16 %v538, %v535
        %v650 = vpack.c.b16 %v539, %v536
        %v651 = vpack.c.b16 %v543, %v540
        %v652 = vpack.c.b16 %v544, %v541
        %v653 = vpack.c.b16 %v545, %v542
        %v654 = vpack.c.b16 %v549, %v546
        %v655 = vpack.c.b16 %v550, %v547
        %v656 = vpack.c.b16 %v551, %v548
        %v657 = vpack.c.b16 %v555, %v552
        %v658 = vpack.c.b16 %v556, %v553
        %v659 = vpack.c.b16 %v557, %v554
        %v660 = vpack.c.b16 %v561, %v558
        %v661 = vpack.c.b16 %v562, %v559
        %v662 = vpack.c.b16 %v563, %v560
        %v663 = vpack.c.b16 %v567, %v564
        %v664 = vpack.c.b16 %v568, %v565
        %v665 = vpack.c.b16 %v569, %v566
        %v666 = vpack.c.b16 %v573, %v570
        %v667 = vpack.c.b16 %v574, %v571
        %v668 = vpack.c.b16 %v575, %v572
        %v669 = vpack.c.b16 %v579, %v576
        %v670 = vpack.c.b16 %v580, %v577
        %v671 = vpack.c.b16 %v581, %v578
        %v672 = vpack.c.b16 %v585, %v582
        %v673 = vpack.c.b16 %v586, %v583
        %v674 = vpack.c.b16 %v587, %v584
        %v675 = vpack.c.b16 %v591, %v588
        %v676 = vpack.c.b16 %v592, %v589
        %v677 = vpack.c.b16 %v593, %v590
        %v678 = vpack.c.b16 %v597, %v594
        %v679 = vpack.c.b16 %v598, %v595
        %v680 = vpack.c.b16 %v599, %v596
        %v681 = vpack.c.b16 %v603, %v600
        %v682 = vpack.c.b16 %v604, %v601
        %v683 = vpack.c.b16 %v605, %v602
        %v684 = vpack.c.b16 %v609, %v606
        %v685 = vpack.c.b16 %v610, %v607
        %v686 = vpack.c.b16 %v611, %v608
        %v687 = vpack.c.b16 %v615, %v612
        %v688 = vpack.c.b16 %v616, %v613
        %v689 = vpack.c.b16 %v617, %v614
        %762 = vmatprep.subr.bf16.mxu0 %v619
        %763 = vmatpush1.bf16.msra.mxu0 %v618
        %764 = vmatprep.subr.bf16.mxu0 %v622
        %765 = vmatpush1.bf16.msra.mxu0 %v621
        %766 = vmatprep.subr.bf16.mxu0 %v625
        %767 = vmatpush1.bf16.msra.mxu0 %v624
        %768 = vmatprep.subr.bf16.mxu0 %v628
        %769 = vmatpush1.bf16.msra.mxu0 %v627
        %770 = vmatprep.subr.bf16.mxu0 %v631
        %771 = vmatpush1.bf16.msra.mxu0 %v630
        %772 = vmatprep.subr.bf16.mxu0 %v634
        %773 = vmatpush1.bf16.msra.mxu0 %v633
        %774 = vmatprep.subr.bf16.mxu0 %v637
        %775 = vmatpush1.bf16.msra.mxu0 %v636
        %776 = vmatprep.subr.bf16.mxu0 %v640
        %777 = vmatpush1.bf16.msra.mxu0 %v639
        %778 = vmatprep.subr.bf16.mxu0 %v643
        %779 = vmatpush1.bf16.msra.mxu0 %v642
        %780 = vmatprep.subr.bf16.mxu0 %v646
        %781 = vmatpush1.bf16.msra.mxu0 %v645
        %782 = vmatprep.subr.bf16.mxu0 %v649
        %783 = vmatpush1.bf16.msra.mxu0 %v648
        %784 = vmatprep.subr.bf16.mxu0 %v652
        %785 = vmatpush1.bf16.msra.mxu0 %v651
        %786 = vmatprep.subr.bf16.mxu0 %v655
        %787 = vmatpush1.bf16.msra.mxu0 %v654
        %788 = vmatprep.subr.bf16.mxu0 %v658
        %789 = vmatpush1.bf16.msra.mxu0 %v657
        %790 = vmatprep.subr.bf16.mxu0 %v661
        %791 = vmatpush1.bf16.msra.mxu0 %v660
        %792 = vmatprep.subr.bf16.mxu0 %v664
        %793 = vmatpush1.bf16.msra.mxu0 %v663
        %794 = vmatprep.mubr.bf16.mxu0 %v373
        %795 = vmatmul.mubr.bf16.gmra.mrb[0].mxu0 %v372
        %v796 = vpop.f32.mrb[0].mxu0
        %v797 = vadd.f32 0.0, %v796
        %v798 = vpop.f32.mrb[0].mxu0
        %v799 = vadd.f32 0.0, %v798
        %v800 = vpop.f32.mrb[0].mxu0
        %v801 = vadd.f32 0.0, %v800
        %v802 = vpop.f32.mrb[0].mxu0
        %v803 = vadd.f32 0.0, %v802
        %804 = vdwg.mxu0
        %805 = vmatprep.subr.bf16.mxu0 %v667
        %806 = vmatpush1.bf16.msra.mxu0 %v666
        %807 = vmatprep.subr.bf16.mxu0 %v670
        %808 = vmatpush1.bf16.msra.mxu0 %v669
        %809 = vmatprep.subr.bf16.mxu0 %v673
        %810 = vmatpush1.bf16.msra.mxu0 %v672
        %811 = vmatprep.subr.bf16.mxu0 %v676
        %812 = vmatpush1.bf16.msra.mxu0 %v675
        %813 = vmatprep.subr.bf16.mxu0 %v679
        %814 = vmatpush1.bf16.msra.mxu0 %v678
        %815 = vmatprep.subr.bf16.mxu0 %v682
        %816 = vmatpush1.bf16.msra.mxu0 %v681
        %817 = vmatprep.subr.bf16.mxu0 %v685
        %818 = vmatpush1.bf16.msra.mxu0 %v684
        %819 = vmatprep.subr.bf16.mxu0 %v688
        %820 = vmatpush1.bf16.msra.mxu0 %v687
        %821 = vmatprep.subr.bf16.mxu0 0
        %822 = vmatpush1.bf16.msra.mxu0 0
        %823 = vmatprep.subr.bf16.mxu0 0
        %824 = vmatpush1.bf16.msra.mxu0 0
        %825 = vmatprep.subr.bf16.mxu0 0
        %826 = vmatpush1.bf16.msra.mxu0 0
        %827 = vmatprep.subr.bf16.mxu0 0
        %828 = vmatpush1.bf16.msra.mxu0 0
        %829 = vmatprep.subr.bf16.mxu0 0
        %830 = vmatpush1.bf16.msra.mxu0 0
        %831 = vmatprep.subr.bf16.mxu0 0
        %832 = vmatpush1.bf16.msra.mxu0 0
        %833 = vmatprep.subr.bf16.mxu0 0
        %834 = vmatpush1.bf16.msra.mxu0 0
        %835 = vmatprep.subr.bf16.mxu0 0
        %836 = vmatpush1.bf16.msra.mxu0 0
        %837 = vmatprep.mubr.bf16.mxu0 0
        %838 = vmatmul.mubr.bf16.gmra.mrb[0].mxu0 %v374
        %v839 = vpop.f32.mrb[0].mxu0
        %v840 = vadd.f32 %v797, %v839
        %v841 = vpop.f32.mrb[0].mxu0
        %v842 = vadd.f32 %v799, %v841
        %v843 = vpop.f32.mrb[0].mxu0
        %v844 = vadd.f32 %v801, %v843
        %v845 = vpop.f32.mrb[0].mxu0
        %v846 = vadd.f32 %v803, %v845
        %847 = vdwg.mxu0
        %848 = vmatprep.subr.bf16.mxu0 0
        %849 = vmatpush1.bf16.msra.mxu0 %v620
        %850 = vmatprep.subr.bf16.mxu0 0
        %851 = vmatpush1.bf16.msra.mxu0 %v623
        %852 = vmatprep.subr.bf16.mxu0 0
        %853 = vmatpush1.bf16.msra.mxu0 %v626
        %854 = vmatprep.subr.bf16.mxu0 0
        %855 = vmatpush1.bf16.msra.mxu0 %v629
        %856 = vmatprep.subr.bf16.mxu0 0
        %857 = vmatpush1.bf16.msra.mxu0 %v632
        %858 = vmatprep.subr.bf16.mxu0 0
        %859 = vmatpush1.bf16.msra.mxu0 %v635
        %860 = vmatprep.subr.bf16.mxu0 0
        %861 = vmatpush1.bf16.msra.mxu0 %v638
        %862 = vmatprep.subr.bf16.mxu0 0
        %863 = vmatpush1.bf16.msra.mxu0 %v641
        %864 = vmatprep.subr.bf16.mxu0 0
        %865 = vmatpush1.bf16.msra.mxu0 %v644
        %866 = vmatprep.subr.bf16.mxu0 0
        %867 = vmatpush1.bf16.msra.mxu0 %v647
        %868 = vmatprep.subr.bf16.mxu0 0
        %869 = vmatpush1.bf16.msra.mxu0 %v650
        %870 = vmatprep.subr.bf16.mxu0 0
        %871 = vmatpush1.bf16.msra.mxu0 %v653
        %872 = vmatprep.subr.bf16.mxu0 0
        %873 = vmatpush1.bf16.msra.mxu0 %v656
        %874 = vmatprep.subr.bf16.mxu0 0
        %875 = vmatpush1.bf16.msra.mxu0 %v659
        %876 = vmatprep.subr.bf16.mxu0 0
        %877 = vmatpush1.bf16.msra.mxu0 %v662
        %878 = vmatprep.subr.bf16.mxu0 0
        %879 = vmatpush1.bf16.msra.mxu0 %v665
        %880 = vmatprep.mubr.bf16.mxu0 %v373
        %881 = vmatmul.mubr.bf16.gmra.mrb[0].mxu0 %v372
        %v882 = vpop.f32.mrb[0].mxu0
        %v883 = vadd.f32 0.0, %v882
        %v884 = vpop.f32.mrb[0].mxu0
        %v885 = vpop.f32.mrb[0].mxu0
        %v886 = vadd.f32 0.0, %v885
        %v887 = vpop.f32.mrb[0].mxu0
        %888 = vdwg.mxu0
        %889 = vmatprep.subr.bf16.mxu0 0
        %890 = vmatpush1.bf16.msra.mxu0 %v668
        %891 = vmatprep.subr.bf16.mxu0 0
        %892 = vmatpush1.bf16.msra.mxu0 %v671
        %893 = vmatprep.subr.bf16.mxu0 0
        %894 = vmatpush1.bf16.msra.mxu0 %v674
        %895 = vmatprep.subr.bf16.mxu0 0
        %896 = vmatpush1.bf16.msra.mxu0 %v677
        %897 = vmatprep.subr.bf16.mxu0 0
        %898 = vmatpush1.bf16.msra.mxu0 %v680
        %899 = vmatprep.subr.bf16.mxu0 0
        %900 = vmatpush1.bf16.msra.mxu0 %v683
        %901 = vmatprep.subr.bf16.mxu0 0
        %902 = vmatpush1.bf16.msra.mxu0 %v686
        %903 = vmatprep.subr.bf16.mxu0 0
        %904 = vmatpush1.bf16.msra.mxu0 %v689
        %905 = vmatprep.subr.bf16.mxu0 0
        %906 = vmatpush1.bf16.msra.mxu0 0
        %907 = vmatprep.subr.bf16.mxu0 0
        %908 = vmatpush1.bf16.msra.mxu0 0
        %909 = vmatprep.subr.bf16.mxu0 0
        %910 = vmatpush1.bf16.msra.mxu0 0
        %911 = vmatprep.subr.bf16.mxu0 0
        %912 = vmatpush1.bf16.msra.mxu0 0
        %913 = vmatprep.subr.bf16.mxu0 0
        %914 = vmatpush1.bf16.msra.mxu0 0
        %915 = vmatprep.subr.bf16.mxu0 0
        %916 = vmatpush1.bf16.msra.mxu0 0
        %917 = vmatprep.subr.bf16.mxu0 0
        %918 = vmatpush1.bf16.msra.mxu0 0
        %919 = vmatprep.subr.bf16.mxu0 0
        %920 = vmatpush1.bf16.msra.mxu0 0
        %921 = vmatprep.mubr.bf16.mxu0 0
        %922 = vmatmul.mubr.bf16.gmra.mrb[0].mxu0 %v374
        %v923 = vpop.f32.mrb[0].mxu0
        %v924 = vadd.f32 %v883, %v923
        %v925 = vpop.f32.mrb[0].mxu0
        %v926 = vpop.f32.mrb[0].mxu0
        %v927 = vadd.f32 %v886, %v926
        %v928 = vpop.f32.mrb[0].mxu0
        %929 = vdwg.mxu0
        %v930 = vadd.f32 %v256, %v840
        %v931 = vadd.f32 %v257, %v842
        %v932 = vadd.f32 %v258, %v924
        %v933 = vadd.f32 %v259, %v844
        %v934 = vadd.f32 %v260, %v846
        %v935 = vadd.f32 %v261, %v927
        %936 = vst [vmem:[%s4] sm:$0xff] %v930
        %937 = vst [vmem:[%s4 + $0x8] sm:$0xff] %v931
        %vm938 = vcmask 261120
        %939 = vst.msk [vmem:[%s4 + $0x10] sm:$0xff] %vm938, %v932
        %940 = vst [vmem:[%s4 + $0x18] sm:$0xff] %v933
        %941 = vst [vmem:[%s4 + $0x20] sm:$0xff] %v934
        %942 = vst.msk [vmem:[%s4 + $0x28] sm:$0xff] %vm938, %v935
        %p943 = scmp.eq.s32.totalorder %s15, 2
        // Predicated region
        $region67: #{generator_forward.5} parent=57 // pred_check
          %p944 = pneg %p943
        $region68: #{generator_forward.5} parent=57 // pred_check_branch
          %946 = sbr.rel (%p944) target = $region70
        $region69: #{generator_forward.5} parent=57 // pred_region
          %v947 = vld [vmem:[%s4] sm:$0xff]
          %v948 = vld [vmem:[%s4 + $0x8] sm:$0xff]
          %v949 = vld [vmem:[%s4 + $0x10] sm:$0xff]
          %v950 = vld [vmem:[%s4 + $0x18] sm:$0xff]
          %v951 = vld [vmem:[%s4 + $0x20] sm:$0xff]
          %v952 = vld [vmem:[%s4 + $0x28] sm:$0xff]
          %v953 = vadd.f32 %v947, %v948
          %v954 = vsel %vm938, %v949, 0.0
          %v955 = vadd.f32 %v953, %v954
          %956 = vadd.xlane.f32.xlu0 %v955
          %v957 = vpop.xlane.xlu0 %956
          %v958 = vadd.f32 %v950, %v951
          %v959 = vsel %vm938, %v952, 0.0
          %v960 = vadd.f32 %v958, %v959
          %961 = vadd.xlane.f32.xlu0 %v960
          %v962 = vpop.xlane.xlu0 %961
          %v963 = vrcp.pop 288.0
          %v964 = vmul.f32 %v957, %v963
          %v965 = vmul.f32 %v962, %v963
          %v966 = vmul.f32 %v947, %v947
          %v967 = vmul.f32 %v948, %v948
          %v968 = vmul.f32 %v949, %v949
          %v969 = vmul.f32 %v950, %v950
          %v970 = vmul.f32 %v951, %v951
          %v971 = vmul.f32 %v952, %v952
          %v972 = vadd.f32 %v966, %v967
          %v973 = vsel %vm938, %v968, 0.0
          %v974 = vadd.f32 %v972, %v973
          %975 = vadd.xlane.f32.xlu0 %v974
          %v976 = vpop.xlane.xlu0 %975
          %v977 = vadd.f32 %v969, %v970
          %v978 = vsel %vm938, %v971, 0.0
          %v979 = vadd.f32 %v977, %v978
          %980 = vadd.xlane.f32.xlu0 %v979
          %v981 = vpop.xlane.xlu0 %980
          %v982 = vmul.f32 %v976, %v963
          %v983 = vmul.f32 %v981, %v963
          %v984 = vmul.f32 %v964, %v964
          %v985 = vmul.f32 %v965, %v965
          %v986 = vsub.f32 %v982, %v984
          %v987 = vsub.f32 %v983, %v985
          %v988 = vadd.f32 %v986, 1e-05
          %v989 = vadd.f32 %v987, 1e-05
          %v990 = vrsqrt.pop %v988
          %v991 = vrsqrt.pop %v989
          %v992 = vld [vmem:[%s2] sm:$0xff]
          %v993 = vld [vmem:[%s2 + $0x8] sm:$0xff]
          %v994 = vmul.f32 %v990, %v992
          %v995 = vmul.f32 %v991, %v993
          %v996 = vsub.f32 %v947, %v964
          %v997 = vsub.f32 %v948, %v964
          %v998 = vsub.f32 %v949, %v964
          %v999 = vsub.f32 %v950, %v965
          %v1000 = vsub.f32 %v951, %v965
          %v1001 = vsub.f32 %v952, %v965
          %1003 = vset.pattern.permute.xlu0 0
          %1004 = vperm.xlu0 %1003, %v994
          %v1005 = vpop.permute.xlu0 %1004
          %1008 = vset.pattern.permute.xlu0 0
          %1009 = vperm.xlu0 %1008, %v995
          %v1010 = vpop.permute.xlu0 %1009
          %v1012 = vmul.f32 %v996, %v1005
          %v1013 = vmul.f32 %v997, %v1005
          %v1014 = vmul.f32 %v998, %v1005
          %v1015 = vmul.f32 %v999, %v1010
          %v1016 = vmul.f32 %v1000, %v1010
          %v1017 = vmul.f32 %v1001, %v1010
          %v1018 = vld [vmem:[%s3] sm:$0xff]
          %v1019 = vld [vmem:[%s3 + $0x8] sm:$0xff]
          %1021 = vset.pattern.permute.xlu0 0
          %1022 = vperm.xlu0 %1021, %v1018
          %v1023 = vpop.permute.xlu0 %1022
          %1026 = vset.pattern.permute.xlu0 0
          %1027 = vperm.xlu0 %1026, %v1019
          %v1028 = vpop.permute.xlu0 %1027
          %v1030 = vadd.f32 %v1012, %v1023
          %v1031 = vadd.f32 %v1013, %v1023
          %v1032 = vadd.f32 %v1014, %v1023
          %v1033 = vadd.f32 %v1015, %v1028
          %v1034 = vadd.f32 %v1016, %v1028
          %v1035 = vadd.f32 %v1017, %v1028
          %v1036 = vmax.f32 %v1030, 0.0
          %v1037 = vmax.f32 %v1031, 0.0
          %v1038 = vmax.f32 %v1032, 0.0
          %v1039 = vmax.f32 %v1033, 0.0
          %v1040 = vmax.f32 %v1034, 0.0
          %v1041 = vmax.f32 %v1035, 0.0
          %1042 = vst [vmem:[%s4] sm:$0xff] %v1036
          %1043 = vst [vmem:[%s4 + $0x8] sm:$0xff] %v1037
          %1044 = vst.msk [vmem:[%s4 + $0x10] sm:$0xff] %vm938, %v1038
          %1045 = vst [vmem:[%s4 + $0x18] sm:$0xff] %v1039
          %1046 = vst [vmem:[%s4 + $0x20] sm:$0xff] %v1040
          %1047 = vst.msk [vmem:[%s4 + $0x28] sm:$0xff] %vm938, %v1041
        $region70: #{generator_forward.5} parent=57 // pred_fallthru
          _
        // Predicated region
        $region71: #{generator_forward.5} parent=57 // pred_check
          %p1048 = pneg %p122
        $region72: #{generator_forward.5} parent=57 // pred_check_branch
          %1050 = sbr.rel (%p1048) target = $region74
        $region73: #{generator_forward.5} parent=57 // pred_region
          _
        $region74: #{generator_forward.5} parent=57 // pred_fallthru
          _
        // Predicated region
        $region75: #{generator_forward.5} parent=57 // pred_check
          %p1051 = pneg %p122
        $region76: #{generator_forward.5} parent=57 // pred_check_branch
          %1053 = sbr.rel (%p1051) target = $region78
        $region77: #{generator_forward.5} parent=57 // pred_region
          _
        $region78: #{generator_forward.5} parent=57 // pred_fallthru
          _
      $region58: #{generator_forward.5} parent=5 // pred_fallthru
        _
      %p1054 = scmp.le.s32.totalorder 2, %s10
      // Predicated region
      $region79: #{generator_forward.5} parent=5 // pred_check
        %p1055 = pneg %p1054
      $region80: #{generator_forward.5} parent=5 // pred_check_branch
        %1057 = sbr.rel (%p1055) target = $region82
      $region81: #{generator_forward.5} parent=5 // pred_region
        %s1058 = ssub.s32 %s10, 2
      $region82: #{generator_forward.5} parent=5 // pred_fallthru
        _
    $region6: #{generator_forward.5} parent=1 // loop_footer
      %s14 = sadd.s32 1, %s10
    $region7: #{generator_forward.5} parent=1 // loop_footer_branch
      %9 = sbr.rel target = $region3
    $region8: #{generator_forward.5} parent=1 // loop_exit
      _

// kernel: generator_forward.6
$region0: #{generator_forward.6}
  #allocation0 [shape = 'u32[]', space=smem, size = 0x4, offset = 0x4, fixed_abs, tag = 'smem constant byte address 0x4 - core index']
  #allocation1 [shape = 'u32[144,128]{1,0:T(1,128)}', space=vmem, size = 0x12000, scoped, tag = 'internal scratch']
  %s0 = inlined_call_operand.vmem [shape: bf16[8,256], index: 0, kind: input, shape index: {}]
  %s1 = inlined_call_operand.vmem [shape: bf16[256,1352], index: 1, kind: input, shape index: {}]
  %s2 = inlined_call_operand.vmem [shape: f32[8,1], index: 2, kind: input, shape index: {}]
  %s3 = inlined_call_operand.vmem [shape: f32[8,1], index: 3, kind: input, shape index: {}]
  %s4 = inlined_call_operand.vmem [shape: f32[8,1352], index: 4, kind: output, shape index: {}]
  %s5 = sld [smem:[#allocation0]]
  $region34: #{generator_forward.6} parent=0
    _
  %s7 = ssub.s32 1, %s5
  %s8 = scalar_select 0, %s7, %s5
  // Predicated region
  $region2: #{generator_forward.6} parent=0 // pred_check
    _
  $region3: #{generator_forward.6} parent=0 // pred_check_branch
    %10 = sbr.rel (0) target = $region5
  $region4: #{generator_forward.6} parent=0 // pred_region
    _
  $region5: #{generator_forward.6} parent=0 // pred_fallthru
    _
  // Predicated region
  $region6: #{generator_forward.6} parent=0 // pred_check
    _
  $region7: #{generator_forward.6} parent=0 // pred_check_branch
    %12 = sbr.rel (0) target = $region9
  $region8: #{generator_forward.6} parent=0 // pred_region
    _
  $region9: #{generator_forward.6} parent=0 // pred_fallthru
    _
  // Predicated region
  $region10: #{generator_forward.6} parent=0 // pred_check
    _
  $region11: #{generator_forward.6} parent=0 // pred_check_branch
    %14 = sbr.rel (0) target = $region13
  $region12: #{generator_forward.6} parent=0 // pred_region
    _
  $region13: #{generator_forward.6} parent=0 // pred_fallthru
    _
  // Predicated region
  $region14: #{generator_forward.6} parent=0 // pred_check
    _
  $region15: #{generator_forward.6} parent=0 // pred_check_branch
    %16 = sbr.rel (0) target = $region17
  $region16: #{generator_forward.6} parent=0 // pred_region
    _
  $region17: #{generator_forward.6} parent=0 // pred_fallthru
    _
  %p18 = scmp.eq.s32.totalorder 0, 0
  // Predicated region
  $region18: #{generator_forward.6} parent=0 // pred_check
    %p19 = pneg %p18
  $region19: #{generator_forward.6} parent=0 // pred_check_branch
    %21 = sbr.rel (%p19) target = $region21
  $region20: #{generator_forward.6} parent=0 // pred_region
    %22 = vst [vmem:[%s4] sm:$0xff] 0.0
    %23 = vst [vmem:[%s4 + $0x8] sm:$0xff] 0.0
    %24 = vst [vmem:[%s4 + $0x10] sm:$0xff] 0.0
    %25 = vst [vmem:[%s4 + $0x18] sm:$0xff] 0.0
    %26 = vst [vmem:[%s4 + $0x20] sm:$0xff] 0.0
    %27 = vst [vmem:[%s4 + $0x28] sm:$0xff] 0.0
    %28 = vst [vmem:[%s4 + $0x30] sm:$0xff] 0.0
    %29 = vst [vmem:[%s4 + $0x38] sm:$0xff] 0.0
    %30 = vst [vmem:[%s4 + $0x40] sm:$0xff] 0.0
    %31 = vst [vmem:[%s4 + $0x48] sm:$0xff] 0.0
    %vm32 = vcmask 588800
    %33 = vst.msk [vmem:[%s4 + $0x50] sm:$0xff] %vm32, 0.0
  $region21: #{generator_forward.6} parent=0 // pred_fallthru
    _
  %v34 = vld [vmem:[%s4] sm:$0xff]
  %v35 = vld [vmem:[%s4 + $0x8] sm:$0xff]
  %v36 = vld [vmem:[%s4 + $0x10] sm:$0xff]
  %v37 = vld [vmem:[%s4 + $0x18] sm:$0xff]
  %v38 = vld [vmem:[%s4 + $0x20] sm:$0xff]
  %v39 = vld [vmem:[%s4 + $0x28] sm:$0xff]
  %v40 = vld [vmem:[%s4 + $0x30] sm:$0xff]
  %v41 = vld [vmem:[%s4 + $0x38] sm:$0xff]
  %v42 = vld [vmem:[%s4 + $0x40] sm:$0xff]
  %v43 = vld [vmem:[%s4 + $0x48] sm:$0xff]
  %v44 = vld [vmem:[%s4 + $0x50] sm:$0xff]
  %v45 = vld [vmem:[%s0] sm:$0xff]
  %v46 = vld [vmem:[%s1] sm:$0xff]
  %v47 = vld [vmem:[%s1 + $0x8] sm:$0xff]
  %v48 = vld [vmem:[%s1 + $0x10] sm:$0xff]
  %v49 = vld [vmem:[%s1 + $0x18] sm:$0xff]
  %v50 = vld [vmem:[%s1 + $0x20] sm:$0xff]
  %v51 = vld [vmem:[%s1 + $0x28] sm:$0xf]
  %v52 = vld [vmem:[%s1 + $0x2c] sm:$0xff]
  %v53 = vld [vmem:[%s1 + $0x34] sm:$0xff]
  %v54 = vld [vmem:[%s1 + $0x3c] sm:$0xff]
  %v55 = vld [vmem:[%s1 + $0x44] sm:$0xff]
  %v56 = vld [vmem:[%s1 + $0x4c] sm:$0xff]
  %v57 = vld [vmem:[%s1 + $0x54] sm:$0xf]
  %v58 = vld [vmem:[%s1 + $0x58] sm:$0xff]
  %v59 = vld [vmem:[%s1 + $0x60] sm:$0xff]
  %v60 = vld [vmem:[%s1 + $0x68] sm:$0xff]
  %v61 = vld [vmem:[%s1 + $0x70] sm:$0xff]
  %v62 = vld [vmem:[%s1 + $0x78] sm:$0xff]
  %v63 = vld [vmem:[%s1 + $0x80] sm:$0xf]
  %v64 = vld [vmem:[%s1 + $0x84] sm:$0xff]
  %v65 = vld [vmem:[%s1 + $0x8c] sm:$0xff]
  %v66 = vld [vmem:[%s1 + $0x94] sm:$0xff]
  %v67 = vld [vmem:[%s1 + $0x9c] sm:$0xff]
  %v68 = vld [vmem:[%s1 + $0xa4] sm:$0xff]
  %v69 = vld [vmem:[%s1 + $0xac] sm:$0xf]
  %v70 = vld [vmem:[%s1 + $0xb0] sm:$0xff]
  %v71 = vld [vmem:[%s1 + $0xb8] sm:$0xff]
  %v72 = vld [vmem:[%s1 + $0xc0] sm:$0xff]
  %v73 = vld [vmem:[%s1 + $0xc8] sm:$0xff]
  %v74 = vld [vmem:[%s1 + $0xd0] sm:$0xff]
  %v75 = vld [vmem:[%s1 + $0xd8] sm:$0xf]
  %v76 = vld [vmem:[%s1 + $0xdc] sm:$0xff]
  %v77 = vld [vmem:[%s1 + $0xe4] sm:$0xff]
  %v78 = vld [vmem:[%s1 + $0xec] sm:$0xff]
  %v79 = vld [vmem:[%s1 + $0xf4] sm:$0xff]
  %v80 = vld [vmem:[%s1 + $0xfc] sm:$0xff]
  %v81 = vld [vmem:[%s1 + $0x104] sm:$0xf]
  %v82 = vld [vmem:[%s1 + $0x108] sm:$0xff]
  %v83 = vld [vmem:[%s1 + $0x110] sm:$0xff]
  %v84 = vld [vmem:[%s1 + $0x118] sm:$0xff]
  %v85 = vld [vmem:[%s1 + $0x120] sm:$0xff]
  %v86 = vld [vmem:[%s1 + $0x128] sm:$0xff]
  %v87 = vld [vmem:[%s1 + $0x130] sm:$0xf]
  %v88 = vld [vmem:[%s1 + $0x134] sm:$0xff]
  %v89 = vld [vmem:[%s1 + $0x13c] sm:$0xff]
  %v90 = vld [vmem:[%s1 + $0x144] sm:$0xff]
  %v91 = vld [vmem:[%s1 + $0x14c] sm:$0xff]
  %v92 = vld [vmem:[%s1 + $0x154] sm:$0xff]
  %v93 = vld [vmem:[%s1 + $0x15c] sm:$0xf]
  %v94 = vld [vmem:[%s1 + $0x160] sm:$0xff]
  %v95 = vld [vmem:[%s1 + $0x168] sm:$0xff]
  %v96 = vld [vmem:[%s1 + $0x170] sm:$0xff]
  %v97 = vld [vmem:[%s1 + $0x178] sm:$0xff]
  %v98 = vld [vmem:[%s1 + $0x180] sm:$0xff]
  %v99 = vld [vmem:[%s1 + $0x188] sm:$0xf]
  %v100 = vld [vmem:[%s1 + $0x18c] sm:$0xff]
  %v101 = vld [vmem:[%s1 + $0x194] sm:$0xff]
  %v102 = vld [vmem:[%s1 + $0x19c] sm:$0xff]
  %v103 = vld [vmem:[%s1 + $0x1a4] sm:$0xff]
  %v104 = vld [vmem:[%s1 + $0x1ac] sm:$0xff]
  %v105 = vld [vmem:[%s1 + $0x1b4] sm:$0xf]
  %v106 = vld [vmem:[%s1 + $0x1b8] sm:$0xff]
  %v107 = vld [vmem:[%s1 + $0x1c0] sm:$0xff]
  %v108 = vld [vmem:[%s1 + $0x1c8] sm:$0xff]
  %v109 = vld [vmem:[%s1 + $0x1d0] sm:$0xff]
  %v110 = vld [vmem:[%s1 + $0x1d8] sm:$0xff]
  %v111 = vld [vmem:[%s1 + $0x1e0] sm:$0xf]
  %v112 = vld [vmem:[%s1 + $0x1e4] sm:$0xff]
  %v113 = vld [vmem:[%s1 + $0x1ec] sm:$0xff]
  %v114 = vld [vmem:[%s1 + $0x1f4] sm:$0xff]
  %v115 = vld [vmem:[%s1 + $0x1fc] sm:$0xff]
  %v116 = vld [vmem:[%s1 + $0x204] sm:$0xff]
  %v117 = vld [vmem:[%s1 + $0x20c] sm:$0xf]
  %v118 = vld [vmem:[%s1 + $0x210] sm:$0xff]
  %v119 = vld [vmem:[%s1 + $0x218] sm:$0xff]
  %v120 = vld [vmem:[%s1 + $0x220] sm:$0xff]
  %v121 = vld [vmem:[%s1 + $0x228] sm:$0xff]
  %v122 = vld [vmem:[%s1 + $0x230] sm:$0xff]
  %v123 = vld [vmem:[%s1 + $0x238] sm:$0xf]
  %v124 = vld [vmem:[%s1 + $0x23c] sm:$0xff]
  %v125 = vld [vmem:[%s1 + $0x244] sm:$0xff]
  %v126 = vld [vmem:[%s1 + $0x24c] sm:$0xff]
  %v127 = vld [vmem:[%s1 + $0x254] sm:$0xff]
  %v128 = vld [vmem:[%s1 + $0x25c] sm:$0xff]
  %v129 = vld [vmem:[%s1 + $0x264] sm:$0xf]
  %v130 = vld [vmem:[%s1 + $0x268] sm:$0xff]
  %v131 = vld [vmem:[%s1 + $0x270] sm:$0xff]
  %v132 = vld [vmem:[%s1 + $0x278] sm:$0xff]
  %v133 = vld [vmem:[%s1 + $0x280] sm:$0xff]
  %v134 = vld [vmem:[%s1 + $0x288] sm:$0xff]
  %v135 = vld [vmem:[%s1 + $0x290] sm:$0xf]
  %v136 = vld [vmem:[%s1 + $0x294] sm:$0xff]
  %v137 = vld [vmem:[%s1 + $0x29c] sm:$0xff]
  %v138 = vld [vmem:[%s1 + $0x2a4] sm:$0xff]
  %v139 = vld [vmem:[%s1 + $0x2ac] sm:$0xff]
  %v140 = vld [vmem:[%s1 + $0x2b4] sm:$0xff]
  %v141 = vld [vmem:[%s1 + $0x2bc] sm:$0xf]
  %v142 = vld [vmem:[%s1 + $0x2c0] sm:$0xff]
  %v143 = vld [vmem:[%s1 + $0x2c8] sm:$0xff]
  %v144 = vld [vmem:[%s1 + $0x2d0] sm:$0xff]
  %v145 = vld [vmem:[%s1 + $0x2d8] sm:$0xff]
  %v146 = vld [vmem:[%s1 + $0x2e0] sm:$0xff]
  %v147 = vld [vmem:[%s1 + $0x2e8] sm:$0xf]
  %v148 = vld [vmem:[%s1 + $0x2ec] sm:$0xff]
  %v149 = vld [vmem:[%s1 + $0x2f4] sm:$0xff]
  %v150 = vld [vmem:[%s1 + $0x2fc] sm:$0xff]
  %v151 = vld [vmem:[%s1 + $0x304] sm:$0xff]
  %v152 = vld [vmem:[%s1 + $0x30c] sm:$0xff]
  %v153 = vld [vmem:[%s1 + $0x314] sm:$0xf]
  %v154 = vld [vmem:[%s1 + $0x318] sm:$0xff]
  %v155 = vld [vmem:[%s1 + $0x320] sm:$0xff]
  %v156 = vld [vmem:[%s1 + $0x328] sm:$0xff]
  %v157 = vld [vmem:[%s1 + $0x330] sm:$0xff]
  %v158 = vld [vmem:[%s1 + $0x338] sm:$0xff]
  %v159 = vld [vmem:[%s1 + $0x340] sm:$0xf]
  %v160 = vld [vmem:[%s1 + $0x344] sm:$0xff]
  %v161 = vld [vmem:[%s1 + $0x34c] sm:$0xff]
  %v162 = vld [vmem:[%s1 + $0x354] sm:$0xff]
  %v163 = vld [vmem:[%s1 + $0x35c] sm:$0xff]
  %v164 = vld [vmem:[%s1 + $0x364] sm:$0xff]
  %v165 = vld [vmem:[%s1 + $0x36c] sm:$0xf]
  %v166 = vld [vmem:[%s1 + $0x370] sm:$0xff]
  %v167 = vld [vmem:[%s1 + $0x378] sm:$0xff]
  %v168 = vld [vmem:[%s1 + $0x380] sm:$0xff]
  %v169 = vld [vmem:[%s1 + $0x388] sm:$0xff]
  %v170 = vld [vmem:[%s1 + $0x390] sm:$0xff]
  %v171 = vld [vmem:[%s1 + $0x398] sm:$0xf]
  %v172 = vld [vmem:[%s1 + $0x39c] sm:$0xff]
  %v173 = vld [vmem:[%s1 + $0x3a4] sm:$0xff]
  %v174 = vld [vmem:[%s1 + $0x3ac] sm:$0xff]
  %v175 = vld [vmem:[%s1 + $0x3b4] sm:$0xff]
  %v176 = vld [vmem:[%s1 + $0x3bc] sm:$0xff]
  %v177 = vld [vmem:[%s1 + $0x3c4] sm:$0xf]
  %v178 = vld [vmem:[%s1 + $0x3c8] sm:$0xff]
  %v179 = vld [vmem:[%s1 + $0x3d0] sm:$0xff]
  %v180 = vld [vmem:[%s1 + $0x3d8] sm:$0xff]
  %v181 = vld [vmem:[%s1 + $0x3e0] sm:$0xff]
  %v182 = vld [vmem:[%s1 + $0x3e8] sm:$0xff]
  %v183 = vld [vmem:[%s1 + $0x3f0] sm:$0xf]
  %v184 = vld [vmem:[%s1 + $0x3f4] sm:$0xff]
  %v185 = vld [vmem:[%s1 + $0x3fc] sm:$0xff]
  %v186 = vld [vmem:[%s1 + $0x404] sm:$0xff]
  %v187 = vld [vmem:[%s1 + $0x40c] sm:$0xff]
  %v188 = vld [vmem:[%s1 + $0x414] sm:$0xff]
  %v189 = vld [vmem:[%s1 + $0x41c] sm:$0xf]
  %v190 = vld [vmem:[%s1 + $0x420] sm:$0xff]
  %v191 = vld [vmem:[%s1 + $0x428] sm:$0xff]
  %v192 = vld [vmem:[%s1 + $0x430] sm:$0xff]
  %v193 = vld [vmem:[%s1 + $0x438] sm:$0xff]
  %v194 = vld [vmem:[%s1 + $0x440] sm:$0xff]
  %v195 = vld [vmem:[%s1 + $0x448] sm:$0xf]
  %v196 = vld [vmem:[%s1 + $0x44c] sm:$0xff]
  %v197 = vld [vmem:[%s1 + $0x454] sm:$0xff]
  %v198 = vld [vmem:[%s1 + $0x45c] sm:$0xff]
  %v199 = vld [vmem:[%s1 + $0x464] sm:$0xff]
  %v200 = vld [vmem:[%s1 + $0x46c] sm:$0xff]
  %v201 = vld [vmem:[%s1 + $0x474] sm:$0xf]
  %v202 = vld [vmem:[%s1 + $0x478] sm:$0xff]
  %v203 = vld [vmem:[%s1 + $0x480] sm:$0xff]
  %v204 = vld [vmem:[%s1 + $0x488] sm:$0xff]
  %v205 = vld [vmem:[%s1 + $0x490] sm:$0xff]
  %v206 = vld [vmem:[%s1 + $0x498] sm:$0xff]
  %v207 = vld [vmem:[%s1 + $0x4a0] sm:$0xf]
  %v208 = vld [vmem:[%s1 + $0x4a4] sm:$0xff]
  %v209 = vld [vmem:[%s1 + $0x4ac] sm:$0xff]
  %v210 = vld [vmem:[%s1 + $0x4b4] sm:$0xff]
  %v211 = vld [vmem:[%s1 + $0x4bc] sm:$0xff]
  %v212 = vld [vmem:[%s1 + $0x4c4] sm:$0xff]
  %v213 = vld [vmem:[%s1 + $0x4cc] sm:$0xf]
  %v214 = vld [vmem:[%s1 + $0x4d0] sm:$0xff]
  %v215 = vld [vmem:[%s1 + $0x4d8] sm:$0xff]
  %v216 = vld [vmem:[%s1 + $0x4e0] sm:$0xff]
  %v217 = vld [vmem:[%s1 + $0x4e8] sm:$0xff]
  %v218 = vld [vmem:[%s1 + $0x4f0] sm:$0xff]
  %v219 = vld [vmem:[%s1 + $0x4f8] sm:$0xf]
  %v220 = vld [vmem:[%s1 + $0x4fc] sm:$0xff]
  %v221 = vld [vmem:[%s1 + $0x504] sm:$0xff]
  %v222 = vld [vmem:[%s1 + $0x50c] sm:$0xff]
  %v223 = vld [vmem:[%s1 + $0x514] sm:$0xff]
  %v224 = vld [vmem:[%s1 + $0x51c] sm:$0xff]
  %v225 = vld [vmem:[%s1 + $0x524] sm:$0xf]
  %v226 = vld [vmem:[%s1 + $0x528] sm:$0xff]
  %v227 = vld [vmem:[%s1 + $0x530] sm:$0xff]
  %v228 = vld [vmem:[%s1 + $0x538] sm:$0xff]
  %v229 = vld [vmem:[%s1 + $0x540] sm:$0xff]
  %v230 = vld [vmem:[%s1 + $0x548] sm:$0xff]
  %v231 = vld [vmem:[%s1 + $0x550] sm:$0xf]
  %v232 = vld [vmem:[%s1 + $0x554] sm:$0xff]
  %v233 = vld [vmem:[%s1 + $0x55c] sm:$0xff]
  %v234 = vld [vmem:[%s1 + $0x564] sm:$0xff]
  %v235 = vld [vmem:[%s1 + $0x56c] sm:$0xff]
  %v236 = vld [vmem:[%s1 + $0x574] sm:$0xff]
  %v237 = vld [vmem:[%s1 + $0x57c] sm:$0xf]
  %v239 = vunpack.c.l.b16 %v45
  %v240 = vunpack.c.h.b16 %v45
  %v241 = vpack.c.b16 %v239, %v239
  %v242 = vpack.c.b16 %v240, %v240
  %v437 = vunpack.c.l.b16 %v46
  %v438 = vunpack.c.h.b16 %v46
  %v439 = vunpack.c.l.b16 %v47
  %v440 = vunpack.c.h.b16 %v47
  %v441 = vunpack.c.l.b16 %v48
  %v442 = vunpack.c.h.b16 %v48
  %v443 = vunpack.c.l.b16 %v49
  %v444 = vunpack.c.h.b16 %v49
  %v445 = vunpack.c.l.b16 %v50
  %v446 = vunpack.c.h.b16 %v50
  %v447 = vunpack.c.l.b16 %v51
  %v448 = vunpack.c.l.b16 %v52
  %v449 = vunpack.c.h.b16 %v52
  %v450 = vunpack.c.l.b16 %v53
  %v451 = vunpack.c.h.b16 %v53
  %v452 = vunpack.c.l.b16 %v54
  %v453 = vunpack.c.h.b16 %v54
  %v454 = vunpack.c.l.b16 %v55
  %v455 = vunpack.c.h.b16 %v55
  %v456 = vunpack.c.l.b16 %v56
  %v457 = vunpack.c.h.b16 %v56
  %v458 = vunpack.c.l.b16 %v57
  %v459 = vunpack.c.l.b16 %v58
  %v460 = vunpack.c.h.b16 %v58
  %v461 = vunpack.c.l.b16 %v59
  %v462 = vunpack.c.h.b16 %v59
  %v463 = vunpack.c.l.b16 %v60
  %v464 = vunpack.c.h.b16 %v60
  %v465 = vunpack.c.l.b16 %v61
  %v466 = vunpack.c.h.b16 %v61
  %v467 = vunpack.c.l.b16 %v62
  %v468 = vunpack.c.h.b16 %v62
  %v469 = vunpack.c.l.b16 %v63
  %v470 = vunpack.c.l.b16 %v64
  %v471 = vunpack.c.h.b16 %v64
  %v472 = vunpack.c.l.b16 %v65
  %v473 = vunpack.c.h.b16 %v65
  %v474 = vunpack.c.l.b16 %v66
  %v475 = vunpack.c.h.b16 %v66
  %v476 = vunpack.c.l.b16 %v67
  %v477 = vunpack.c.h.b16 %v67
  %v478 = vunpack.c.l.b16 %v68
  %v479 = vunpack.c.h.b16 %v68
  %v480 = vunpack.c.l.b16 %v69
  %v481 = vunpack.c.l.b16 %v70
  %v482 = vunpack.c.h.b16 %v70
  %v483 = vunpack.c.l.b16 %v71
  %v484 = vunpack.c.h.b16 %v71
  %v485 = vunpack.c.l.b16 %v72
  %v486 = vunpack.c.h.b16 %v72
  %v487 = vunpack.c.l.b16 %v73
  %v488 = vunpack.c.h.b16 %v73
  %v489 = vunpack.c.l.b16 %v74
  %v490 = vunpack.c.h.b16 %v74
  %v491 = vunpack.c.l.b16 %v75
  %v492 = vunpack.c.l.b16 %v76
  %v493 = vunpack.c.h.b16 %v76
  %v494 = vunpack.c.l.b16 %v77
  %v495 = vunpack.c.h.b16 %v77
  %v496 = vunpack.c.l.b16 %v78
  %v497 = vunpack.c.h.b16 %v78
  %v498 = vunpack.c.l.b16 %v79
  %v499 = vunpack.c.h.b16 %v79
  %v500 = vunpack.c.l.b16 %v80
  %v501 = vunpack.c.h.b16 %v80
  %v502 = vunpack.c.l.b16 %v81
  %v503 = vunpack.c.l.b16 %v82
  %v504 = vunpack.c.h.b16 %v82
  %v505 = vunpack.c.l.b16 %v83
  %v506 = vunpack.c.h.b16 %v83
  %v507 = vunpack.c.l.b16 %v84
  %v508 = vunpack.c.h.b16 %v84
  %v509 = vunpack.c.l.b16 %v85
  %v510 = vunpack.c.h.b16 %v85
  %v511 = vunpack.c.l.b16 %v86
  %v512 = vunpack.c.h.b16 %v86
  %v513 = vunpack.c.l.b16 %v87
  %v514 = vunpack.c.l.b16 %v88
  %v515 = vunpack.c.h.b16 %v88
  %v516 = vunpack.c.l.b16 %v89
  %v517 = vunpack.c.h.b16 %v89
  %v518 = vunpack.c.l.b16 %v90
  %v519 = vunpack.c.h.b16 %v90
  %v520 = vunpack.c.l.b16 %v91
  %v521 = vunpack.c.h.b16 %v91
  %v522 = vunpack.c.l.b16 %v92
  %v523 = vunpack.c.h.b16 %v92
  %v524 = vunpack.c.l.b16 %v93
  %v525 = vunpack.c.l.b16 %v94
  %v526 = vunpack.c.h.b16 %v94
  %v527 = vunpack.c.l.b16 %v95
  %v528 = vunpack.c.h.b16 %v95
  %v529 = vunpack.c.l.b16 %v96
  %v530 = vunpack.c.h.b16 %v96
  %v531 = vunpack.c.l.b16 %v97
  %v532 = vunpack.c.h.b16 %v97
  %v533 = vunpack.c.l.b16 %v98
  %v534 = vunpack.c.h.b16 %v98
  %v535 = vunpack.c.l.b16 %v99
  %v536 = vunpack.c.l.b16 %v100
  %v537 = vunpack.c.h.b16 %v100
  %v538 = vunpack.c.l.b16 %v101
  %v539 = vunpack.c.h.b16 %v101
  %v540 = vunpack.c.l.b16 %v102
  %v541 = vunpack.c.h.b16 %v102
  %v542 = vunpack.c.l.b16 %v103
  %v543 = vunpack.c.h.b16 %v103
  %v544 = vunpack.c.l.b16 %v104
  %v545 = vunpack.c.h.b16 %v104
  %v546 = vunpack.c.l.b16 %v105
  %v547 = vunpack.c.l.b16 %v106
  %v548 = vunpack.c.h.b16 %v106
  %v549 = vunpack.c.l.b16 %v107
  %v550 = vunpack.c.h.b16 %v107
  %v551 = vunpack.c.l.b16 %v108
  %v552 = vunpack.c.h.b16 %v108
  %v553 = vunpack.c.l.b16 %v109
  %v554 = vunpack.c.h.b16 %v109
  %v555 = vunpack.c.l.b16 %v110
  %v556 = vunpack.c.h.b16 %v110
  %v557 = vunpack.c.l.b16 %v111
  %v558 = vunpack.c.l.b16 %v112
  %v559 = vunpack.c.h.b16 %v112
  %v560 = vunpack.c.l.b16 %v113
  %v561 = vunpack.c.h.b16 %v113
  %v562 = vunpack.c.l.b16 %v114
  %v563 = vunpack.c.h.b16 %v114
  %v564 = vunpack.c.l.b16 %v115
  %v565 = vunpack.c.h.b16 %v115
  %v566 = vunpack.c.l.b16 %v116
  %v567 = vunpack.c.h.b16 %v116
  %v568 = vunpack.c.l.b16 %v117
  %v569 = vunpack.c.l.b16 %v118
  %v570 = vunpack.c.h.b16 %v118
  %v571 = vunpack.c.l.b16 %v119
  %v572 = vunpack.c.h.b16 %v119
  %v573 = vunpack.c.l.b16 %v120
  %v574 = vunpack.c.h.b16 %v120
  %v575 = vunpack.c.l.b16 %v121
  %v576 = vunpack.c.h.b16 %v121
  %v577 = vunpack.c.l.b16 %v122
  %v578 = vunpack.c.h.b16 %v122
  %v579 = vunpack.c.l.b16 %v123
  %v580 = vunpack.c.l.b16 %v124
  %v581 = vunpack.c.h.b16 %v124
  %v582 = vunpack.c.l.b16 %v125
  %v583 = vunpack.c.h.b16 %v125
  %v584 = vunpack.c.l.b16 %v126
  %v585 = vunpack.c.h.b16 %v126
  %v586 = vunpack.c.l.b16 %v127
  %v587 = vunpack.c.h.b16 %v127
  %v588 = vunpack.c.l.b16 %v128
  %v589 = vunpack.c.h.b16 %v128
  %v590 = vunpack.c.l.b16 %v129
  %v591 = vunpack.c.l.b16 %v130
  %v592 = vunpack.c.h.b16 %v130
  %v593 = vunpack.c.l.b16 %v131
  %v594 = vunpack.c.h.b16 %v131
  %v595 = vunpack.c.l.b16 %v132
  %v596 = vunpack.c.h.b16 %v132
  %v597 = vunpack.c.l.b16 %v133
  %v598 = vunpack.c.h.b16 %v133
  %v599 = vunpack.c.l.b16 %v134
  %v600 = vunpack.c.h.b16 %v134
  %v601 = vunpack.c.l.b16 %v135
  %v602 = vunpack.c.l.b16 %v136
  %v603 = vunpack.c.h.b16 %v136
  %v604 = vunpack.c.l.b16 %v137
  %v605 = vunpack.c.h.b16 %v137
  %v606 = vunpack.c.l.b16 %v138
  %v607 = vunpack.c.h.b16 %v138
  %v608 = vunpack.c.l.b16 %v139
  %v609 = vunpack.c.h.b16 %v139
  %v610 = vunpack.c.l.b16 %v140
  %v611 = vunpack.c.h.b16 %v140
  %v612 = vunpack.c.l.b16 %v141
  %v613 = vunpack.c.l.b16 %v142
  %v614 = vunpack.c.h.b16 %v142
  %v615 = vunpack.c.l.b16 %v143
  %v616 = vunpack.c.h.b16 %v143
  %v617 = vunpack.c.l.b16 %v144
  %v618 = vunpack.c.h.b16 %v144
  %v619 = vunpack.c.l.b16 %v145
  %v620 = vunpack.c.h.b16 %v145
  %v621 = vunpack.c.l.b16 %v146
  %v622 = vunpack.c.h.b16 %v146
  %v623 = vunpack.c.l.b16 %v147
  %v624 = vunpack.c.l.b16 %v148
  %v625 = vunpack.c.h.b16 %v148
  %v626 = vunpack.c.l.b16 %v149
  %v627 = vunpack.c.h.b16 %v149
  %v628 = vunpack.c.l.b16 %v150
  %v629 = vunpack.c.h.b16 %v150
  %v630 = vunpack.c.l.b16 %v151
  %v631 = vunpack.c.h.b16 %v151
  %v632 = vunpack.c.l.b16 %v152
  %v633 = vunpack.c.h.b16 %v152
  %v634 = vunpack.c.l.b16 %v153
  %v635 = vunpack.c.l.b16 %v154
  %v636 = vunpack.c.h.b16 %v154
  %v637 = vunpack.c.l.b16 %v155
  %v638 = vunpack.c.h.b16 %v155
  %v639 = vunpack.c.l.b16 %v156
  %v640 = vunpack.c.h.b16 %v156
  %v641 = vunpack.c.l.b16 %v157
  %v642 = vunpack.c.h.b16 %v157
  %v643 = vunpack.c.l.b16 %v158
  %v644 = vunpack.c.h.b16 %v158
  %v645 = vunpack.c.l.b16 %v159
  %v646 = vunpack.c.l.b16 %v160
  %v647 = vunpack.c.h.b16 %v160
  %v648 = vunpack.c.l.b16 %v161
  %v649 = vunpack.c.h.b16 %v161
  %v650 = vunpack.c.l.b16 %v162
  %v651 = vunpack.c.h.b16 %v162
  %v652 = vunpack.c.l.b16 %v163
  %v653 = vunpack.c.h.b16 %v163
  %v654 = vunpack.c.l.b16 %v164
  %v655 = vunpack.c.h.b16 %v164
  %v656 = vunpack.c.l.b16 %v165
  %v657 = vunpack.c.l.b16 %v166
  %v658 = vunpack.c.h.b16 %v166
  %v659 = vunpack.c.l.b16 %v167
  %v660 = vunpack.c.h.b16 %v167
  %v661 = vunpack.c.l.b16 %v168
  %v662 = vunpack.c.h.b16 %v168
  %v663 = vunpack.c.l.b16 %v169
  %v664 = vunpack.c.h.b16 %v169
  %v665 = vunpack.c.l.b16 %v170
  %v666 = vunpack.c.h.b16 %v170
  %v667 = vunpack.c.l.b16 %v171
  %v668 = vunpack.c.l.b16 %v172
  %v669 = vunpack.c.h.b16 %v172
  %v670 = vunpack.c.l.b16 %v173
  %v671 = vunpack.c.h.b16 %v173
  %v672 = vunpack.c.l.b16 %v174
  %v673 = vunpack.c.h.b16 %v174
  %v674 = vunpack.c.l.b16 %v175
  %v675 = vunpack.c.h.b16 %v175
  %v676 = vunpack.c.l.b16 %v176
  %v677 = vunpack.c.h.b16 %v176
  %v678 = vunpack.c.l.b16 %v177
  %v679 = vunpack.c.l.b16 %v178
  %v680 = vunpack.c.h.b16 %v178
  %v681 = vunpack.c.l.b16 %v179
  %v682 = vunpack.c.h.b16 %v179
  %v683 = vunpack.c.l.b16 %v180
  %v684 = vunpack.c.h.b16 %v180
  %v685 = vunpack.c.l.b16 %v181
  %v686 = vunpack.c.h.b16 %v181
  %v687 = vunpack.c.l.b16 %v182
  %v688 = vunpack.c.h.b16 %v182
  %v689 = vunpack.c.l.b16 %v183
  %v690 = vunpack.c.l.b16 %v184
  %v691 = vunpack.c.h.b16 %v184
  %v692 = vunpack.c.l.b16 %v185
  %v693 = vunpack.c.h.b16 %v185
  %v694 = vunpack.c.l.b16 %v186
  %v695 = vunpack.c.h.b16 %v186
  %v696 = vunpack.c.l.b16 %v187
  %v697 = vunpack.c.h.b16 %v187
  %v698 = vunpack.c.l.b16 %v188
  %v699 = vunpack.c.h.b16 %v188
  %v700 = vunpack.c.l.b16 %v189
  %v701 = vunpack.c.l.b16 %v190
  %v702 = vunpack.c.h.b16 %v190
  %v703 = vunpack.c.l.b16 %v191
  %v704 = vunpack.c.h.b16 %v191
  %v705 = vunpack.c.l.b16 %v192
  %v706 = vunpack.c.h.b16 %v192
  %v707 = vunpack.c.l.b16 %v193
  %v708 = vunpack.c.h.b16 %v193
  %v709 = vunpack.c.l.b16 %v194
  %v710 = vunpack.c.h.b16 %v194
  %v711 = vunpack.c.l.b16 %v195
  %v712 = vunpack.c.l.b16 %v196
  %v713 = vunpack.c.h.b16 %v196
  %v714 = vunpack.c.l.b16 %v197
  %v715 = vunpack.c.h.b16 %v197
  %v716 = vunpack.c.l.b16 %v198
  %v717 = vunpack.c.h.b16 %v198
  %v718 = vunpack.c.l.b16 %v199
  %v719 = vunpack.c.h.b16 %v199
  %v720 = vunpack.c.l.b16 %v200
  %v721 = vunpack.c.h.b16 %v200
  %v722 = vunpack.c.l.b16 %v201
  %v723 = vunpack.c.l.b16 %v202
  %v724 = vunpack.c.h.b16 %v202
  %v725 = vunpack.c.l.b16 %v203
  %v726 = vunpack.c.h.b16 %v203
  %v727 = vunpack.c.l.b16 %v204
  %v728 = vunpack.c.h.b16 %v204
  %v729 = vunpack.c.l.b16 %v205
  %v730 = vunpack.c.h.b16 %v205
  %v731 = vunpack.c.l.b16 %v206
  %v732 = vunpack.c.h.b16 %v206
  %v733 = vunpack.c.l.b16 %v207
  %v734 = vunpack.c.l.b16 %v208
  %v735 = vunpack.c.h.b16 %v208
  %v736 = vunpack.c.l.b16 %v209
  %v737 = vunpack.c.h.b16 %v209
  %v738 = vunpack.c.l.b16 %v210
  %v739 = vunpack.c.h.b16 %v210
  %v740 = vunpack.c.l.b16 %v211
  %v741 = vunpack.c.h.b16 %v211
  %v742 = vunpack.c.l.b16 %v212
  %v743 = vunpack.c.h.b16 %v212
  %v744 = vunpack.c.l.b16 %v213
  %v745 = vunpack.c.l.b16 %v214
  %v746 = vunpack.c.h.b16 %v214
  %v747 = vunpack.c.l.b16 %v215
  %v748 = vunpack.c.h.b16 %v215
  %v749 = vunpack.c.l.b16 %v216
  %v750 = vunpack.c.h.b16 %v216
  %v751 = vunpack.c.l.b16 %v217
  %v752 = vunpack.c.h.b16 %v217
  %v753 = vunpack.c.l.b16 %v218
  %v754 = vunpack.c.h.b16 %v218
  %v755 = vunpack.c.l.b16 %v219
  %v756 = vunpack.c.l.b16 %v220
  %v757 = vunpack.c.h.b16 %v220
  %v758 = vunpack.c.l.b16 %v221
  %v759 = vunpack.c.h.b16 %v221
  %v760 = vunpack.c.l.b16 %v222
  %v761 = vunpack.c.h.b16 %v222
  %v762 = vunpack.c.l.b16 %v223
  %v763 = vunpack.c.h.b16 %v223
  %v764 = vunpack.c.l.b16 %v224
  %v765 = vunpack.c.h.b16 %v224
  %v766 = vunpack.c.l.b16 %v225
  %v767 = vunpack.c.l.b16 %v226
  %v768 = vunpack.c.h.b16 %v226
  %v769 = vunpack.c.l.b16 %v227
  %v770 = vunpack.c.h.b16 %v227
  %v771 = vunpack.c.l.b16 %v228
  %v772 = vunpack.c.h.b16 %v228
  %v773 = vunpack.c.l.b16 %v229
  %v774 = vunpack.c.h.b16 %v229
  %v775 = vunpack.c.l.b16 %v230
  %v776 = vunpack.c.h.b16 %v230
  %v777 = vunpack.c.l.b16 %v231
  %v778 = vunpack.c.l.b16 %v232
  %v779 = vunpack.c.h.b16 %v232
  %v780 = vunpack.c.l.b16 %v233
  %v781 = vunpack.c.h.b16 %v233
  %v782 = vunpack.c.l.b16 %v234
  %v783 = vunpack.c.h.b16 %v234
  %v784 = vunpack.c.l.b16 %v235
  %v785 = vunpack.c.h.b16 %v235
  %v786 = vunpack.c.l.b16 %v236
  %v787 = vunpack.c.h.b16 %v236
  %v788 = vunpack.c.l.b16 %v237
  %v789 = vpack.c.b16 %v448, %v437
  %v790 = vpack.c.b16 %v449, %v438
  %v791 = vpack.c.b16 %v450, %v439
  %v792 = vpack.c.b16 %v451, %v440
  %v793 = vpack.c.b16 %v452, %v441
  %v794 = vpack.c.b16 %v453, %v442
  %v795 = vpack.c.b16 %v454, %v443
  %v796 = vpack.c.b16 %v455, %v444
  %v797 = vpack.c.b16 %v456, %v445
  %v798 = vpack.c.b16 %v457, %v446
  %v799 = vpack.c.b16 %v458, %v447
  %v800 = vpack.c.b16 %v470, %v459
  %v801 = vpack.c.b16 %v471, %v460
  %v802 = vpack.c.b16 %v472, %v461
  %v803 = vpack.c.b16 %v473, %v462
  %v804 = vpack.c.b16 %v474, %v463
  %v805 = vpack.c.b16 %v475, %v464
  %v806 = vpack.c.b16 %v476, %v465
  %v807 = vpack.c.b16 %v477, %v466
  %v808 = vpack.c.b16 %v478, %v467
  %v809 = vpack.c.b16 %v479, %v468
  %v810 = vpack.c.b16 %v480, %v469
  %v811 = vpack.c.b16 %v492, %v481
  %v812 = vpack.c.b16 %v493, %v482
  %v813 = vpack.c.b16 %v494, %v483
  %v814 = vpack.c.b16 %v495, %v484
  %v815 = vpack.c.b16 %v496, %v485
  %v816 = vpack.c.b16 %v497, %v486
  %v817 = vpack.c.b16 %v498, %v487
  %v818 = vpack.c.b16 %v499, %v488
  %v819 = vpack.c.b16 %v500, %v489
  %v820 = vpack.c.b16 %v501, %v490
  %v821 = vpack.c.b16 %v502, %v491
  %v822 = vpack.c.b16 %v514, %v503
  %v823 = vpack.c.b16 %v515, %v504
  %v824 = vpack.c.b16 %v516, %v505
  %v825 = vpack.c.b16 %v517, %v506
  %v826 = vpack.c.b16 %v518, %v507
  %v827 = vpack.c.b16 %v519, %v508
  %v828 = vpack.c.b16 %v520, %v509
  %v829 = vpack.c.b16 %v521, %v510
  %v830 = vpack.c.b16 %v522, %v511
  %v831 = vpack.c.b16 %v523, %v512
  %v832 = vpack.c.b16 %v524, %v513
  %v833 = vpack.c.b16 %v536, %v525
  %v834 = vpack.c.b16 %v537, %v526
  %v835 = vpack.c.b16 %v538, %v527
  %v836 = vpack.c.b16 %v539, %v528
  %v837 = vpack.c.b16 %v540, %v529
  %v838 = vpack.c.b16 %v541, %v530
  %v839 = vpack.c.b16 %v542, %v531
  %v840 = vpack.c.b16 %v543, %v532
  %v841 = vpack.c.b16 %v544, %v533
  %v842 = vpack.c.b16 %v545, %v534
  %v843 = vpack.c.b16 %v546, %v535
  %v844 = vpack.c.b16 %v558, %v547
  %v845 = vpack.c.b16 %v559, %v548
  %v846 = vpack.c.b16 %v560, %v549
  %v847 = vpack.c.b16 %v561, %v550
  %v848 = vpack.c.b16 %v562, %v551
  %v849 = vpack.c.b16 %v563, %v552
  %v850 = vpack.c.b16 %v564, %v553
  %v851 = vpack.c.b16 %v565, %v554
  %v852 = vpack.c.b16 %v566, %v555
  %v853 = vpack.c.b16 %v567, %v556
  %v854 = vpack.c.b16 %v568, %v557
  %v855 = vpack.c.b16 %v580, %v569
  %v856 = vpack.c.b16 %v581, %v570
  %v857 = vpack.c.b16 %v582, %v571
  %v858 = vpack.c.b16 %v583, %v572
  %v859 = vpack.c.b16 %v584, %v573
  %v860 = vpack.c.b16 %v585, %v574
  %v861 = vpack.c.b16 %v586, %v575
  %v862 = vpack.c.b16 %v587, %v576
  %v863 = vpack.c.b16 %v588, %v577
  %v864 = vpack.c.b16 %v589, %v578
  %v865 = vpack.c.b16 %v590, %v579
  %v866 = vpack.c.b16 %v602, %v591
  %v867 = vpack.c.b16 %v603, %v592
  %v868 = vpack.c.b16 %v604, %v593
  %v869 = vpack.c.b16 %v605, %v594
  %v870 = vpack.c.b16 %v606, %v595
  %v871 = vpack.c.b16 %v607, %v596
  %v872 = vpack.c.b16 %v608, %v597
  %v873 = vpack.c.b16 %v609, %v598
  %v874 = vpack.c.b16 %v610, %v599
  %v875 = vpack.c.b16 %v611, %v600
  %v876 = vpack.c.b16 %v612, %v601
  %v877 = vpack.c.b16 %v624, %v613
  %v878 = vpack.c.b16 %v625, %v614
  %v879 = vpack.c.b16 %v626, %v615
  %v880 = vpack.c.b16 %v627, %v616
  %v881 = vpack.c.b16 %v628, %v617
  %v882 = vpack.c.b16 %v629, %v618
  %v883 = vpack.c.b16 %v630, %v619
  %v884 = vpack.c.b16 %v631, %v620
  %v885 = vpack.c.b16 %v632, %v621
  %v886 = vpack.c.b16 %v633, %v622
  %v887 = vpack.c.b16 %v634, %v623
  %v888 = vpack.c.b16 %v646, %v635
  %v889 = vpack.c.b16 %v647, %v636
  %v890 = vpack.c.b16 %v648, %v637
  %v891 = vpack.c.b16 %v649, %v638
  %v892 = vpack.c.b16 %v650, %v639
  %v893 = vpack.c.b16 %v651, %v640
  %v894 = vpack.c.b16 %v652, %v641
  %v895 = vpack.c.b16 %v653, %v642
  %v896 = vpack.c.b16 %v654, %v643
  %v897 = vpack.c.b16 %v655, %v644
  %v898 = vpack.c.b16 %v656, %v645
  %v899 = vpack.c.b16 %v668, %v657
  %v900 = vpack.c.b16 %v669, %v658
  %v901 = vpack.c.b16 %v670, %v659
  %v902 = vpack.c.b16 %v671, %v660
  %v903 = vpack.c.b16 %v672, %v661
  %v904 = vpack.c.b16 %v673, %v662
  %v905 = vpack.c.b16 %v674, %v663
  %v906 = vpack.c.b16 %v675, %v664
  %v907 = vpack.c.b16 %v676, %v665
  %v908 = vpack.c.b16 %v677, %v666
  %v909 = vpack.c.b16 %v678, %v667
  %v910 = vpack.c.b16 %v690, %v679
  %v911 = vpack.c.b16 %v691, %v680
  %v912 = vpack.c.b16 %v692, %v681
  %v913 = vpack.c.b16 %v693, %v682
  %v914 = vpack.c.b16 %v694, %v683
  %v915 = vpack.c.b16 %v695, %v684
  %v916 = vpack.c.b16 %v696, %v685
  %v917 = vpack.c.b16 %v697, %v686
  %v918 = vpack.c.b16 %v698, %v687
  %v919 = vpack.c.b16 %v699, %v688
  %v920 = vpack.c.b16 %v700, %v689
  %v921 = vpack.c.b16 %v712, %v701
  %v922 = vpack.c.b16 %v713, %v702
  %v923 = vpack.c.b16 %v714, %v703
  %v924 = vpack.c.b16 %v715, %v704
  %v925 = vpack.c.b16 %v716, %v705
  %v926 = vpack.c.b16 %v717, %v706
  %v927 = vpack.c.b16 %v718, %v707
  %v928 = vpack.c.b16 %v719, %v708
  %v929 = vpack.c.b16 %v720, %v709
  %v930 = vpack.c.b16 %v721, %v710
  %v931 = vpack.c.b16 %v722, %v711
  %v932 = vpack.c.b16 %v734, %v723
  %v933 = vpack.c.b16 %v735, %v724
  %v934 = vpack.c.b16 %v736, %v725
  %v935 = vpack.c.b16 %v737, %v726
  %v936 = vpack.c.b16 %v738, %v727
  %v937 = vpack.c.b16 %v739, %v728
  %v938 = vpack.c.b16 %v740, %v729
  %v939 = vpack.c.b16 %v741, %v730
  %v940 = vpack.c.b16 %v742, %v731
  %v941 = vpack.c.b16 %v743, %v732
  %v942 = vpack.c.b16 %v744, %v733
  %v943 = vpack.c.b16 %v756, %v745
  %v944 = vpack.c.b16 %v757, %v746
  %v945 = vpack.c.b16 %v758, %v747
  %v946 = vpack.c.b16 %v759, %v748
  %v947 = vpack.c.b16 %v760, %v749
  %v948 = vpack.c.b16 %v761, %v750
  %v949 = vpack.c.b16 %v762, %v751
  %v950 = vpack.c.b16 %v763, %v752
  %v951 = vpack.c.b16 %v764, %v753
  %v952 = vpack.c.b16 %v765, %v754
  %v953 = vpack.c.b16 %v766, %v755
  %v954 = vpack.c.b16 %v778, %v767
  %v955 = vpack.c.b16 %v779, %v768
  %v956 = vpack.c.b16 %v780, %v769
  %v957 = vpack.c.b16 %v781, %v770
  %v958 = vpack.c.b16 %v782, %v771
  %v959 = vpack.c.b16 %v783, %v772
  %v960 = vpack.c.b16 %v784, %v773
  %v961 = vpack.c.b16 %v785, %v774
  %v962 = vpack.c.b16 %v786, %v775
  %v963 = vpack.c.b16 %v787, %v776
  %v964 = vpack.c.b16 %v788, %v777
  %1141 = vmatprep.subr.bf16.mxu0 %v790
  %1142 = vmatpush1.bf16.msra.mxu0 %v789
  %1143 = vmatprep.subr.bf16.mxu0 %v801
  %1144 = vmatpush1.bf16.msra.mxu0 %v800
  %1145 = vmatprep.subr.bf16.mxu0 %v812
  %1146 = vmatpush1.bf16.msra.mxu0 %v811
  %1147 = vmatprep.subr.bf16.mxu0 %v823
  %1148 = vmatpush1.bf16.msra.mxu0 %v822
  %1149 = vmatprep.subr.bf16.mxu0 %v834
  %1150 = vmatpush1.bf16.msra.mxu0 %v833
  %1151 = vmatprep.subr.bf16.mxu0 %v845
  %1152 = vmatpush1.bf16.msra.mxu0 %v844
  %1153 = vmatprep.subr.bf16.mxu0 %v856
  %1154 = vmatpush1.bf16.msra.mxu0 %v855
  %1155 = vmatprep.subr.bf16.mxu0 %v867
  %1156 = vmatpush1.bf16.msra.mxu0 %v866
  %1157 = vmatprep.subr.bf16.mxu0 %v878
  %1158 = vmatpush1.bf16.msra.mxu0 %v877
  %1159 = vmatprep.subr.bf16.mxu0 %v889
  %1160 = vmatpush1.bf16.msra.mxu0 %v888
  %1161 = vmatprep.subr.bf16.mxu0 %v900
  %1162 = vmatpush1.bf16.msra.mxu0 %v899
  %1163 = vmatprep.subr.bf16.mxu0 %v911
  %1164 = vmatpush1.bf16.msra.mxu0 %v910
  %1165 = vmatprep.subr.bf16.mxu0 %v922
  %1166 = vmatpush1.bf16.msra.mxu0 %v921
  %1167 = vmatprep.subr.bf16.mxu0 %v933
  %1168 = vmatpush1.bf16.msra.mxu0 %v932
  %1169 = vmatprep.subr.bf16.mxu0 %v944
  %1170 = vmatpush1.bf16.msra.mxu0 %v943
  %1171 = vmatprep.subr.bf16.mxu0 %v955
  %1172 = vmatpush1.bf16.msra.mxu0 %v954
  %1173 = vmatprep.mubr.bf16.mxu0 %v242
  %1174 = vmatmul.mubr.bf16.gmra.mrb[0].mxu0 %v241
  %v1175 = vpop.f32.mrb[0].mxu0
  %v1176 = vadd.f32 0.0, %v1175
  %v1177 = vpop.f32.mrb[0].mxu0
  %v1178 = vadd.f32 0.0, %v1177
  %v1179 = vpop.f32.mrb[0].mxu0
  %v1180 = vpop.f32.mrb[0].mxu0
  %1181 = vdwg.mxu0
  %1182 = vmatprep.subr.bf16.mxu0 %v792
  %1183 = vmatpush1.bf16.msra.mxu0 %v791
  %1184 = vmatprep.subr.bf16.mxu0 %v803
  %1185 = vmatpush1.bf16.msra.mxu0 %v802
  %1186 = vmatprep.subr.bf16.mxu0 %v814
  %1187 = vmatpush1.bf16.msra.mxu0 %v813
  %1188 = vmatprep.subr.bf16.mxu0 %v825
  %1189 = vmatpush1.bf16.msra.mxu0 %v824
  %1190 = vmatprep.subr.bf16.mxu0 %v836
  %1191 = vmatpush1.bf16.msra.mxu0 %v835
  %1192 = vmatprep.subr.bf16.mxu0 %v847
  %1193 = vmatpush1.bf16.msra.mxu0 %v846
  %1194 = vmatprep.subr.bf16.mxu0 %v858
  %1195 = vmatpush1.bf16.msra.mxu0 %v857
  %1196 = vmatprep.subr.bf16.mxu0 %v869
  %1197 = vmatpush1.bf16.msra.mxu0 %v868
  %1198 = vmatprep.subr.bf16.mxu0 %v880
  %1199 = vmatpush1.bf16.msra.mxu0 %v879
  %1200 = vmatprep.subr.bf16.mxu0 %v891
  %1201 = vmatpush1.bf16.msra.mxu0 %v890
  %1202 = vmatprep.subr.bf16.mxu0 %v902
  %1203 = vmatpush1.bf16.msra.mxu0 %v901
  %1204 = vmatprep.subr.bf16.mxu0 %v913
  %1205 = vmatpush1.bf16.msra.mxu0 %v912
  %1206 = vmatprep.subr.bf16.mxu0 %v924
  %1207 = vmatpush1.bf16.msra.mxu0 %v923
  %1208 = vmatprep.subr.bf16.mxu0 %v935
  %1209 = vmatpush1.bf16.msra.mxu0 %v934
  %1210 = vmatprep.subr.bf16.mxu0 %v946
  %1211 = vmatpush1.bf16.msra.mxu0 %v945
  %1212 = vmatprep.subr.bf16.mxu0 %v957
  %1213 = vmatpush1.bf16.msra.mxu0 %v956
  %1214 = vmatprep.mubr.bf16.mxu0 %v242
  %1215 = vmatmul.mubr.bf16.gmra.mrb[0].mxu0 %v241
  %v1216 = vpop.f32.mrb[0].mxu0
  %v1217 = vadd.f32 0.0, %v1216
  %v1218 = vpop.f32.mrb[0].mxu0
  %v1219 = vadd.f32 0.0, %v1218
  %v1220 = vpop.f32.mrb[0].mxu0
  %v1221 = vpop.f32.mrb[0].mxu0
  %1222 = vdwg.mxu0
  %1223 = vmatprep.subr.bf16.mxu0 %v794
  %1224 = vmatpush1.bf16.msra.mxu0 %v793
  %1225 = vmatprep.subr.bf16.mxu0 %v805
  %1226 = vmatpush1.bf16.msra.mxu0 %v804
  %1227 = vmatprep.subr.bf16.mxu0 %v816
  %1228 = vmatpush1.bf16.msra.mxu0 %v815
  %1229 = vmatprep.subr.bf16.mxu0 %v827
  %1230 = vmatpush1.bf16.msra.mxu0 %v826
  %1231 = vmatprep.subr.bf16.mxu0 %v838
  %1232 = vmatpush1.bf16.msra.mxu0 %v837
  %1233 = vmatprep.subr.bf16.mxu0 %v849
  %1234 = vmatpush1.bf16.msra.mxu0 %v848
  %1235 = vmatprep.subr.bf16.mxu0 %v860
  %1236 = vmatpush1.bf16.msra.mxu0 %v859
  %1237 = vmatprep.subr.bf16.mxu0 %v871
  %1238 = vmatpush1.bf16.msra.mxu0 %v870
  %1239 = vmatprep.subr.bf16.mxu0 %v882
  %1240 = vmatpush1.bf16.msra.mxu0 %v881
  %1241 = vmatprep.subr.bf16.mxu0 %v893
  %1242 = vmatpush1.bf16.msra.mxu0 %v892
  %1243 = vmatprep.subr.bf16.mxu0 %v904
  %1244 = vmatpush1.bf16.msra.mxu0 %v903
  %1245 = vmatprep.subr.bf16.mxu0 %v915
  %1246 = vmatpush1.bf16.msra.mxu0 %v914
  %1247 = vmatprep.subr.bf16.mxu0 %v926
  %1248 = vmatpush1.bf16.msra.mxu0 %v925
  %1249 = vmatprep.subr.bf16.mxu0 %v937
  %1250 = vmatpush1.bf16.msra.mxu0 %v936
  %1251 = vmatprep.subr.bf16.mxu0 %v948
  %1252 = vmatpush1.bf16.msra.mxu0 %v947
  %1253 = vmatprep.subr.bf16.mxu0 %v959
  %1254 = vmatpush1.bf16.msra.mxu0 %v958
  %1255 = vmatprep.mubr.bf16.mxu0 %v242
  %1256 = vmatmul.mubr.bf16.gmra.mrb[0].mxu0 %v241
  %v1257 = vpop.f32.mrb[0].mxu0
  %v1258 = vadd.f32 0.0, %v1257
  %v1259 = vpop.f32.mrb[0].mxu0
  %v1260 = vadd.f32 0.0, %v1259
  %v1261 = vpop.f32.mrb[0].mxu0
  %v1262 = vpop.f32.mrb[0].mxu0
  %1263 = vdwg.mxu0
  %1264 = vmatprep.subr.bf16.mxu0 %v796
  %1265 = vmatpush1.bf16.msra.mxu0 %v795
  %1266 = vmatprep.subr.bf16.mxu0 %v807
  %1267 = vmatpush1.bf16.msra.mxu0 %v806
  %1268 = vmatprep.subr.bf16.mxu0 %v818
  %1269 = vmatpush1.bf16.msra.mxu0 %v817
  %1270 = vmatprep.subr.bf16.mxu0 %v829
  %1271 = vmatpush1.bf16.msra.mxu0 %v828
  %1272 = vmatprep.subr.bf16.mxu0 %v840
  %1273 = vmatpush1.bf16.msra.mxu0 %v839
  %1274 = vmatprep.subr.bf16.mxu0 %v851
  %1275 = vmatpush1.bf16.msra.mxu0 %v850
  %1276 = vmatprep.subr.bf16.mxu0 %v862
  %1277 = vmatpush1.bf16.msra.mxu0 %v861
  %1278 = vmatprep.subr.bf16.mxu0 %v873
  %1279 = vmatpush1.bf16.msra.mxu0 %v872
  %1280 = vmatprep.subr.bf16.mxu0 %v884
  %1281 = vmatpush1.bf16.msra.mxu0 %v883
  %1282 = vmatprep.subr.bf16.mxu0 %v895
  %1283 = vmatpush1.bf16.msra.mxu0 %v894
  %1284 = vmatprep.subr.bf16.mxu0 %v906
  %1285 = vmatpush1.bf16.msra.mxu0 %v905
  %1286 = vmatprep.subr.bf16.mxu0 %v917
  %1287 = vmatpush1.bf16.msra.mxu0 %v916
  %1288 = vmatprep.subr.bf16.mxu0 %v928
  %1289 = vmatpush1.bf16.msra.mxu0 %v927
  %1290 = vmatprep.subr.bf16.mxu0 %v939
  %1291 = vmatpush1.bf16.msra.mxu0 %v938
  %1292 = vmatprep.subr.bf16.mxu0 %v950
  %1293 = vmatpush1.bf16.msra.mxu0 %v949
  %1294 = vmatprep.subr.bf16.mxu0 %v961
  %1295 = vmatpush1.bf16.msra.mxu0 %v960
  %1296 = vmatprep.mubr.bf16.mxu0 %v242
  %1297 = vmatmul.mubr.bf16.gmra.mrb[0].mxu0 %v241
  %v1298 = vpop.f32.mrb[0].mxu0
  %v1299 = vadd.f32 0.0, %v1298
  %v1300 = vpop.f32.mrb[0].mxu0
  %v1301 = vadd.f32 0.0, %v1300
  %v1302 = vpop.f32.mrb[0].mxu0
  %v1303 = vpop.f32.mrb[0].mxu0
  %1304 = vdwg.mxu0
  %1305 = vmatprep.subr.bf16.mxu0 %v798
  %1306 = vmatpush1.bf16.msra.mxu0 %v797
  %1307 = vmatprep.subr.bf16.mxu0 %v809
  %1308 = vmatpush1.bf16.msra.mxu0 %v808
  %1309 = vmatprep.subr.bf16.mxu0 %v820
  %1310 = vmatpush1.bf16.msra.mxu0 %v819
  %1311 = vmatprep.subr.bf16.mxu0 %v831
  %1312 = vmatpush1.bf16.msra.mxu0 %v830
  %1313 = vmatprep.subr.bf16.mxu0 %v842
  %1314 = vmatpush1.bf16.msra.mxu0 %v841
  %1315 = vmatprep.subr.bf16.mxu0 %v853
  %1316 = vmatpush1.bf16.msra.mxu0 %v852
  %1317 = vmatprep.subr.bf16.mxu0 %v864
  %1318 = vmatpush1.bf16.msra.mxu0 %v863
  %1319 = vmatprep.subr.bf16.mxu0 %v875
  %1320 = vmatpush1.bf16.msra.mxu0 %v874
  %1321 = vmatprep.subr.bf16.mxu0 %v886
  %1322 = vmatpush1.bf16.msra.mxu0 %v885
  %1323 = vmatprep.subr.bf16.mxu0 %v897
  %1324 = vmatpush1.bf16.msra.mxu0 %v896
  %1325 = vmatprep.subr.bf16.mxu0 %v908
  %1326 = vmatpush1.bf16.msra.mxu0 %v907
  %1327 = vmatprep.subr.bf16.mxu0 %v919
  %1328 = vmatpush1.bf16.msra.mxu0 %v918
  %1329 = vmatprep.subr.bf16.mxu0 %v930
  %1330 = vmatpush1.bf16.msra.mxu0 %v929
  %1331 = vmatprep.subr.bf16.mxu0 %v941
  %1332 = vmatpush1.bf16.msra.mxu0 %v940
  %1333 = vmatprep.subr.bf16.mxu0 %v952
  %1334 = vmatpush1.bf16.msra.mxu0 %v951
  %1335 = vmatprep.subr.bf16.mxu0 %v963
  %1336 = vmatpush1.bf16.msra.mxu0 %v962
  %1337 = vmatprep.mubr.bf16.mxu0 %v242
  %1338 = vmatmul.mubr.bf16.gmra.mrb[0].mxu0 %v241
  %v1339 = vpop.f32.mrb[0].mxu0
  %v1340 = vadd.f32 0.0, %v1339
  %v1341 = vpop.f32.mrb[0].mxu0
  %v1342 = vadd.f32 0.0, %v1341
  %v1343 = vpop.f32.mrb[0].mxu0
  %v1344 = vpop.f32.mrb[0].mxu0
  %1345 = vdwg.mxu0
  %1346 = vmatprep.subr.bf16.mxu0 0
  %1347 = vmatpush1.bf16.msra.mxu0 %v799
  %1348 = vmatprep.subr.bf16.mxu0 0
  %1349 = vmatpush1.bf16.msra.mxu0 %v810
  %1350 = vmatprep.subr.bf16.mxu0 0
  %1351 = vmatpush1.bf16.msra.mxu0 %v821
  %1352 = vmatprep.subr.bf16.mxu0 0
  %1353 = vmatpush1.bf16.msra.mxu0 %v832
  %1354 = vmatprep.subr.bf16.mxu0 0
  %1355 = vmatpush1.bf16.msra.mxu0 %v843
  %1356 = vmatprep.subr.bf16.mxu0 0
  %1357 = vmatpush1.bf16.msra.mxu0 %v854
  %1358 = vmatprep.subr.bf16.mxu0 0
  %1359 = vmatpush1.bf16.msra.mxu0 %v865
  %1360 = vmatprep.subr.bf16.mxu0 0
  %1361 = vmatpush1.bf16.msra.mxu0 %v876
  %1362 = vmatprep.subr.bf16.mxu0 0
  %1363 = vmatpush1.bf16.msra.mxu0 %v887
  %1364 = vmatprep.subr.bf16.mxu0 0
  %1365 = vmatpush1.bf16.msra.mxu0 %v898
  %1366 = vmatprep.subr.bf16.mxu0 0
  %1367 = vmatpush1.bf16.msra.mxu0 %v909
  %1368 = vmatprep.subr.bf16.mxu0 0
  %1369 = vmatpush1.bf16.msra.mxu0 %v920
  %1370 = vmatprep.subr.bf16.mxu0 0
  %1371 = vmatpush1.bf16.msra.mxu0 %v931
  %1372 = vmatprep.subr.bf16.mxu0 0
  %1373 = vmatpush1.bf16.msra.mxu0 %v942
  %1374 = vmatprep.subr.bf16.mxu0 0
  %1375 = vmatpush1.bf16.msra.mxu0 %v953
  %1376 = vmatprep.subr.bf16.mxu0 0
  %1377 = vmatpush1.bf16.msra.mxu0 %v964
  %1378 = vmatprep.mubr.bf16.mxu0 %v242
  %1379 = vmatmul.mubr.bf16.gmra.mrb[0].mxu0 %v241
  %v1380 = vpop.f32.mrb[0].mxu0
  %v1381 = vadd.f32 0.0, %v1380
  %v1382 = vpop.f32.mrb[0].mxu0
  %v1383 = vpop.f32.mrb[0].mxu0
  %v1384 = vpop.f32.mrb[0].mxu0
  %1385 = vdwg.mxu0
  %v1386 = vadd.f32 %v34, %v1176
  %v1387 = vadd.f32 %v35, %v1178
  %v1388 = vadd.f32 %v36, %v1217
  %v1389 = vadd.f32 %v37, %v1219
  %v1390 = vadd.f32 %v38, %v1258
  %v1391 = vadd.f32 %v39, %v1260
  %v1392 = vadd.f32 %v40, %v1299
  %v1393 = vadd.f32 %v41, %v1301
  %v1394 = vadd.f32 %v42, %v1340
  %v1395 = vadd.f32 %v43, %v1342
  %v1396 = vadd.f32 %v44, %v1381
  %1397 = vst [vmem:[%s4] sm:$0xff] %v1386
  %1398 = vst [vmem:[%s4 + $0x8] sm:$0xff] %v1387
  %1399 = vst [vmem:[%s4 + $0x10] sm:$0xff] %v1388
  %1400 = vst [vmem:[%s4 + $0x18] sm:$0xff] %v1389
  %1401 = vst [vmem:[%s4 + $0x20] sm:$0xff] %v1390
  %1402 = vst [vmem:[%s4 + $0x28] sm:$0xff] %v1391
  %1403 = vst [vmem:[%s4 + $0x30] sm:$0xff] %v1392
  %1404 = vst [vmem:[%s4 + $0x38] sm:$0xff] %v1393
  %1405 = vst [vmem:[%s4 + $0x40] sm:$0xff] %v1394
  %1406 = vst [vmem:[%s4 + $0x48] sm:$0xff] %v1395
  %vm1407 = vcmask 588800
  %1408 = vst.msk [vmem:[%s4 + $0x50] sm:$0xff] %vm1407, %v1396
  // Predicated region
  $region22: #{generator_forward.6} parent=0 // pred_check
    %p1409 = pneg %p18
  $region23: #{generator_forward.6} parent=0 // pred_check_branch
    %1411 = sbr.rel (%p1409) target = $region25
  $region24: #{generator_forward.6} parent=0 // pred_region
    %v1412 = vld [vmem:[%s4] sm:$0xff]
    %v1413 = vld [vmem:[%s4 + $0x8] sm:$0xff]
    %v1414 = vld [vmem:[%s4 + $0x10] sm:$0xff]
    %v1415 = vld [vmem:[%s4 + $0x18] sm:$0xff]
    %v1416 = vld [vmem:[%s4 + $0x20] sm:$0xff]
    %v1417 = vld [vmem:[%s4 + $0x28] sm:$0xff]
    %v1418 = vld [vmem:[%s4 + $0x30] sm:$0xff]
    %v1419 = vld [vmem:[%s4 + $0x38] sm:$0xff]
    %v1420 = vld [vmem:[%s4 + $0x40] sm:$0xff]
    %v1421 = vld [vmem:[%s4 + $0x48] sm:$0xff]
    %v1422 = vld [vmem:[%s4 + $0x50] sm:$0xff]
    %v1423 = vadd.f32 %v1412, %v1413
    %v1424 = vadd.f32 %v1423, %v1414
    %v1425 = vadd.f32 %v1424, %v1415
    %v1426 = vadd.f32 %v1425, %v1416
    %v1427 = vadd.f32 %v1426, %v1417
    %v1428 = vadd.f32 %v1427, %v1418
    %v1429 = vadd.f32 %v1428, %v1419
    %v1430 = vadd.f32 %v1429, %v1420
    %v1431 = vadd.f32 %v1430, %v1421
    %v1432 = vsel %vm1407, %v1422, 0.0
    %v1433 = vadd.f32 %v1431, %v1432
    %1434 = vadd.xlane.f32.xlu0 %v1433
    %v1435 = vpop.xlane.xlu0 %1434
    %v1436 = vrcp.pop 1352.0
    %v1437 = vmul.f32 %v1435, %v1436
    %v1438 = vmul.f32 %v1412, %v1412
    %v1439 = vmul.f32 %v1413, %v1413
    %v1440 = vmul.f32 %v1414, %v1414
    %v1441 = vmul.f32 %v1415, %v1415
    %v1442 = vmul.f32 %v1416, %v1416
    %v1443 = vmul.f32 %v1417, %v1417
    %v1444 = vmul.f32 %v1418, %v1418
    %v1445 = vmul.f32 %v1419, %v1419
    %v1446 = vmul.f32 %v1420, %v1420
    %v1447 = vmul.f32 %v1421, %v1421
    %v1448 = vmul.f32 %v1422, %v1422
    %v1449 = vadd.f32 %v1438, %v1439
    %v1450 = vadd.f32 %v1449, %v1440
    %v1451 = vadd.f32 %v1450, %v1441
    %v1452 = vadd.f32 %v1451, %v1442
    %v1453 = vadd.f32 %v1452, %v1443
    %v1454 = vadd.f32 %v1453, %v1444
    %v1455 = vadd.f32 %v1454, %v1445
    %v1456 = vadd.f32 %v1455, %v1446
    %v1457 = vadd.f32 %v1456, %v1447
    %v1458 = vsel %vm1407, %v1448, 0.0
    %v1459 = vadd.f32 %v1457, %v1458
    %1460 = vadd.xlane.f32.xlu0 %v1459
    %v1461 = vpop.xlane.xlu0 %1460
    %v1462 = vmul.f32 %v1461, %v1436
    %v1463 = vmul.f32 %v1437, %v1437
    %v1464 = vsub.f32 %v1462, %v1463
    %v1465 = vadd.f32 %v1464, 1e-05
    %v1466 = vrsqrt.pop %v1465
    %v1467 = vld [vmem:[%s2] sm:$0xff]
    %v1468 = vmul.f32 %v1466, %v1467
    %v1469 = vsub.f32 %v1412, %v1437
    %v1470 = vsub.f32 %v1413, %v1437
    %v1471 = vsub.f32 %v1414, %v1437
    %v1472 = vsub.f32 %v1415, %v1437
    %v1473 = vsub.f32 %v1416, %v1437
    %v1474 = vsub.f32 %v1417, %v1437
    %v1475 = vsub.f32 %v1418, %v1437
    %v1476 = vsub.f32 %v1419, %v1437
    %v1477 = vsub.f32 %v1420, %v1437
    %v1478 = vsub.f32 %v1421, %v1437
    %v1479 = vsub.f32 %v1422, %v1437
    %1481 = vset.pattern.permute.xlu0 0
    %1482 = vperm.xlu0 %1481, %v1468
    %v1483 = vpop.permute.xlu0 %1482
    %v1485 = vmul.f32 %v1469, %v1483
    %v1486 = vmul.f32 %v1470, %v1483
    %v1487 = vmul.f32 %v1471, %v1483
    %v1488 = vmul.f32 %v1472, %v1483
    %v1489 = vmul.f32 %v1473, %v1483
    %v1490 = vmul.f32 %v1474, %v1483
    %v1491 = vmul.f32 %v1475, %v1483
    %v1492 = vmul.f32 %v1476, %v1483
    %v1493 = vmul.f32 %v1477, %v1483
    %v1494 = vmul.f32 %v1478, %v1483
    %v1495 = vmul.f32 %v1479, %v1483
    %v1496 = vld [vmem:[%s3] sm:$0xff]
    %1498 = vset.pattern.permute.xlu0 0
    %1499 = vperm.xlu0 %1498, %v1496
    %v1500 = vpop.permute.xlu0 %1499
    %v1502 = vadd.f32 %v1485, %v1500
    %v1503 = vadd.f32 %v1486, %v1500
    %v1504 = vadd.f32 %v1487, %v1500
    %v1505 = vadd.f32 %v1488, %v1500
    %v1506 = vadd.f32 %v1489, %v1500
    %v1507 = vadd.f32 %v1490, %v1500
    %v1508 = vadd.f32 %v1491, %v1500
    %v1509 = vadd.f32 %v1492, %v1500
    %v1510 = vadd.f32 %v1493, %v1500
    %v1511 = vadd.f32 %v1494, %v1500
    %v1512 = vadd.f32 %v1495, %v1500
    %v1513 = vmax.f32 %v1502, 0.0
    %v1514 = vmax.f32 %v1503, 0.0
    %v1515 = vmax.f32 %v1504, 0.0
    %v1516 = vmax.f32 %v1505, 0.0
    %v1517 = vmax.f32 %v1506, 0.0
    %v1518 = vmax.f32 %v1507, 0.0
    %v1519 = vmax.f32 %v1508, 0.0
    %v1520 = vmax.f32 %v1509, 0.0
    %v1521 = vmax.f32 %v1510, 0.0
    %v1522 = vmax.f32 %v1511, 0.0
    %v1523 = vmax.f32 %v1512, 0.0
    %1524 = vst [vmem:[%s4] sm:$0xff] %v1513
    %1525 = vst [vmem:[%s4 + $0x8] sm:$0xff] %v1514
    %1526 = vst [vmem:[%s4 + $0x10] sm:$0xff] %v1515
    %1527 = vst [vmem:[%s4 + $0x18] sm:$0xff] %v1516
    %1528 = vst [vmem:[%s4 + $0x20] sm:$0xff] %v1517
    %1529 = vst [vmem:[%s4 + $0x28] sm:$0xff] %v1518
    %1530 = vst [vmem:[%s4 + $0x30] sm:$0xff] %v1519
    %1531 = vst [vmem:[%s4 + $0x38] sm:$0xff] %v1520
    %1532 = vst [vmem:[%s4 + $0x40] sm:$0xff] %v1521
    %1533 = vst [vmem:[%s4 + $0x48] sm:$0xff] %v1522
    %1534 = vst.msk [vmem:[%s4 + $0x50] sm:$0xff] %vm1407, %v1523
  $region25: #{generator_forward.6} parent=0 // pred_fallthru
    _
  // Predicated region
  $region26: #{generator_forward.6} parent=0 // pred_check
    _
  $region27: #{generator_forward.6} parent=0 // pred_check_branch
    %1536 = sbr.rel (0) target = $region29
  $region28: #{generator_forward.6} parent=0 // pred_region
    _
  $region29: #{generator_forward.6} parent=0 // pred_fallthru
    _
  // Predicated region
  $region30: #{generator_forward.6} parent=0 // pred_check
    _
  $region31: #{generator_forward.6} parent=0 // pred_check_branch
    %1538 = sbr.rel (0) target = $region33
  $region32: #{generator_forward.6} parent=0 // pred_region
    _
  $region33: #{generator_forward.6} parent=0 // pred_fallthru
    _

// kernel: generator_forward.7
$region0: #{generator_forward.7}
  #allocation0 [shape = 'u32[]', space=smem, size = 0x4, offset = 0x4, fixed_abs, tag = 'smem constant byte address 0x4 - core index']
  #allocation1 [shape = 'u32[144,128]{1,0:T(1,128)}', space=vmem, size = 0x12000, scoped, tag = 'internal scratch']
  %s0 = inlined_call_operand.vmem [shape: bf16[3,32], index: 0, kind: input, shape index: {}]
  %s1 = inlined_call_operand.vmem [shape: bf16[32,5632], index: 1, kind: input, shape index: {}]
  %s2 = inlined_call_operand.vmem [shape: f32[3,5632], index: 2, kind: output, shape index: {}]
  %s3 = sld [smem:[#allocation0]]
  $region64: #{generator_forward.7} parent=0
    _
  %s5 = ssub.s32 1, %s3
  %s6 = scalar_select 0, %s5, %s3
  $region1: #{generator_forward.7} parent=0
    #allocation2 [shape = 'u8[65536]{0}', space=vmem, size = 0x10000, scoped, tag = 'input window, operand 1']
    loop: start=0, step=1, limit=13
    $region2: #{generator_forward.7} parent=1 // loop_pre_header
      _
    $region3: #{generator_forward.7} parent=1 // loop_header
      %s8 = sphi 0, %s12
      %p9 = scmp.ge.s32.totalorder %s8, 13
      %s16 = sphi 0, %s16
      %s18 = sphi 0, %s16
      %s19 = sphi 0, %s18
      %s33 = sphi 0, %s19
      %s39 = sphi 0, %s41
      %s42 = sphi 0, %s39
      %s43 = sphi 0, %s42
      %s59 = sphi 0, %s43
      %s65 = sphi 0, %s67
      %s68 = sphi 0, %s65
      %s69 = sphi 0, %s68
      %s85 = sphi 0, %s69
    $region4: #{generator_forward.7} parent=1 // loop_header_branch
      %11 = sbr.rel (%p9) target = $region8
    $region5: #{generator_forward.7} parent=1 // loop_body
      %s13 = ssub.s32 %s8, 1
      %s14 = ssub.s32 %s8, 2
      %s15 = sadd.s32 %s8, 1
      %s17 = sadd.s32 %s16, 1
      %p20 = scmp.eq.s32.totalorder %s8, 10
      %p21 = scmp.ne.s32.totalorder %s16, %s18
      %p22 = scmp.eq.s32.totalorder %s8, 0
      %p23 = por %p21, %p22
      %p24 = scmp.ne.s32.totalorder %s16, %s18
      %p25 = scmp.eq.s32.totalorder %s13, 10
      %p26 = por %p24, %p25
      %p27 = scmp.ne.s32.totalorder %s18, %s19
      %p28 = scmp.eq.s32.totalorder %s13, 0
      %p29 = por %p27, %p28
      %p30 = scmp.ne.s32.totalorder %s18, %s19
      %p31 = scmp.eq.s32.totalorder %s14, 10
      %p32 = por %p30, %p31
      %p34 = scmp.ne.s32.totalorder %s19, %s33
      %p35 = scmp.eq.s32.totalorder %s14, 0
      %p36 = por %p34, %p35
      %s37 = ssub.s32 %s8, %s15
      %p38 = scmp.eq.s32.totalorder %s37, 0
      %s40 = sadd.s32 %s39, 1
      %s41 = scalar_select %p38, %s39, %s40
      %p44 = pneg %p38
      %p45 = scmp.eq.s32.totalorder %s8, 10
      %p46 = por %p44, %p45
      %p47 = scmp.ne.s32.totalorder %s39, %s42
      %p48 = scmp.eq.s32.totalorder %s8, 0
      %p49 = por %p47, %p48
      %p50 = scmp.ne.s32.totalorder %s39, %s42
      %p51 = scmp.eq.s32.totalorder %s13, 10
      %p52 = por %p50, %p51
      %p53 = scmp.ne.s32.totalorder %s42, %s43
      %p54 = scmp.eq.s32.totalorder %s13, 0
      %p55 = por %p53, %p54
      %p56 = scmp.ne.s32.totalorder %s42, %s43
      %p57 = scmp.eq.s32.totalorder %s14, 10
      %p58 = por %p56, %p57
      %p60 = scmp.ne.s32.totalorder %s43, %s59
      %p61 = scmp.eq.s32.totalorder %s14, 0
      %p62 = por %p60, %p61
      %s63 = ssub.s32 %s8, %s15
      %p64 = scmp.eq.s32.totalorder %s63, 0
      %s66 = sadd.s32 %s65, 1
      %s67 = scalar_select %p64, %s65, %s66
      %p70 = pneg %p64
      %p71 = scmp.eq.s32.totalorder %s8, 10
      %p72 = por %p70, %p71
      %p73 = scmp.ne.s32.totalorder %s65, %s68
      %p74 = scmp.eq.s32.totalorder %s8, 0
      %p75 = por %p73, %p74
      %p76 = scmp.ne.s32.totalorder %s65, %s68
      %p77 = scmp.eq.s32.totalorder %s13, 10
      %p78 = por %p76, %p77
      %p79 = scmp.ne.s32.totalorder %s68, %s69
      %p80 = scmp.eq.s32.totalorder %s13, 0
      %p81 = por %p79, %p80
      %p82 = scmp.ne.s32.totalorder %s68, %s69
      %p83 = scmp.eq.s32.totalorder %s14, 10
      %p84 = por %p82, %p83
      %p86 = scmp.ne.s32.totalorder %s69, %s85
      %p87 = scmp.eq.s32.totalorder %s14, 0
      %p88 = por %p86, %p87
      %p89 = scmp.le.s32.totalorder 1, %s8
      %p90 = scmp.lt.s32.totalorder %s8, 12
      %p91 = pnand %p89, %p90
      %p92 = pneg %p91
      // Predicated region
      $region9: #{generator_forward.7} parent=5 // pred_check
        _
      $region10: #{generator_forward.7} parent=5 // pred_check_branch
        %94 = sbr.rel (%p91) target = $region12
      $region11: #{generator_forward.7} parent=5 // pred_region
        %s95 = ssub.s32 %s8, 1
        // Predicated region
        $region13: #{generator_forward.7} parent=11 // pred_check
          %p96 = pneg %p29
        $region14: #{generator_forward.7} parent=11 // pred_check_branch
          %98 = sbr.rel (%p96) target = $region16
        $region15: #{generator_forward.7} parent=11 // pred_region
          _
        $region16: #{generator_forward.7} parent=11 // pred_fallthru
          _
      $region12: #{generator_forward.7} parent=5 // pred_fallthru
        _
      %p99 = scmp.lt.s32.totalorder %s8, 11
      // Predicated region
      $region17: #{generator_forward.7} parent=5 // pred_check
        %p100 = pneg %p99
      $region18: #{generator_forward.7} parent=5 // pred_check_branch
        %102 = sbr.rel (%p100) target = $region20
      $region19: #{generator_forward.7} parent=5 // pred_region
        // Predicated region
        $region21: #{generator_forward.7} parent=19 // pred_check
          %p103 = pneg %p49
        $region22: #{generator_forward.7} parent=19 // pred_check_branch
          %105 = sbr.rel (%p103) target = $region24
        $region23: #{generator_forward.7} parent=19 // pred_region
          %s106 = sand.u32 %s39, 1
          %s107 = sand.u32 %s39, 1
          %s108 = smul.addr %s107, 64
          %s109 = scalar_lea.vmem [#allocation2], %s108
          %s110 = smul.u32 4, %s8
          %s111 = smul.addr %s110, 4
          %s112 = scalar_lea.vmem %s1, %s111
          // Predicated region
          $region25: #{generator_forward.7} parent=23 // pred_check
            _
          $region26: #{generator_forward.7} parent=23 // pred_check_branch
            %114 = sbr.rel (0) target = $region28
          $region27: #{generator_forward.7} parent=23 // pred_region
            // Predicated region
            $region29: #{generator_forward.7} parent=27 // pred_check
              _
            $region30: #{generator_forward.7} parent=27 // pred_check_branch
              %116 = sbr.rel (0) target = $region32
            $region31: #{generator_forward.7} parent=27 // pred_region
              loop: start=0, step=1, limit=1
              $region33: #{generator_forward.7} parent=31 // loop_pre_header
                _
              $region34: #{generator_forward.7} parent=31 // loop_header
                %s118 = sphi 0, %s122
                %p119 = scmp.ge.s32.totalorder %s118, 1
                %s123 = sphi %s112, %s112
                %s124 = sphi %s109, %s109
              $region35: #{generator_forward.7} parent=31 // loop_header_branch
                %121 = sbr.rel (%p119) target = $region39
              $region36: #{generator_forward.7} parent=31 // loop_body
                %v125 = vld [vmem:[%s123] sm:$0xff]
                %126 = vst [vmem:[%s124] sm:$0xff] %v125
                %v127 = vld [vmem:[%s123 + $0x8] sm:$0xff]
                %128 = vst [vmem:[%s124 + $0x8] sm:$0xff] %v127
                %v129 = vld [vmem:[%s123 + $0xb0] sm:$0xff]
                %130 = vst [vmem:[%s124 + $0x10] sm:$0xff] %v129
                %v131 = vld [vmem:[%s123 + $0xb8] sm:$0xff]
                %132 = vst [vmem:[%s124 + $0x18] sm:$0xff] %v131
                %v133 = vld [vmem:[%s123 + $0x160] sm:$0xff]
                %134 = vst [vmem:[%s124 + $0x20] sm:$0xff] %v133
                %v135 = vld [vmem:[%s123 + $0x168] sm:$0xff]
                %136 = vst [vmem:[%s124 + $0x28] sm:$0xff] %v135
                %v137 = vld [vmem:[%s123 + $0x210] sm:$0xff]
                %138 = vst [vmem:[%s124 + $0x30] sm:$0xff] %v137
                %v139 = vld [vmem:[%s123 + $0x218] sm:$0xff]
                %140 = vst [vmem:[%s124 + $0x38] sm:$0xff] %v139
              $region37: #{generator_forward.7} parent=31 // loop_footer
                %s122 = sadd.s32 1, %s118
              $region38: #{generator_forward.7} parent=31 // loop_footer_branch
                %117 = sbr.rel target = $region34
              $region39: #{generator_forward.7} parent=31 // loop_exit
                _
            $region32: #{generator_forward.7} parent=27 // pred_fallthru
              _
            // Predicated region
            $region40: #{generator_forward.7} parent=27 // pred_check
              _
            $region41: #{generator_forward.7} parent=27 // pred_check_branch
              %142 = sbr.rel target = $region43
            $region42: #{generator_forward.7} parent=27 // pred_region
              _
            $region43: #{generator_forward.7} parent=27 // pred_fallthru
              _
          $region28: #{generator_forward.7} parent=23 // pred_fallthru
            _
          %143 = vnop
        $region24: #{generator_forward.7} parent=19 // pred_fallthru
          _
      $region20: #{generator_forward.7} parent=5 // pred_fallthru
        _
      %p144 = scmp.le.s32.totalorder 1, %s8
      %p145 = scmp.lt.s32.totalorder %s8, 12
      %p146 = pnand %p144, %p145
      %p147 = pneg %p146
      // Predicated region
      $region44: #{generator_forward.7} parent=5 // pred_check
        _
      $region45: #{generator_forward.7} parent=5 // pred_check_branch
        %149 = sbr.rel (%p146) target = $region47
      $region46: #{generator_forward.7} parent=5 // pred_region
        %s150 = ssub.s32 %s8, 1
        %s151 = sand.u32 %s42, 1
        %s152 = sand.u32 %s42, 1
        %s153 = smul.addr %s152, 64
        %s154 = scalar_lea.vmem [#allocation2], %s153
        // Predicated region
        $region48: #{generator_forward.7} parent=46 // pred_check
          %p155 = pneg %p55
        $region49: #{generator_forward.7} parent=46 // pred_check_branch
          %157 = sbr.rel (%p155) target = $region51
        $region50: #{generator_forward.7} parent=46 // pred_region
          _
        $region51: #{generator_forward.7} parent=46 // pred_fallthru
          _
        %p158 = pneg %p29
        %p159 = pneg %p26
        %s160 = sand.u32 %s42, 1
        %s161 = sand.u32 %s42, 1
        %s162 = smul.addr %s161, 64
        %s163 = scalar_lea.vmem [#allocation2], %s162
        %p164 = pneg %p55
        %p165 = pneg %p52
        %p166 = pneg %p81
        %p167 = pneg %p78
        %s168 = smul.u32 4, %s13
        %p169 = scmp.lt.s32.totalorder %s168, 43
        %s170 = scalar_select %p169, %s168, 43
        %s171 = smul.addr %s170, 4
        %s172 = scalar_lea.vmem %s2, %s171
        %s173 = smul.u32 4, %s13
        %s174 = smul.u32 4, %s13
        %p175 = scmp.lt.s32.totalorder %s174, 43
        %s176 = scalar_select %p175, %s174, 43
        %s177 = smul.addr %s176, 4
        %s178 = scalar_lea.vmem %s2, %s177
        %s179 = smul.u32 4, %s13
        %v181 = vld [vmem:[%s0] sm:$0x3]
        %v182 = vld [vmem:[%s154] sm:$0xff]
        %v183 = vld [vmem:[%s154 + $0x8] sm:$0xff]
        %v184 = vld [vmem:[%s154 + $0x10] sm:$0xff]
        %v185 = vld [vmem:[%s154 + $0x18] sm:$0xff]
        %v186 = vld [vmem:[%s154 + $0x20] sm:$0xff]
        %v187 = vld [vmem:[%s154 + $0x28] sm:$0xff]
        %v188 = vld [vmem:[%s154 + $0x30] sm:$0xff]
        %v189 = vld [vmem:[%s154 + $0x38] sm:$0xff]
        %v198 = vunpack.c.l.b16 %v182
        %v199 = vunpack.c.h.b16 %v182
        %v200 = vunpack.c.l.b16 %v183
        %v201 = vunpack.c.h.b16 %v183
        %v202 = vunpack.c.l.b16 %v184
        %v203 = vunpack.c.h.b16 %v184
        %v204 = vunpack.c.l.b16 %v185
        %v205 = vunpack.c.h.b16 %v185
        %v206 = vunpack.c.l.b16 %v186
        %v207 = vunpack.c.h.b16 %v186
        %v208 = vunpack.c.l.b16 %v187
        %v209 = vunpack.c.h.b16 %v187
        %v210 = vunpack.c.l.b16 %v188
        %v211 = vunpack.c.h.b16 %v188
        %v212 = vunpack.c.l.b16 %v189
        %v213 = vunpack.c.h.b16 %v189
        %v214 = vpack.c.b16 %v202, %v198
        %v215 = vpack.c.b16 %v203, %v199
        %v216 = vpack.c.b16 %v204, %v200
        %v217 = vpack.c.b16 %v205, %v201
        %v218 = vpack.c.b16 %v210, %v206
        %v219 = vpack.c.b16 %v211, %v207
        %v220 = vpack.c.b16 %v212, %v208
        %v221 = vpack.c.b16 %v213, %v209
        %vm230 = vcmask 261120
        %v232 = vsel %vm230, %v181, 0
        %234 = vmatprep.subr.bf16.mxu0 %v215
        %235 = vmatpush1.bf16.msra.mxu0 %v214
        %236 = vmatprep.subr.bf16.mxu0 %v219
        %237 = vmatpush1.bf16.msra.mxu0 %v218
        %238 = vmatprep.subr.bf16.mxu0 0
        %239 = vmatpush1.bf16.msra.mxu0 0
        %240 = vmatprep.subr.bf16.mxu0 0
        %241 = vmatpush1.bf16.msra.mxu0 0
        %242 = vmatprep.subr.bf16.mxu0 0
        %243 = vmatpush1.bf16.msra.mxu0 0
        %244 = vmatprep.subr.bf16.mxu0 0
        %245 = vmatpush1.bf16.msra.mxu0 0
        %246 = vmatprep.subr.bf16.mxu0 0
        %247 = vmatpush1.bf16.msra.mxu0 0
        %248 = vmatprep.subr.bf16.mxu0 0
        %249 = vmatpush1.bf16.msra.mxu0 0
        %250 = vmatprep.subr.bf16.mxu0 0
        %251 = vmatpush1.bf16.msra.mxu0 0
        %252 = vmatprep.subr.bf16.mxu0 0
        %253 = vmatpush1.bf16.msra.mxu0 0
        %254 = vmatprep.subr.bf16.mxu0 0
        %255 = vmatpush1.bf16.msra.mxu0 0
        %256 = vmatprep.subr.bf16.mxu0 0
        %257 = vmatpush1.bf16.msra.mxu0 0
        %258 = vmatprep.subr.bf16.mxu0 0
        %259 = vmatpush1.bf16.msra.mxu0 0
        %260 = vmatprep.subr.bf16.mxu0 0
        %261 = vmatpush1.bf16.msra.mxu0 0
        %262 = vmatprep.subr.bf16.mxu0 0
        %263 = vmatpush1.bf16.msra.mxu0 0
        %264 = vmatprep.subr.bf16.mxu0 0
        %265 = vmatpush1.bf16.msra.mxu0 0
        %266 = vmatprep.mubr.bf16.mxu0 0
        %267 = vmatmul.mubr.bf16.gmra.mrb[0].mxu0 %v232
        %v268 = vpop.f32.mrb[0].mxu0
        %v269 = vadd.f32 0.0, %v268
        %v270 = vpop.f32.mrb[0].mxu0
        %v271 = vadd.f32 0.0, %v270
        %v272 = vpop.f32.mrb[0].mxu0
        %v273 = vpop.f32.mrb[0].mxu0
        %274 = vdwg.mxu0
        %275 = vmatprep.subr.bf16.mxu0 %v217
        %276 = vmatpush1.bf16.msra.mxu0 %v216
        %277 = vmatprep.subr.bf16.mxu0 %v221
        %278 = vmatpush1.bf16.msra.mxu0 %v220
        %279 = vmatprep.subr.bf16.mxu0 0
        %280 = vmatpush1.bf16.msra.mxu0 0
        %281 = vmatprep.subr.bf16.mxu0 0
        %282 = vmatpush1.bf16.msra.mxu0 0
        %283 = vmatprep.subr.bf16.mxu0 0
        %284 = vmatpush1.bf16.msra.mxu0 0
        %285 = vmatprep.subr.bf16.mxu0 0
        %286 = vmatpush1.bf16.msra.mxu0 0
        %287 = vmatprep.subr.bf16.mxu0 0
        %288 = vmatpush1.bf16.msra.mxu0 0
        %289 = vmatprep.subr.bf16.mxu0 0
        %290 = vmatpush1.bf16.msra.mxu0 0
        %291 = vmatprep.subr.bf16.mxu0 0
        %292 = vmatpush1.bf16.msra.mxu0 0
        %293 = vmatprep.subr.bf16.mxu0 0
        %294 = vmatpush1.bf16.msra.mxu0 0
        %295 = vmatprep.subr.bf16.mxu0 0
        %296 = vmatpush1.bf16.msra.mxu0 0
        %297 = vmatprep.subr.bf16.mxu0 0
        %298 = vmatpush1.bf16.msra.mxu0 0
        %299 = vmatprep.subr.bf16.mxu0 0
        %300 = vmatpush1.bf16.msra.mxu0 0
        %301 = vmatprep.subr.bf16.mxu0 0
        %302 = vmatpush1.bf16.msra.mxu0 0
        %303 = vmatprep.subr.bf16.mxu0 0
        %304 = vmatpush1.bf16.msra.mxu0 0
        %305 = vmatprep.subr.bf16.mxu0 0
        %306 = vmatpush1.bf16.msra.mxu0 0
        %307 = vmatprep.mubr.bf16.mxu0 0
        %308 = vmatmul.mubr.bf16.gmra.mrb[0].mxu0 %v232
        %v309 = vpop.f32.mrb[0].mxu0
        %v310 = vadd.f32 0.0, %v309
        %v311 = vpop.f32.mrb[0].mxu0
        %v312 = vadd.f32 0.0, %v311
        %v313 = vpop.f32.mrb[0].mxu0
        %v314 = vpop.f32.mrb[0].mxu0
        %315 = vdwg.mxu0
        %v316 = vtanh.pop %v269
        %v317 = vtanh.pop %v271
        %v318 = vtanh.pop %v310
        %v319 = vtanh.pop %v312
        %v324 = vcombine.low %v316, %v317
        %v325 = vcombine.low %v318, %v319
        %328 = vst [vmem:[%s178] sm:$0x77] %v324
        %329 = vst [vmem:[%s178 + $0x8] sm:$0x77] %v325
        %s330 = smul.u32 4, %s13
        %p331 = scmp.lt.s32.totalorder %s330, 43
        %s332 = scalar_select %p331, %s330, 43
        %s333 = smul.addr %s332, 4
        %s334 = scalar_lea.vmem %s2, %s333
        // Predicated region
        $region52: #{generator_forward.7} parent=46 // pred_check
          %p335 = pneg %p78
        $region53: #{generator_forward.7} parent=46 // pred_check_branch
          %337 = sbr.rel (%p335) target = $region55
        $region54: #{generator_forward.7} parent=46 // pred_region
          %s338 = smul.u32 4, %s13
        $region55: #{generator_forward.7} parent=46 // pred_fallthru
          _
      $region47: #{generator_forward.7} parent=5 // pred_fallthru
        _
      %p339 = scmp.le.s32.totalorder 2, %s8
      // Predicated region
      $region56: #{generator_forward.7} parent=5 // pred_check
        %p340 = pneg %p339
      $region57: #{generator_forward.7} parent=5 // pred_check_branch
        %342 = sbr.rel (%p340) target = $region59
      $region58: #{generator_forward.7} parent=5 // pred_region
        %s343 = ssub.s32 %s8, 2
        // Predicated region
        $region60: #{generator_forward.7} parent=58 // pred_check
          %p344 = pneg %p84
        $region61: #{generator_forward.7} parent=58 // pred_check_branch
          %346 = sbr.rel (%p344) target = $region63
        $region62: #{generator_forward.7} parent=58 // pred_region
          %s347 = smul.u32 4, %s14
          %p348 = scmp.lt.s32.totalorder %s347, 43
          %s349 = scalar_select %p348, %s347, 43
          %s350 = smul.addr %s349, 4
          %s351 = scalar_lea.vmem %s2, %s350
        $region63: #{generator_forward.7} parent=58 // pred_fallthru
          _
      $region59: #{generator_forward.7} parent=5 // pred_fallthru
        _
    $region6: #{generator_forward.7} parent=1 // loop_footer
      %s12 = sadd.s32 1, %s8
    $region7: #{generator_forward.7} parent=1 // loop_footer_branch
      %7 = sbr.rel target = $region3
    $region8: #{generator_forward.7} parent=1 // loop_exit
      _

</llo_original>
